<compile_context>
chip_gen: v7x
topology: tpu7x:2x2x1
jax: 0.10.0
libtpu: 0.0.40
codegen_flags: <defaults>
</compile_context>

<pallas_src>
import functools

import jax
import jax.numpy as jnp
from jax.experimental import pallas as pl
from jax.experimental.pallas import tpu as pltpu

LAYER_SIZES = [784, 520, 320, 240, 120, 10]
LANE = 128


def _round_up(x, m):
    return ((x + m - 1) // m) * m


# Padded output widths per layer: [640, 384, 256, 128, 128]
PADDED_OUT = [_round_up(n, LANE) for n in LAYER_SIZES[1:]]


def mlp_kernel(x_ref,
               w1_ref, b1_ref,
               w2_ref, b2_ref,
               w3_ref, b3_ref,
               w4_ref, b4_ref,
               w5_ref, b5_ref,
               o_ref):
    """Full 5-layer MLP on one (TB, 784) batch tile.

    The input tile arrives as f32 and is cast to bf16 in-kernel. bf16
    operands into the MXU, f32 accumulation, f32 bias/ReLU epilogue, bf16
    lane-dense logits writeback.
    """
    def layer(h_bf16, w_ref, b_ref, relu):
        acc = jnp.dot(h_bf16, w_ref[...], preferred_element_type=jnp.float32)
        acc = acc + b_ref[...]                        # f32 epilogue (VPU)
        if relu:
            return jnp.maximum(acc, 0.0).astype(jnp.bfloat16)
        return acc

    h = x_ref[...].astype(jnp.bfloat16)               # in-kernel f32 -> bf16
    h = layer(h, w1_ref, b1_ref, True)
    h = layer(h, w2_ref, b2_ref, True)
    h = layer(h, w3_ref, b3_ref, True)
    h = layer(h, w4_ref, b4_ref, True)
    o_ref[...] = layer(h, w5_ref, b5_ref, False).astype(o_ref.dtype)


def init_params(key):
    """PyTorch-Linear-style init: U(-1/sqrt(fan_in), 1/sqrt(fan_in)).

    Stored already transposed to (in, out) so the kernel computes y = x @ W + b.
    """
    params = []
    for i in range(len(LAYER_SIZES) - 1):
        fan_in, fan_out = LAYER_SIZES[i], LAYER_SIZES[i + 1]
        key, kw, kb = jax.random.split(key, 3)
        bound = 1.0 / (fan_in ** 0.5)
        w = jax.random.uniform(kw, (fan_in, fan_out), jnp.float32, -bound, bound)
        b = jax.random.uniform(kb, (1, fan_out), jnp.float32, -bound, bound)
        params.append((w, b))
    return params


def prepare_params(params):
    """Zero-pad widths to multiples of 128 and cast weights to bf16.

    Padded weight rows/cols and bias lanes are zero, so padded hidden
    activations and padded logit lanes are exactly 0; they are sliced off
    outside the kernel. Biases stay f32 (f32 epilogue).
    """
    prepped = []
    in_dim = LAYER_SIZES[0]                  # 784: K of layer 1 left unpadded
    for i, (w, b) in enumerate(params):
        fan_in, fan_out = w.shape
        out_pad = PADDED_OUT[i]
        w_p = jnp.zeros((in_dim, out_pad), jnp.float32).at[:fan_in, :fan_out].set(w)
        b_p = jnp.zeros((1, out_pad), jnp.float32).at[:, :fan_out].set(b)
        prepped.append((w_p.astype(jnp.bfloat16), b_p))
        in_dim = out_pad
    return prepped


@functools.partial(jax.jit, static_argnames=("block_b",))
def net_forward(x_nchw, prepped_params, block_b=512):
    """Mirrors Net.forward: x.view(-1, 784) then the 5-layer MLP."""
    b = x_nchw.shape[0]
    x = x_nchw.reshape(b, LAYER_SIZES[0])    # stays f32; bf16 cast is in-kernel

    # Batch tiling: tile size is a multiple of 8; pad batch rows with zeros.
    tb = min(block_b, _round_up(b, 8))
    # v7x has 2 TensorCores: for large batches make sure the "parallel" batch
    # axis has >= 2 grid steps so both cores get work (no-op for tiny batches).
    if b >= 256 and _round_up(b, tb) == tb:
        tb = _round_up((b + 1) // 2, 8)
    b_pad = _round_up(b, tb)
    if b_pad != b:
        x = jnp.pad(x, ((0, b_pad - b), (0, 0)))

    flat_params = []
    param_specs = []
    for w, bias in prepped_params:
        flat_params.extend([w, bias])
        # Constant block index -> weights/biases stay VMEM-resident across the
        # batch grid; Buffered(1) because double-buffering a never-moving
        # operand only wastes VMEM.
        param_specs.append(pl.BlockSpec(w.shape, lambda i: (0, 0),
                                        pipeline_mode=pl.Buffered(1)))
        param_specs.append(pl.BlockSpec(bias.shape, lambda i: (0, 0),
                                        pipeline_mode=pl.Buffered(1)))

    n_out_pad = PADDED_OUT[-1]
    out = pl.pallas_call(
        mlp_kernel,
        out_shape=jax.ShapeDtypeStruct((b_pad, n_out_pad), jnp.bfloat16),
        grid=(b_pad // tb,),
        in_specs=[pl.BlockSpec((tb, LAYER_SIZES[0]), lambda i: (i, 0))]
                 + param_specs,
        out_specs=pl.BlockSpec((tb, n_out_pad), lambda i: (i, 0)),
        compiler_params=pltpu.CompilerParams(
            dimension_semantics=("parallel",),
            vmem_limit_bytes=32 * 1024 * 1024),
    )(x, *flat_params)

    # Drop padded batch rows and padded logit lanes; return f32 logits.
    return out[:b, :LAYER_SIZES[-1]].astype(jnp.float32)


def reference_forward(x_nchw, prepped_params):
    """Plain-JAX reference with the same bf16-weight / f32-accumulate math."""
    h = x_nchw.reshape(x_nchw.shape[0], LAYER_SIZES[0]).astype(jnp.bfloat16)
    acc = None
    for i, (w, bias) in enumerate(prepped_params):
        acc = jnp.dot(h.astype(jnp.float32), w.astype(jnp.float32)) + bias
        if i < len(prepped_params) - 1:
            h = jnp.maximum(acc, 0.0).astype(jnp.bfloat16)
    # Kernel writes logits back as bf16; apply the same rounding here.
    return acc[:, :LAYER_SIZES[-1]].astype(jnp.bfloat16).astype(jnp.float32)


if __name__ == "__main__":
    key = jax.random.PRNGKey(0)
    key, kx = jax.random.split(key)

    # Small MNIST-like batch: NCHW (B, 1, 28, 28) -> flattened to 784 features.
    batch = 4
    x = jax.random.normal(kx, (batch, 1, 28, 28), jnp.float32)

    params = init_params(key)
    prepped = prepare_params(params)

    out = net_forward(x, prepped)
    out = jax.block_until_ready(out)

    ref = reference_forward(x, prepped)
    assert out.shape == (batch, 10), out.shape
    assert jnp.allclose(out, ref, atol=1e-2, rtol=1e-2), "mismatch vs JAX reference"

    print("KERNEL_OK")
</pallas_src>

<mosaic_0001>
module attributes {stable_mosaic.version = 11 : i64} {
  func.func @mlp_kernel(%arg0: i32, %arg1: memref<8x784xf32, #tpu.memory_space<vmem>>, %arg2: memref<784x640xbf16, #tpu.memory_space<vmem>>, %arg3: memref<1x640xf32, #tpu.memory_space<vmem>>, %arg4: memref<640x384xbf16, #tpu.memory_space<vmem>>, %arg5: memref<1x384xf32, #tpu.memory_space<vmem>>, %arg6: memref<384x256xbf16, #tpu.memory_space<vmem>>, %arg7: memref<1x256xf32, #tpu.memory_space<vmem>>, %arg8: memref<256x128xbf16, #tpu.memory_space<vmem>>, %arg9: memref<1x128xf32, #tpu.memory_space<vmem>>, %arg10: memref<128x128xbf16, #tpu.memory_space<vmem>>, %arg11: memref<1x128xf32, #tpu.memory_space<vmem>>, %arg12: memref<8x128xbf16, #tpu.memory_space<vmem>>) attributes {dimension_semantics = [#tpu.dimension_semantics<parallel>], iteration_bounds = array<i64: 1>, scalar_prefetch = 0 : i64, scratch_operands = 0 : i64, tpu.core_type = #tpu.core_type<tc>, window_params = [{transform_indices = @transform_0, window_bounds = array<i64: 8, 784>}, {pipeline_mode = #tpu.pipeline_mode<synchronous>, transform_indices = @transform_1, window_bounds = array<i64: 784, 640>}, {pipeline_mode = #tpu.pipeline_mode<synchronous>, transform_indices = @transform_2, window_bounds = array<i64: 1, 640>}, {pipeline_mode = #tpu.pipeline_mode<synchronous>, transform_indices = @transform_3, window_bounds = array<i64: 640, 384>}, {pipeline_mode = #tpu.pipeline_mode<synchronous>, transform_indices = @transform_4, window_bounds = array<i64: 1, 384>}, {pipeline_mode = #tpu.pipeline_mode<synchronous>, transform_indices = @transform_5, window_bounds = array<i64: 384, 256>}, {pipeline_mode = #tpu.pipeline_mode<synchronous>, transform_indices = @transform_6, window_bounds = array<i64: 1, 256>}, {pipeline_mode = #tpu.pipeline_mode<synchronous>, transform_indices = @transform_7, window_bounds = array<i64: 256, 128>}, {pipeline_mode = #tpu.pipeline_mode<synchronous>, transform_indices = @transform_8, window_bounds = array<i64: 1, 128>}, {pipeline_mode = #tpu.pipeline_mode<synchronous>, transform_indices = @transform_9, window_bounds = array<i64: 128, 128>}, {pipeline_mode = #tpu.pipeline_mode<synchronous>, transform_indices = @transform_10, window_bounds = array<i64: 1, 128>}, {transform_indices = @transform_11, window_bounds = array<i64: 8, 128>}]} {
    %c0 = arith.constant 0 : index
    %c0_0 = arith.constant 0 : index
    %0 = vector.load %arg1[%c0, %c0_0] : memref<8x784xf32, #tpu.memory_space<vmem>>, vector<8x784xf32>
    %1 = arith.truncf %0 : vector<8x784xf32> to vector<8x784xbf16>
    %c0_1 = arith.constant 0 : index
    %c0_2 = arith.constant 0 : index
    %2 = vector.load %arg2[%c0_1, %c0_2] : memref<784x640xbf16, #tpu.memory_space<vmem>>, vector<784x640xbf16>
    %cst = arith.constant dense<0.000000e+00> : vector<8x640xf32>
    %3 = tpu.matmul %1, %2, %cst {dimension_numbers = #tpu.dot_dimension_numbers<[1], [0], [0], [1], [0, 0, 1, 1], [], []>} : vector<8x784xbf16>, vector<784x640xbf16>, vector<8x640xf32> -> vector<8x640xf32>
    %c0_3 = arith.constant 0 : index
    %c0_4 = arith.constant 0 : index
    %4 = vector.load %arg3[%c0_3, %c0_4] : memref<1x640xf32, #tpu.memory_space<vmem>>, vector<1x640xf32>
    %5 = vector.broadcast %4 : vector<1x640xf32> to vector<8x640xf32>
    %6 = arith.addf %3, %5 : vector<8x640xf32>
    %cst_5 = arith.constant 0.000000e+00 : f32
    %7 = vector.broadcast %cst_5 : f32 to vector<8x640xf32>
    %8 = arith.maximumf %6, %7 : vector<8x640xf32>
    %9 = arith.truncf %8 : vector<8x640xf32> to vector<8x640xbf16>
    %c0_6 = arith.constant 0 : index
    %c0_7 = arith.constant 0 : index
    %10 = vector.load %arg4[%c0_6, %c0_7] : memref<640x384xbf16, #tpu.memory_space<vmem>>, vector<640x384xbf16>
    %cst_8 = arith.constant dense<0.000000e+00> : vector<8x384xf32>
    %11 = tpu.matmul %9, %10, %cst_8 {dimension_numbers = #tpu.dot_dimension_numbers<[1], [0], [0], [1], [0, 0, 1, 1], [], []>} : vector<8x640xbf16>, vector<640x384xbf16>, vector<8x384xf32> -> vector<8x384xf32>
    %c0_9 = arith.constant 0 : index
    %c0_10 = arith.constant 0 : index
    %12 = vector.load %arg5[%c0_9, %c0_10] : memref<1x384xf32, #tpu.memory_space<vmem>>, vector<1x384xf32>
    %13 = vector.broadcast %12 : vector<1x384xf32> to vector<8x384xf32>
    %14 = arith.addf %11, %13 : vector<8x384xf32>
    %cst_11 = arith.constant 0.000000e+00 : f32
    %15 = vector.broadcast %cst_11 : f32 to vector<8x384xf32>
    %16 = arith.maximumf %14, %15 : vector<8x384xf32>
    %17 = arith.truncf %16 : vector<8x384xf32> to vector<8x384xbf16>
    %c0_12 = arith.constant 0 : index
    %c0_13 = arith.constant 0 : index
    %18 = vector.load %arg6[%c0_12, %c0_13] : memref<384x256xbf16, #tpu.memory_space<vmem>>, vector<384x256xbf16>
    %cst_14 = arith.constant dense<0.000000e+00> : vector<8x256xf32>
    %19 = tpu.matmul %17, %18, %cst_14 {dimension_numbers = #tpu.dot_dimension_numbers<[1], [0], [0], [1], [0, 0, 1, 1], [], []>} : vector<8x384xbf16>, vector<384x256xbf16>, vector<8x256xf32> -> vector<8x256xf32>
    %c0_15 = arith.constant 0 : index
    %c0_16 = arith.constant 0 : index
    %20 = vector.load %arg7[%c0_15, %c0_16] : memref<1x256xf32, #tpu.memory_space<vmem>>, vector<1x256xf32>
    %21 = vector.broadcast %20 : vector<1x256xf32> to vector<8x256xf32>
    %22 = arith.addf %19, %21 : vector<8x256xf32>
    %cst_17 = arith.constant 0.000000e+00 : f32
    %23 = vector.broadcast %cst_17 : f32 to vector<8x256xf32>
    %24 = arith.maximumf %22, %23 : vector<8x256xf32>
    %25 = arith.truncf %24 : vector<8x256xf32> to vector<8x256xbf16>
    %c0_18 = arith.constant 0 : index
    %c0_19 = arith.constant 0 : index
    %26 = vector.load %arg8[%c0_18, %c0_19] : memref<256x128xbf16, #tpu.memory_space<vmem>>, vector<256x128xbf16>
    %cst_20 = arith.constant dense<0.000000e+00> : vector<8x128xf32>
    %27 = tpu.matmul %25, %26, %cst_20 {dimension_numbers = #tpu.dot_dimension_numbers<[1], [0], [0], [1], [0, 0, 1, 1], [], []>} : vector<8x256xbf16>, vector<256x128xbf16>, vector<8x128xf32> -> vector<8x128xf32>
    %c0_21 = arith.constant 0 : index
    %c0_22 = arith.constant 0 : index
    %28 = vector.load %arg9[%c0_21, %c0_22] : memref<1x128xf32, #tpu.memory_space<vmem>>, vector<1x128xf32>
    %29 = vector.broadcast %28 : vector<1x128xf32> to vector<8x128xf32>
    %30 = arith.addf %27, %29 : vector<8x128xf32>
    %cst_23 = arith.constant 0.000000e+00 : f32
    %31 = vector.broadcast %cst_23 : f32 to vector<8x128xf32>
    %32 = arith.maximumf %30, %31 : vector<8x128xf32>
    %33 = arith.truncf %32 : vector<8x128xf32> to vector<8x128xbf16>
    %c0_24 = arith.constant 0 : index
    %c0_25 = arith.constant 0 : index
    %34 = vector.load %arg10[%c0_24, %c0_25] : memref<128x128xbf16, #tpu.memory_space<vmem>>, vector<128x128xbf16>
    %cst_26 = arith.constant dense<0.000000e+00> : vector<8x128xf32>
    %35 = tpu.matmul %33, %34, %cst_26 {dimension_numbers = #tpu.dot_dimension_numbers<[1], [0], [0], [1], [0, 0, 1, 1], [], []>} : vector<8x128xbf16>, vector<128x128xbf16>, vector<8x128xf32> -> vector<8x128xf32>
    %c0_27 = arith.constant 0 : index
    %c0_28 = arith.constant 0 : index
    %36 = vector.load %arg11[%c0_27, %c0_28] : memref<1x128xf32, #tpu.memory_space<vmem>>, vector<1x128xf32>
    %37 = vector.broadcast %36 : vector<1x128xf32> to vector<8x128xf32>
    %38 = arith.addf %35, %37 : vector<8x128xf32>
    %39 = arith.truncf %38 : vector<8x128xf32> to vector<8x128xbf16>
    %c0_29 = arith.constant 0 : index
    %c0_30 = arith.constant 0 : index
    %40 = vector.load %arg12[%c0_29, %c0_30] : memref<8x128xbf16, #tpu.memory_space<vmem>>, vector<8x128xbf16>
    tpu.vector_store %arg12[%c0_29, %c0_30], %39 {strides = array<i32>} : memref<8x128xbf16, #tpu.memory_space<vmem>>, vector<8x128xbf16>,
    return
  }
  func.func @transform_0(%arg0: i32) -> (i32, i32) {
    %c0_i32 = arith.constant 0 : i32
    %c0_i32_0 = arith.constant 0 : i32
    return %arg0, %c0_i32 : i32, i32
  }
  func.func @transform_1(%arg0: i32) -> (i32, i32) {
    %c0_i32 = arith.constant 0 : i32
    %c0_i32_0 = arith.constant 0 : i32
    %c0_i32_1 = arith.constant 0 : i32
    return %c0_i32, %c0_i32_0 : i32, i32
  }
  func.func @transform_2(%arg0: i32) -> (i32, i32) {
    %c0_i32 = arith.constant 0 : i32
    %c0_i32_0 = arith.constant 0 : i32
    %c0_i32_1 = arith.constant 0 : i32
    return %c0_i32, %c0_i32_0 : i32, i32
  }
  func.func @transform_3(%arg0: i32) -> (i32, i32) {
    %c0_i32 = arith.constant 0 : i32
    %c0_i32_0 = arith.constant 0 : i32
    %c0_i32_1 = arith.constant 0 : i32
    return %c0_i32, %c0_i32_0 : i32, i32
  }
  func.func @transform_4(%arg0: i32) -> (i32, i32) {
    %c0_i32 = arith.constant 0 : i32
    %c0_i32_0 = arith.constant 0 : i32
    %c0_i32_1 = arith.constant 0 : i32
    return %c0_i32, %c0_i32_0 : i32, i32
  }
  func.func @transform_5(%arg0: i32) -> (i32, i32) {
    %c0_i32 = arith.constant 0 : i32
    %c0_i32_0 = arith.constant 0 : i32
    %c0_i32_1 = arith.constant 0 : i32
    return %c0_i32, %c0_i32_0 : i32, i32
  }
  func.func @transform_6(%arg0: i32) -> (i32, i32) {
    %c0_i32 = arith.constant 0 : i32
    %c0_i32_0 = arith.constant 0 : i32
    %c0_i32_1 = arith.constant 0 : i32
    return %c0_i32, %c0_i32_0 : i32, i32
  }
  func.func @transform_7(%arg0: i32) -> (i32, i32) {
    %c0_i32 = arith.constant 0 : i32
    %c0_i32_0 = arith.constant 0 : i32
    %c0_i32_1 = arith.constant 0 : i32
    return %c0_i32, %c0_i32_0 : i32, i32
  }
  func.func @transform_8(%arg0: i32) -> (i32, i32) {
    %c0_i32 = arith.constant 0 : i32
    %c0_i32_0 = arith.constant 0 : i32
    %c0_i32_1 = arith.constant 0 : i32
    return %c0_i32, %c0_i32_0 : i32, i32
  }
  func.func @transform_9(%arg0: i32) -> (i32, i32) {
    %c0_i32 = arith.constant 0 : i32
    %c0_i32_0 = arith.constant 0 : i32
    %c0_i32_1 = arith.constant 0 : i32
    return %c0_i32, %c0_i32_0 : i32, i32
  }
  func.func @transform_10(%arg0: i32) -> (i32, i32) {
    %c0_i32 = arith.constant 0 : i32
    %c0_i32_0 = arith.constant 0 : i32
    %c0_i32_1 = arith.constant 0 : i32
    return %c0_i32, %c0_i32_0 : i32, i32
  }
  func.func @transform_11(%arg0: i32) -> (i32, i32) {
    %c0_i32 = arith.constant 0 : i32
    %c0_i32_0 = arith.constant 0 : i32
    return %arg0, %c0_i32 : i32, i32
  }
}

</mosaic_0001>

<llo_original>
// kernel: net_forward.1
$region0: #{net_forward.1}
  #allocation0 [shape = 'u32[]', space=smem, size = 0x4, offset = 0x4, fixed_abs, tag = 'smem constant byte address 0x4 - core index']
  #allocation1 [shape = 'u32[144,128]{1,0:T(1,128)}', space=vmem, size = 0x12000, scoped, tag = 'internal scratch']
  %s0 = inlined_call_operand.vmem [shape: f32[8,784], index: 0, kind: input, shape index: {}]
  %s1 = inlined_call_operand.hbm [shape: bf16[784,640], index: 1, kind: input, shape index: {}]
  %s2 = inlined_call_operand.vmem [shape: f32[1,640], index: 2, kind: input, shape index: {}]
  %s3 = inlined_call_operand.hbm [shape: bf16[640,384], index: 3, kind: input, shape index: {}]
  %s4 = inlined_call_operand.vmem [shape: f32[1,384], index: 4, kind: input, shape index: {}]
  %s5 = inlined_call_operand.vmem [shape: bf16[384,256], index: 5, kind: input, shape index: {}]
  %s6 = inlined_call_operand.vmem [shape: f32[1,256], index: 6, kind: input, shape index: {}]
  %s7 = inlined_call_operand.hbm [shape: bf16[256,128], index: 7, kind: input, shape index: {}]
  %s8 = inlined_call_operand.vmem [shape: f32[1,128], index: 8, kind: input, shape index: {}]
  %s9 = inlined_call_operand.vmem [shape: bf16[128,128], index: 9, kind: input, shape index: {}]
  %s10 = inlined_call_operand.vmem [shape: f32[1,128], index: 10, kind: input, shape index: {}]
  %s11 = inlined_call_operand.vmem [shape: bf16[8,128], index: 11, kind: output, shape index: {}]
  %s12 = sld [smem:[#allocation0]]
  $region66: #{net_forward.1} parent=0
    _
  %s14 = ssub.s32 1, %s12
  %s15 = scalar_select 0, %s14, %s12
  $region1: #{net_forward.1} parent=0
    #allocation2 [shape = 'u8[1003520]{0}', space=vmem, size = 0xf5000, scoped, tag = 'input window, operand 1, single buffered']
    #allocation3 [shape = 's32[1]{0}', space=sflag, size = 0x4, scoped, tag = 'scoped memory for net_forward.1']
    #allocation4 [shape = 'u8[491520]{0}', space=vmem, size = 0x78000, scoped, tag = 'input window, operand 3, single buffered']
    #allocation5 [shape = 's32[1]{0}', space=sflag, size = 0x4, scoped, tag = 'scoped memory for net_forward.1']
    #allocation6 [shape = 'u8[65536]{0}', space=vmem, size = 0x10000, scoped, tag = 'input window, operand 7, single buffered']
    %16 = vsyncpa [#allocation3], 0
    %17 = vsyncpa [#allocation5], 0
    // Predicated region
    $region2: #{net_forward.1} parent=1 // pred_check
      _
    $region3: #{net_forward.1} parent=1 // pred_check_branch
      %19 = sbr.rel (0) target = $region5
    $region4: #{net_forward.1} parent=1 // pred_region
      _
    $region5: #{net_forward.1} parent=1 // pred_fallthru
      _
    // Predicated region
    $region6: #{net_forward.1} parent=1 // pred_check
      _
    $region7: #{net_forward.1} parent=1 // pred_check_branch
      %21 = sbr.rel (0) target = $region9
    $region8: #{net_forward.1} parent=1 // pred_region
      %s23 = ssub.s32 31360, 31360
      %24 = vsyncadd [#allocation3], %s23
      %s25 = sshll.u32 [#allocation2], 4
      %s26 = int_to_ptr.vmem [resolvable:$true] %s25
      %31 = dma.hbm_to_vmem [thread:$0]  %s1, 31360, %s26, [#allocation3], 320, 320, 20
    $region9: #{net_forward.1} parent=1 // pred_fallthru
      _
    // Predicated region
    $region10: #{net_forward.1} parent=1 // pred_check
      _
    $region11: #{net_forward.1} parent=1 // pred_check_branch
      %33 = sbr.rel (0) target = $region13
    $region12: #{net_forward.1} parent=1 // pred_region
      _
    $region13: #{net_forward.1} parent=1 // pred_fallthru
      _
    // Predicated region
    $region14: #{net_forward.1} parent=1 // pred_check
      _
    $region15: #{net_forward.1} parent=1 // pred_check_branch
      %35 = sbr.rel (0) target = $region17
    $region16: #{net_forward.1} parent=1 // pred_region
      %s37 = ssub.s32 15360, 15360
      %38 = vsyncadd [#allocation5], %s37
      %s39 = sshll.u32 [#allocation4], 4
      %s40 = int_to_ptr.vmem [resolvable:$true] %s39
      %45 = dma.hbm_to_vmem [thread:$0]  %s3, 15360, %s40, [#allocation5], 192, 192, 12
    $region17: #{net_forward.1} parent=1 // pred_fallthru
      _
    // Predicated region
    $region18: #{net_forward.1} parent=1 // pred_check
      _
    $region19: #{net_forward.1} parent=1 // pred_check_branch
      %47 = sbr.rel (0) target = $region21
    $region20: #{net_forward.1} parent=1 // pred_region
      _
    $region21: #{net_forward.1} parent=1 // pred_fallthru
      _
    // Predicated region
    $region22: #{net_forward.1} parent=1 // pred_check
      _
    $region23: #{net_forward.1} parent=1 // pred_check_branch
      %49 = sbr.rel (0) target = $region25
    $region24: #{net_forward.1} parent=1 // pred_region
      _
    $region25: #{net_forward.1} parent=1 // pred_fallthru
      _
    // Predicated region
    $region26: #{net_forward.1} parent=1 // pred_check
      _
    $region27: #{net_forward.1} parent=1 // pred_check_branch
      %51 = sbr.rel (0) target = $region29
    $region28: #{net_forward.1} parent=1 // pred_region
      _
    $region29: #{net_forward.1} parent=1 // pred_fallthru
      _
    // Predicated region
    $region30: #{net_forward.1} parent=1 // pred_check
      _
    $region31: #{net_forward.1} parent=1 // pred_check_branch
      %53 = sbr.rel (0) target = $region33
    $region32: #{net_forward.1} parent=1 // pred_region
      %s55 = ssub.s32 2048, 2048
      %56 = vsyncadd [#allocation5], %s55
      %s57 = sshll.u32 [#allocation6], 4
      %s58 = int_to_ptr.vmem [resolvable:$true] %s57
      %63 = dma.hbm_to_vmem [thread:$0]  %s7, 2048, %s58, [#allocation5], 64, 64, 4
    $region33: #{net_forward.1} parent=1 // pred_fallthru
      _
    // Predicated region
    $region34: #{net_forward.1} parent=1 // pred_check
      _
    $region35: #{net_forward.1} parent=1 // pred_check_branch
      %65 = sbr.rel (0) target = $region37
    $region36: #{net_forward.1} parent=1 // pred_region
      _
    $region37: #{net_forward.1} parent=1 // pred_fallthru
      _
    // Predicated region
    $region38: #{net_forward.1} parent=1 // pred_check
      _
    $region39: #{net_forward.1} parent=1 // pred_check_branch
      %67 = sbr.rel (0) target = $region41
    $region40: #{net_forward.1} parent=1 // pred_region
      _
    $region41: #{net_forward.1} parent=1 // pred_fallthru
      _
    // Predicated region
    $region42: #{net_forward.1} parent=1 // pred_check
      _
    $region43: #{net_forward.1} parent=1 // pred_check_branch
      %69 = sbr.rel (0) target = $region45
    $region44: #{net_forward.1} parent=1 // pred_region
      _
    $region45: #{net_forward.1} parent=1 // pred_fallthru
      _
    // Predicated region
    $region46: #{net_forward.1} parent=1 // pred_check
      _
    $region47: #{net_forward.1} parent=1 // pred_check_branch
      %71 = sbr.rel (0) target = $region49
    $region48: #{net_forward.1} parent=1 // pred_region
      %72 = dma.done [#allocation3], 31360
    $region49: #{net_forward.1} parent=1 // pred_fallthru
      _
    // Predicated region
    $region50: #{net_forward.1} parent=1 // pred_check
      _
    $region51: #{net_forward.1} parent=1 // pred_check_branch
      %74 = sbr.rel (0) target = $region53
    $region52: #{net_forward.1} parent=1 // pred_region
      %75 = dma.done [#allocation5], 15360
    $region53: #{net_forward.1} parent=1 // pred_fallthru
      _
    // Predicated region
    $region54: #{net_forward.1} parent=1 // pred_check
      _
    $region55: #{net_forward.1} parent=1 // pred_check_branch
      %77 = sbr.rel (0) target = $region57
    $region56: #{net_forward.1} parent=1 // pred_region
      %78 = dma.done [#allocation5], 2048
    $region57: #{net_forward.1} parent=1 // pred_fallthru
      _
    %v80 = vld [vmem:[%s0] sm:$0xff]
    %v81 = vld [vmem:[%s0 + $0x8] sm:$0xff]
    %v82 = vld [vmem:[%s0 + $0x10] sm:$0xff]
    %v83 = vld [vmem:[%s0 + $0x18] sm:$0xff]
    %v84 = vld [vmem:[%s0 + $0x20] sm:$0xff]
    %v85 = vld [vmem:[%s0 + $0x28] sm:$0xff]
    %v86 = vld [vmem:[%s0 + $0x30] sm:$0xff]
    %v87 = vpack.c.bf16 %v80, %v80
    %v88 = vpack.c.bf16 %v81, %v81
    %v89 = vpack.c.bf16 %v82, %v82
    %v90 = vpack.c.bf16 %v83, %v83
    %v91 = vpack.c.bf16 %v84, %v84
    %v92 = vpack.c.bf16 %v85, %v85
    %v93 = vpack.c.bf16 %v86, %v86
    %v94 = vld [vmem:[#allocation2] sm:$0xff]
    %v95 = vld [vmem:[#allocation2 + $0x8] sm:$0xff]
    %v96 = vld [vmem:[#allocation2 + $0x10] sm:$0xf]
    %v97 = vld [vmem:[#allocation2 + $0x14] sm:$0xff]
    %v98 = vld [vmem:[#allocation2 + $0x1c] sm:$0xff]
    %v99 = vld [vmem:[#allocation2 + $0x24] sm:$0xf]
    %v100 = vld [vmem:[#allocation2 + $0x28] sm:$0xff]
    %v101 = vld [vmem:[#allocation2 + $0x30] sm:$0xff]
    %v102 = vld [vmem:[#allocation2 + $0x38] sm:$0xf]
    %v103 = vld [vmem:[#allocation2 + $0x3c] sm:$0xff]
    %v104 = vld [vmem:[#allocation2 + $0x44] sm:$0xff]
    %v105 = vld [vmem:[#allocation2 + $0x4c] sm:$0xf]
    %v106 = vld [vmem:[#allocation2 + $0x50] sm:$0xff]
    %v107 = vld [vmem:[#allocation2 + $0x58] sm:$0xff]
    %v108 = vld [vmem:[#allocation2 + $0x60] sm:$0xf]
    %v109 = vld [vmem:[#allocation2 + $0x64] sm:$0xff]
    %v110 = vld [vmem:[#allocation2 + $0x6c] sm:$0xff]
    %v111 = vld [vmem:[#allocation2 + $0x74] sm:$0xf]
    %v112 = vld [vmem:[#allocation2 + $0x78] sm:$0xff]
    %v113 = vld [vmem:[#allocation2 + $0x80] sm:$0xff]
    %v114 = vld [vmem:[#allocation2 + $0x88] sm:$0xf]
    %v115 = vld [vmem:[#allocation2 + $0x8c] sm:$0xff]
    %v116 = vld [vmem:[#allocation2 + $0x94] sm:$0xff]
    %v117 = vld [vmem:[#allocation2 + $0x9c] sm:$0xf]
    %v118 = vld [vmem:[#allocation2 + $0xa0] sm:$0xff]
    %v119 = vld [vmem:[#allocation2 + $0xa8] sm:$0xff]
    %v120 = vld [vmem:[#allocation2 + $0xb0] sm:$0xf]
    %v121 = vld [vmem:[#allocation2 + $0xb4] sm:$0xff]
    %v122 = vld [vmem:[#allocation2 + $0xbc] sm:$0xff]
    %v123 = vld [vmem:[#allocation2 + $0xc4] sm:$0xf]
    %v124 = vld [vmem:[#allocation2 + $0xc8] sm:$0xff]
    %v125 = vld [vmem:[#allocation2 + $0xd0] sm:$0xff]
    %v126 = vld [vmem:[#allocation2 + $0xd8] sm:$0xf]
    %v127 = vld [vmem:[#allocation2 + $0xdc] sm:$0xff]
    %v128 = vld [vmem:[#allocation2 + $0xe4] sm:$0xff]
    %v129 = vld [vmem:[#allocation2 + $0xec] sm:$0xf]
    %v130 = vld [vmem:[#allocation2 + $0xf0] sm:$0xff]
    %v131 = vld [vmem:[#allocation2 + $0xf8] sm:$0xff]
    %v132 = vld [vmem:[#allocation2 + $0x100] sm:$0xf]
    %v133 = vld [vmem:[#allocation2 + $0x104] sm:$0xff]
    %v134 = vld [vmem:[#allocation2 + $0x10c] sm:$0xff]
    %v135 = vld [vmem:[#allocation2 + $0x114] sm:$0xf]
    %v136 = vld [vmem:[#allocation2 + $0x118] sm:$0xff]
    %v137 = vld [vmem:[#allocation2 + $0x120] sm:$0xff]
    %v138 = vld [vmem:[#allocation2 + $0x128] sm:$0xf]
    %v139 = vld [vmem:[#allocation2 + $0x12c] sm:$0xff]
    %v140 = vld [vmem:[#allocation2 + $0x134] sm:$0xff]
    %v141 = vld [vmem:[#allocation2 + $0x13c] sm:$0xf]
    %v142 = vld [vmem:[#allocation2 + $0x140] sm:$0xff]
    %v143 = vld [vmem:[#allocation2 + $0x148] sm:$0xff]
    %v144 = vld [vmem:[#allocation2 + $0x150] sm:$0xf]
    %v145 = vld [vmem:[#allocation2 + $0x154] sm:$0xff]
    %v146 = vld [vmem:[#allocation2 + $0x15c] sm:$0xff]
    %v147 = vld [vmem:[#allocation2 + $0x164] sm:$0xf]
    %v148 = vld [vmem:[#allocation2 + $0x168] sm:$0xff]
    %v149 = vld [vmem:[#allocation2 + $0x170] sm:$0xff]
    %v150 = vld [vmem:[#allocation2 + $0x178] sm:$0xf]
    %v151 = vld [vmem:[#allocation2 + $0x17c] sm:$0xff]
    %v152 = vld [vmem:[#allocation2 + $0x184] sm:$0xff]
    %v153 = vld [vmem:[#allocation2 + $0x18c] sm:$0xf]
    %v154 = vld [vmem:[#allocation2 + $0x190] sm:$0xff]
    %v155 = vld [vmem:[#allocation2 + $0x198] sm:$0xff]
    %v156 = vld [vmem:[#allocation2 + $0x1a0] sm:$0xf]
    %v157 = vld [vmem:[#allocation2 + $0x1a4] sm:$0xff]
    %v158 = vld [vmem:[#allocation2 + $0x1ac] sm:$0xff]
    %v159 = vld [vmem:[#allocation2 + $0x1b4] sm:$0xf]
    %v160 = vld [vmem:[#allocation2 + $0x1b8] sm:$0xff]
    %v161 = vld [vmem:[#allocation2 + $0x1c0] sm:$0xff]
    %v162 = vld [vmem:[#allocation2 + $0x1c8] sm:$0xf]
    %v163 = vld [vmem:[#allocation2 + $0x1cc] sm:$0xff]
    %v164 = vld [vmem:[#allocation2 + $0x1d4] sm:$0xff]
    %v165 = vld [vmem:[#allocation2 + $0x1dc] sm:$0xf]
    %v166 = vld [vmem:[#allocation2 + $0x1e0] sm:$0xff]
    %v167 = vld [vmem:[#allocation2 + $0x1e8] sm:$0xff]
    %v168 = vld [vmem:[#allocation2 + $0x1f0] sm:$0xf]
    %v169 = vld [vmem:[#allocation2 + $0x1f4] sm:$0xff]
    %v170 = vld [vmem:[#allocation2 + $0x1fc] sm:$0xff]
    %v171 = vld [vmem:[#allocation2 + $0x204] sm:$0xf]
    %v172 = vld [vmem:[#allocation2 + $0x208] sm:$0xff]
    %v173 = vld [vmem:[#allocation2 + $0x210] sm:$0xff]
    %v174 = vld [vmem:[#allocation2 + $0x218] sm:$0xf]
    %v175 = vld [vmem:[#allocation2 + $0x21c] sm:$0xff]
    %v176 = vld [vmem:[#allocation2 + $0x224] sm:$0xff]
    %v177 = vld [vmem:[#allocation2 + $0x22c] sm:$0xf]
    %v178 = vld [vmem:[#allocation2 + $0x230] sm:$0xff]
    %v179 = vld [vmem:[#allocation2 + $0x238] sm:$0xff]
    %v180 = vld [vmem:[#allocation2 + $0x240] sm:$0xf]
    %v181 = vld [vmem:[#allocation2 + $0x244] sm:$0xff]
    %v182 = vld [vmem:[#allocation2 + $0x24c] sm:$0xff]
    %v183 = vld [vmem:[#allocation2 + $0x254] sm:$0xf]
    %v184 = vld [vmem:[#allocation2 + $0x258] sm:$0xff]
    %v185 = vld [vmem:[#allocation2 + $0x260] sm:$0xff]
    %v186 = vld [vmem:[#allocation2 + $0x268] sm:$0xf]
    %v187 = vld [vmem:[#allocation2 + $0x26c] sm:$0xff]
    %v188 = vld [vmem:[#allocation2 + $0x274] sm:$0xff]
    %v189 = vld [vmem:[#allocation2 + $0x27c] sm:$0xf]
    %v190 = vld [vmem:[#allocation2 + $0x280] sm:$0xff]
    %v191 = vld [vmem:[#allocation2 + $0x288] sm:$0xff]
    %v192 = vld [vmem:[#allocation2 + $0x290] sm:$0xf]
    %v193 = vld [vmem:[#allocation2 + $0x294] sm:$0xff]
    %v194 = vld [vmem:[#allocation2 + $0x29c] sm:$0xff]
    %v195 = vld [vmem:[#allocation2 + $0x2a4] sm:$0xf]
    %v196 = vld [vmem:[#allocation2 + $0x2a8] sm:$0xff]
    %v197 = vld [vmem:[#allocation2 + $0x2b0] sm:$0xff]
    %v198 = vld [vmem:[#allocation2 + $0x2b8] sm:$0xf]
    %v199 = vld [vmem:[#allocation2 + $0x2bc] sm:$0xff]
    %v200 = vld [vmem:[#allocation2 + $0x2c4] sm:$0xff]
    %v201 = vld [vmem:[#allocation2 + $0x2cc] sm:$0xf]
    %v202 = vld [vmem:[#allocation2 + $0x2d0] sm:$0xff]
    %v203 = vld [vmem:[#allocation2 + $0x2d8] sm:$0xff]
    %v204 = vld [vmem:[#allocation2 + $0x2e0] sm:$0xf]
    %v205 = vld [vmem:[#allocation2 + $0x2e4] sm:$0xff]
    %v206 = vld [vmem:[#allocation2 + $0x2ec] sm:$0xff]
    %v207 = vld [vmem:[#allocation2 + $0x2f4] sm:$0xf]
    %v208 = vld [vmem:[#allocation2 + $0x2f8] sm:$0xff]
    %v209 = vld [vmem:[#allocation2 + $0x300] sm:$0xff]
    %v210 = vld [vmem:[#allocation2 + $0x308] sm:$0xf]
    %v211 = vld [vmem:[#allocation2 + $0x30c] sm:$0xff]
    %v212 = vld [vmem:[#allocation2 + $0x314] sm:$0xff]
    %v213 = vld [vmem:[#allocation2 + $0x31c] sm:$0xf]
    %v214 = vld [vmem:[#allocation2 + $0x320] sm:$0xff]
    %v215 = vld [vmem:[#allocation2 + $0x328] sm:$0xff]
    %v216 = vld [vmem:[#allocation2 + $0x330] sm:$0xf]
    %v217 = vld [vmem:[#allocation2 + $0x334] sm:$0xff]
    %v218 = vld [vmem:[#allocation2 + $0x33c] sm:$0xff]
    %v219 = vld [vmem:[#allocation2 + $0x344] sm:$0xf]
    %v220 = vld [vmem:[#allocation2 + $0x348] sm:$0xff]
    %v221 = vld [vmem:[#allocation2 + $0x350] sm:$0xff]
    %v222 = vld [vmem:[#allocation2 + $0x358] sm:$0xf]
    %v223 = vld [vmem:[#allocation2 + $0x35c] sm:$0xff]
    %v224 = vld [vmem:[#allocation2 + $0x364] sm:$0xff]
    %v225 = vld [vmem:[#allocation2 + $0x36c] sm:$0xf]
    %v226 = vld [vmem:[#allocation2 + $0x370] sm:$0xff]
    %v227 = vld [vmem:[#allocation2 + $0x378] sm:$0xff]
    %v228 = vld [vmem:[#allocation2 + $0x380] sm:$0xf]
    %v229 = vld [vmem:[#allocation2 + $0x384] sm:$0xff]
    %v230 = vld [vmem:[#allocation2 + $0x38c] sm:$0xff]
    %v231 = vld [vmem:[#allocation2 + $0x394] sm:$0xf]
    %v232 = vld [vmem:[#allocation2 + $0x398] sm:$0xff]
    %v233 = vld [vmem:[#allocation2 + $0x3a0] sm:$0xff]
    %v234 = vld [vmem:[#allocation2 + $0x3a8] sm:$0xf]
    %v235 = vld [vmem:[#allocation2 + $0x3ac] sm:$0xff]
    %v236 = vld [vmem:[#allocation2 + $0x3b4] sm:$0xff]
    %v237 = vld [vmem:[#allocation2 + $0x3bc] sm:$0xf]
    %v238 = vld [vmem:[#allocation2 + $0x3c0] sm:$0xff]
    %v239 = vld [vmem:[#allocation2 + $0x3c8] sm:$0xff]
    %v240 = vld [vmem:[#allocation2 + $0x3d0] sm:$0xf]
    %v241 = vld [vmem:[#allocation2 + $0x3d4] sm:$0xff]
    %v242 = vld [vmem:[#allocation2 + $0x3dc] sm:$0xff]
    %v243 = vld [vmem:[#allocation2 + $0x3e4] sm:$0xf]
    %v244 = vld [vmem:[#allocation2 + $0x3e8] sm:$0xff]
    %v245 = vld [vmem:[#allocation2 + $0x3f0] sm:$0xff]
    %v246 = vld [vmem:[#allocation2 + $0x3f8] sm:$0xf]
    %v247 = vld [vmem:[#allocation2 + $0x3fc] sm:$0xff]
    %v248 = vld [vmem:[#allocation2 + $0x404] sm:$0xff]
    %v249 = vld [vmem:[#allocation2 + $0x40c] sm:$0xf]
    %v250 = vld [vmem:[#allocation2 + $0x410] sm:$0xff]
    %v251 = vld [vmem:[#allocation2 + $0x418] sm:$0xff]
    %v252 = vld [vmem:[#allocation2 + $0x420] sm:$0xf]
    %v253 = vld [vmem:[#allocation2 + $0x424] sm:$0xff]
    %v254 = vld [vmem:[#allocation2 + $0x42c] sm:$0xff]
    %v255 = vld [vmem:[#allocation2 + $0x434] sm:$0xf]
    %v256 = vld [vmem:[#allocation2 + $0x438] sm:$0xff]
    %v257 = vld [vmem:[#allocation2 + $0x440] sm:$0xff]
    %v258 = vld [vmem:[#allocation2 + $0x448] sm:$0xf]
    %v259 = vld [vmem:[#allocation2 + $0x44c] sm:$0xff]
    %v260 = vld [vmem:[#allocation2 + $0x454] sm:$0xff]
    %v261 = vld [vmem:[#allocation2 + $0x45c] sm:$0xf]
    %v262 = vld [vmem:[#allocation2 + $0x460] sm:$0xff]
    %v263 = vld [vmem:[#allocation2 + $0x468] sm:$0xff]
    %v264 = vld [vmem:[#allocation2 + $0x470] sm:$0xf]
    %v265 = vld [vmem:[#allocation2 + $0x474] sm:$0xff]
    %v266 = vld [vmem:[#allocation2 + $0x47c] sm:$0xff]
    %v267 = vld [vmem:[#allocation2 + $0x484] sm:$0xf]
    %v268 = vld [vmem:[#allocation2 + $0x488] sm:$0xff]
    %v269 = vld [vmem:[#allocation2 + $0x490] sm:$0xff]
    %v270 = vld [vmem:[#allocation2 + $0x498] sm:$0xf]
    %v271 = vld [vmem:[#allocation2 + $0x49c] sm:$0xff]
    %v272 = vld [vmem:[#allocation2 + $0x4a4] sm:$0xff]
    %v273 = vld [vmem:[#allocation2 + $0x4ac] sm:$0xf]
    %v274 = vld [vmem:[#allocation2 + $0x4b0] sm:$0xff]
    %v275 = vld [vmem:[#allocation2 + $0x4b8] sm:$0xff]
    %v276 = vld [vmem:[#allocation2 + $0x4c0] sm:$0xf]
    %v277 = vld [vmem:[#allocation2 + $0x4c4] sm:$0xff]
    %v278 = vld [vmem:[#allocation2 + $0x4cc] sm:$0xff]
    %v279 = vld [vmem:[#allocation2 + $0x4d4] sm:$0xf]
    %v280 = vld [vmem:[#allocation2 + $0x4d8] sm:$0xff]
    %v281 = vld [vmem:[#allocation2 + $0x4e0] sm:$0xff]
    %v282 = vld [vmem:[#allocation2 + $0x4e8] sm:$0xf]
    %v283 = vld [vmem:[#allocation2 + $0x4ec] sm:$0xff]
    %v284 = vld [vmem:[#allocation2 + $0x4f4] sm:$0xff]
    %v285 = vld [vmem:[#allocation2 + $0x4fc] sm:$0xf]
    %v286 = vld [vmem:[#allocation2 + $0x500] sm:$0xff]
    %v287 = vld [vmem:[#allocation2 + $0x508] sm:$0xff]
    %v288 = vld [vmem:[#allocation2 + $0x510] sm:$0xf]
    %v289 = vld [vmem:[#allocation2 + $0x514] sm:$0xff]
    %v290 = vld [vmem:[#allocation2 + $0x51c] sm:$0xff]
    %v291 = vld [vmem:[#allocation2 + $0x524] sm:$0xf]
    %v292 = vld [vmem:[#allocation2 + $0x528] sm:$0xff]
    %v293 = vld [vmem:[#allocation2 + $0x530] sm:$0xff]
    %v294 = vld [vmem:[#allocation2 + $0x538] sm:$0xf]
    %v295 = vld [vmem:[#allocation2 + $0x53c] sm:$0xff]
    %v296 = vld [vmem:[#allocation2 + $0x544] sm:$0xff]
    %v297 = vld [vmem:[#allocation2 + $0x54c] sm:$0xf]
    %v298 = vld [vmem:[#allocation2 + $0x550] sm:$0xff]
    %v299 = vld [vmem:[#allocation2 + $0x558] sm:$0xff]
    %v300 = vld [vmem:[#allocation2 + $0x560] sm:$0xf]
    %v301 = vld [vmem:[#allocation2 + $0x564] sm:$0xff]
    %v302 = vld [vmem:[#allocation2 + $0x56c] sm:$0xff]
    %v303 = vld [vmem:[#allocation2 + $0x574] sm:$0xf]
    %v304 = vld [vmem:[#allocation2 + $0x578] sm:$0xff]
    %v305 = vld [vmem:[#allocation2 + $0x580] sm:$0xff]
    %v306 = vld [vmem:[#allocation2 + $0x588] sm:$0xf]
    %v307 = vld [vmem:[#allocation2 + $0x58c] sm:$0xff]
    %v308 = vld [vmem:[#allocation2 + $0x594] sm:$0xff]
    %v309 = vld [vmem:[#allocation2 + $0x59c] sm:$0xf]
    %v310 = vld [vmem:[#allocation2 + $0x5a0] sm:$0xff]
    %v311 = vld [vmem:[#allocation2 + $0x5a8] sm:$0xff]
    %v312 = vld [vmem:[#allocation2 + $0x5b0] sm:$0xf]
    %v313 = vld [vmem:[#allocation2 + $0x5b4] sm:$0xff]
    %v314 = vld [vmem:[#allocation2 + $0x5bc] sm:$0xff]
    %v315 = vld [vmem:[#allocation2 + $0x5c4] sm:$0xf]
    %v316 = vld [vmem:[#allocation2 + $0x5c8] sm:$0xff]
    %v317 = vld [vmem:[#allocation2 + $0x5d0] sm:$0xff]
    %v318 = vld [vmem:[#allocation2 + $0x5d8] sm:$0xf]
    %v319 = vld [vmem:[#allocation2 + $0x5dc] sm:$0xff]
    %v320 = vld [vmem:[#allocation2 + $0x5e4] sm:$0xff]
    %v321 = vld [vmem:[#allocation2 + $0x5ec] sm:$0xf]
    %v322 = vld [vmem:[#allocation2 + $0x5f0] sm:$0xff]
    %v323 = vld [vmem:[#allocation2 + $0x5f8] sm:$0xff]
    %v324 = vld [vmem:[#allocation2 + $0x600] sm:$0xf]
    %v325 = vld [vmem:[#allocation2 + $0x604] sm:$0xff]
    %v326 = vld [vmem:[#allocation2 + $0x60c] sm:$0xff]
    %v327 = vld [vmem:[#allocation2 + $0x614] sm:$0xf]
    %v328 = vld [vmem:[#allocation2 + $0x618] sm:$0xff]
    %v329 = vld [vmem:[#allocation2 + $0x620] sm:$0xff]
    %v330 = vld [vmem:[#allocation2 + $0x628] sm:$0xf]
    %v331 = vld [vmem:[#allocation2 + $0x62c] sm:$0xff]
    %v332 = vld [vmem:[#allocation2 + $0x634] sm:$0xff]
    %v333 = vld [vmem:[#allocation2 + $0x63c] sm:$0xf]
    %v334 = vld [vmem:[#allocation2 + $0x640] sm:$0xff]
    %v335 = vld [vmem:[#allocation2 + $0x648] sm:$0xff]
    %v336 = vld [vmem:[#allocation2 + $0x650] sm:$0xf]
    %v337 = vld [vmem:[#allocation2 + $0x654] sm:$0xff]
    %v338 = vld [vmem:[#allocation2 + $0x65c] sm:$0xff]
    %v339 = vld [vmem:[#allocation2 + $0x664] sm:$0xf]
    %v340 = vld [vmem:[#allocation2 + $0x668] sm:$0xff]
    %v341 = vld [vmem:[#allocation2 + $0x670] sm:$0xff]
    %v342 = vld [vmem:[#allocation2 + $0x678] sm:$0xf]
    %v343 = vld [vmem:[#allocation2 + $0x67c] sm:$0xff]
    %v344 = vld [vmem:[#allocation2 + $0x684] sm:$0xff]
    %v345 = vld [vmem:[#allocation2 + $0x68c] sm:$0xf]
    %v346 = vld [vmem:[#allocation2 + $0x690] sm:$0xff]
    %v347 = vld [vmem:[#allocation2 + $0x698] sm:$0xff]
    %v348 = vld [vmem:[#allocation2 + $0x6a0] sm:$0xf]
    %v349 = vld [vmem:[#allocation2 + $0x6a4] sm:$0xff]
    %v350 = vld [vmem:[#allocation2 + $0x6ac] sm:$0xff]
    %v351 = vld [vmem:[#allocation2 + $0x6b4] sm:$0xf]
    %v352 = vld [vmem:[#allocation2 + $0x6b8] sm:$0xff]
    %v353 = vld [vmem:[#allocation2 + $0x6c0] sm:$0xff]
    %v354 = vld [vmem:[#allocation2 + $0x6c8] sm:$0xf]
    %v355 = vld [vmem:[#allocation2 + $0x6cc] sm:$0xff]
    %v356 = vld [vmem:[#allocation2 + $0x6d4] sm:$0xff]
    %v357 = vld [vmem:[#allocation2 + $0x6dc] sm:$0xf]
    %v358 = vld [vmem:[#allocation2 + $0x6e0] sm:$0xff]
    %v359 = vld [vmem:[#allocation2 + $0x6e8] sm:$0xff]
    %v360 = vld [vmem:[#allocation2 + $0x6f0] sm:$0xf]
    %v361 = vld [vmem:[#allocation2 + $0x6f4] sm:$0xff]
    %v362 = vld [vmem:[#allocation2 + $0x6fc] sm:$0xff]
    %v363 = vld [vmem:[#allocation2 + $0x704] sm:$0xf]
    %v364 = vld [vmem:[#allocation2 + $0x708] sm:$0xff]
    %v365 = vld [vmem:[#allocation2 + $0x710] sm:$0xff]
    %v366 = vld [vmem:[#allocation2 + $0x718] sm:$0xf]
    %v367 = vld [vmem:[#allocation2 + $0x71c] sm:$0xff]
    %v368 = vld [vmem:[#allocation2 + $0x724] sm:$0xff]
    %v369 = vld [vmem:[#allocation2 + $0x72c] sm:$0xf]
    %v370 = vld [vmem:[#allocation2 + $0x730] sm:$0xff]
    %v371 = vld [vmem:[#allocation2 + $0x738] sm:$0xff]
    %v372 = vld [vmem:[#allocation2 + $0x740] sm:$0xf]
    %v373 = vld [vmem:[#allocation2 + $0x744] sm:$0xff]
    %v374 = vld [vmem:[#allocation2 + $0x74c] sm:$0xff]
    %v375 = vld [vmem:[#allocation2 + $0x754] sm:$0xf]
    %v376 = vld [vmem:[#allocation2 + $0x758] sm:$0xff]
    %v377 = vld [vmem:[#allocation2 + $0x760] sm:$0xff]
    %v378 = vld [vmem:[#allocation2 + $0x768] sm:$0xf]
    %v379 = vld [vmem:[#allocation2 + $0x76c] sm:$0xff]
    %v380 = vld [vmem:[#allocation2 + $0x774] sm:$0xff]
    %v381 = vld [vmem:[#allocation2 + $0x77c] sm:$0xf]
    %v382 = vld [vmem:[#allocation2 + $0x780] sm:$0xff]
    %v383 = vld [vmem:[#allocation2 + $0x788] sm:$0xff]
    %v384 = vld [vmem:[#allocation2 + $0x790] sm:$0xf]
    %v385 = vld [vmem:[#allocation2 + $0x794] sm:$0xff]
    %v386 = vld [vmem:[#allocation2 + $0x79c] sm:$0xff]
    %v387 = vld [vmem:[#allocation2 + $0x7a4] sm:$0xf]
    %v388 = vld [vmem:[%s2] sm:$0x1f]
    %v390 = vlaneseq
    %v391 = vshrl.u32 %v390, 7
    %v392 = vsub.s32 0, %v391
    %v393 = vrot.slane %v388, %v392
    %v394 = vlaneseq
    %v395 = vshrl.u32 %v394, 7
    %v396 = vsub.s32 1, %v395
    %v397 = vrot.slane %v388, %v396
    %v398 = vlaneseq
    %v399 = vshrl.u32 %v398, 7
    %v400 = vsub.s32 2, %v399
    %v401 = vrot.slane %v388, %v400
    %v402 = vlaneseq
    %v403 = vshrl.u32 %v402, 7
    %v404 = vsub.s32 3, %v403
    %v405 = vrot.slane %v388, %v404
    %v406 = vlaneseq
    %v407 = vshrl.u32 %v406, 7
    %v408 = vsub.s32 4, %v407
    %v409 = vrot.slane %v388, %v408
    %v709 = vunpack.c.l.b16 %v94
    %v710 = vunpack.c.h.b16 %v94
    %v711 = vunpack.c.l.b16 %v95
    %v712 = vunpack.c.h.b16 %v95
    %v713 = vunpack.c.l.b16 %v96
    %v714 = vunpack.c.l.b16 %v97
    %v715 = vunpack.c.h.b16 %v97
    %v716 = vunpack.c.l.b16 %v98
    %v717 = vunpack.c.h.b16 %v98
    %v718 = vunpack.c.l.b16 %v99
    %v719 = vunpack.c.l.b16 %v100
    %v720 = vunpack.c.h.b16 %v100
    %v721 = vunpack.c.l.b16 %v101
    %v722 = vunpack.c.h.b16 %v101
    %v723 = vunpack.c.l.b16 %v102
    %v724 = vunpack.c.l.b16 %v103
    %v725 = vunpack.c.h.b16 %v103
    %v726 = vunpack.c.l.b16 %v104
    %v727 = vunpack.c.h.b16 %v104
    %v728 = vunpack.c.l.b16 %v105
    %v729 = vunpack.c.l.b16 %v106
    %v730 = vunpack.c.h.b16 %v106
    %v731 = vunpack.c.l.b16 %v107
    %v732 = vunpack.c.h.b16 %v107
    %v733 = vunpack.c.l.b16 %v108
    %v734 = vunpack.c.l.b16 %v109
    %v735 = vunpack.c.h.b16 %v109
    %v736 = vunpack.c.l.b16 %v110
    %v737 = vunpack.c.h.b16 %v110
    %v738 = vunpack.c.l.b16 %v111
    %v739 = vunpack.c.l.b16 %v112
    %v740 = vunpack.c.h.b16 %v112
    %v741 = vunpack.c.l.b16 %v113
    %v742 = vunpack.c.h.b16 %v113
    %v743 = vunpack.c.l.b16 %v114
    %v744 = vunpack.c.l.b16 %v115
    %v745 = vunpack.c.h.b16 %v115
    %v746 = vunpack.c.l.b16 %v116
    %v747 = vunpack.c.h.b16 %v116
    %v748 = vunpack.c.l.b16 %v117
    %v749 = vunpack.c.l.b16 %v118
    %v750 = vunpack.c.h.b16 %v118
    %v751 = vunpack.c.l.b16 %v119
    %v752 = vunpack.c.h.b16 %v119
    %v753 = vunpack.c.l.b16 %v120
    %v754 = vunpack.c.l.b16 %v121
    %v755 = vunpack.c.h.b16 %v121
    %v756 = vunpack.c.l.b16 %v122
    %v757 = vunpack.c.h.b16 %v122
    %v758 = vunpack.c.l.b16 %v123
    %v759 = vunpack.c.l.b16 %v124
    %v760 = vunpack.c.h.b16 %v124
    %v761 = vunpack.c.l.b16 %v125
    %v762 = vunpack.c.h.b16 %v125
    %v763 = vunpack.c.l.b16 %v126
    %v764 = vunpack.c.l.b16 %v127
    %v765 = vunpack.c.h.b16 %v127
    %v766 = vunpack.c.l.b16 %v128
    %v767 = vunpack.c.h.b16 %v128
    %v768 = vunpack.c.l.b16 %v129
    %v769 = vunpack.c.l.b16 %v130
    %v770 = vunpack.c.h.b16 %v130
    %v771 = vunpack.c.l.b16 %v131
    %v772 = vunpack.c.h.b16 %v131
    %v773 = vunpack.c.l.b16 %v132
    %v774 = vunpack.c.l.b16 %v133
    %v775 = vunpack.c.h.b16 %v133
    %v776 = vunpack.c.l.b16 %v134
    %v777 = vunpack.c.h.b16 %v134
    %v778 = vunpack.c.l.b16 %v135
    %v779 = vunpack.c.l.b16 %v136
    %v780 = vunpack.c.h.b16 %v136
    %v781 = vunpack.c.l.b16 %v137
    %v782 = vunpack.c.h.b16 %v137
    %v783 = vunpack.c.l.b16 %v138
    %v784 = vunpack.c.l.b16 %v139
    %v785 = vunpack.c.h.b16 %v139
    %v786 = vunpack.c.l.b16 %v140
    %v787 = vunpack.c.h.b16 %v140
    %v788 = vunpack.c.l.b16 %v141
    %v789 = vunpack.c.l.b16 %v142
    %v790 = vunpack.c.h.b16 %v142
    %v791 = vunpack.c.l.b16 %v143
    %v792 = vunpack.c.h.b16 %v143
    %v793 = vunpack.c.l.b16 %v144
    %v794 = vunpack.c.l.b16 %v145
    %v795 = vunpack.c.h.b16 %v145
    %v796 = vunpack.c.l.b16 %v146
    %v797 = vunpack.c.h.b16 %v146
    %v798 = vunpack.c.l.b16 %v147
    %v799 = vunpack.c.l.b16 %v148
    %v800 = vunpack.c.h.b16 %v148
    %v801 = vunpack.c.l.b16 %v149
    %v802 = vunpack.c.h.b16 %v149
    %v803 = vunpack.c.l.b16 %v150
    %v804 = vunpack.c.l.b16 %v151
    %v805 = vunpack.c.h.b16 %v151
    %v806 = vunpack.c.l.b16 %v152
    %v807 = vunpack.c.h.b16 %v152
    %v808 = vunpack.c.l.b16 %v153
    %v809 = vunpack.c.l.b16 %v154
    %v810 = vunpack.c.h.b16 %v154
    %v811 = vunpack.c.l.b16 %v155
    %v812 = vunpack.c.h.b16 %v155
    %v813 = vunpack.c.l.b16 %v156
    %v814 = vunpack.c.l.b16 %v157
    %v815 = vunpack.c.h.b16 %v157
    %v816 = vunpack.c.l.b16 %v158
    %v817 = vunpack.c.h.b16 %v158
    %v818 = vunpack.c.l.b16 %v159
    %v819 = vunpack.c.l.b16 %v160
    %v820 = vunpack.c.h.b16 %v160
    %v821 = vunpack.c.l.b16 %v161
    %v822 = vunpack.c.h.b16 %v161
    %v823 = vunpack.c.l.b16 %v162
    %v824 = vunpack.c.l.b16 %v163
    %v825 = vunpack.c.h.b16 %v163
    %v826 = vunpack.c.l.b16 %v164
    %v827 = vunpack.c.h.b16 %v164
    %v828 = vunpack.c.l.b16 %v165
    %v829 = vunpack.c.l.b16 %v166
    %v830 = vunpack.c.h.b16 %v166
    %v831 = vunpack.c.l.b16 %v167
    %v832 = vunpack.c.h.b16 %v167
    %v833 = vunpack.c.l.b16 %v168
    %v834 = vunpack.c.l.b16 %v169
    %v835 = vunpack.c.h.b16 %v169
    %v836 = vunpack.c.l.b16 %v170
    %v837 = vunpack.c.h.b16 %v170
    %v838 = vunpack.c.l.b16 %v171
    %v839 = vunpack.c.l.b16 %v172
    %v840 = vunpack.c.h.b16 %v172
    %v841 = vunpack.c.l.b16 %v173
    %v842 = vunpack.c.h.b16 %v173
    %v843 = vunpack.c.l.b16 %v174
    %v844 = vunpack.c.l.b16 %v175
    %v845 = vunpack.c.h.b16 %v175
    %v846 = vunpack.c.l.b16 %v176
    %v847 = vunpack.c.h.b16 %v176
    %v848 = vunpack.c.l.b16 %v177
    %v849 = vunpack.c.l.b16 %v178
    %v850 = vunpack.c.h.b16 %v178
    %v851 = vunpack.c.l.b16 %v179
    %v852 = vunpack.c.h.b16 %v179
    %v853 = vunpack.c.l.b16 %v180
    %v854 = vunpack.c.l.b16 %v181
    %v855 = vunpack.c.h.b16 %v181
    %v856 = vunpack.c.l.b16 %v182
    %v857 = vunpack.c.h.b16 %v182
    %v858 = vunpack.c.l.b16 %v183
    %v859 = vunpack.c.l.b16 %v184
    %v860 = vunpack.c.h.b16 %v184
    %v861 = vunpack.c.l.b16 %v185
    %v862 = vunpack.c.h.b16 %v185
    %v863 = vunpack.c.l.b16 %v186
    %v864 = vunpack.c.l.b16 %v187
    %v865 = vunpack.c.h.b16 %v187
    %v866 = vunpack.c.l.b16 %v188
    %v867 = vunpack.c.h.b16 %v188
    %v868 = vunpack.c.l.b16 %v189
    %v869 = vunpack.c.l.b16 %v190
    %v870 = vunpack.c.h.b16 %v190
    %v871 = vunpack.c.l.b16 %v191
    %v872 = vunpack.c.h.b16 %v191
    %v873 = vunpack.c.l.b16 %v192
    %v874 = vunpack.c.l.b16 %v193
    %v875 = vunpack.c.h.b16 %v193
    %v876 = vunpack.c.l.b16 %v194
    %v877 = vunpack.c.h.b16 %v194
    %v878 = vunpack.c.l.b16 %v195
    %v879 = vunpack.c.l.b16 %v196
    %v880 = vunpack.c.h.b16 %v196
    %v881 = vunpack.c.l.b16 %v197
    %v882 = vunpack.c.h.b16 %v197
    %v883 = vunpack.c.l.b16 %v198
    %v884 = vunpack.c.l.b16 %v199
    %v885 = vunpack.c.h.b16 %v199
    %v886 = vunpack.c.l.b16 %v200
    %v887 = vunpack.c.h.b16 %v200
    %v888 = vunpack.c.l.b16 %v201
    %v889 = vunpack.c.l.b16 %v202
    %v890 = vunpack.c.h.b16 %v202
    %v891 = vunpack.c.l.b16 %v203
    %v892 = vunpack.c.h.b16 %v203
    %v893 = vunpack.c.l.b16 %v204
    %v894 = vunpack.c.l.b16 %v205
    %v895 = vunpack.c.h.b16 %v205
    %v896 = vunpack.c.l.b16 %v206
    %v897 = vunpack.c.h.b16 %v206
    %v898 = vunpack.c.l.b16 %v207
    %v899 = vunpack.c.l.b16 %v208
    %v900 = vunpack.c.h.b16 %v208
    %v901 = vunpack.c.l.b16 %v209
    %v902 = vunpack.c.h.b16 %v209
    %v903 = vunpack.c.l.b16 %v210
    %v904 = vunpack.c.l.b16 %v211
    %v905 = vunpack.c.h.b16 %v211
    %v906 = vunpack.c.l.b16 %v212
    %v907 = vunpack.c.h.b16 %v212
    %v908 = vunpack.c.l.b16 %v213
    %v909 = vunpack.c.l.b16 %v214
    %v910 = vunpack.c.h.b16 %v214
    %v911 = vunpack.c.l.b16 %v215
    %v912 = vunpack.c.h.b16 %v215
    %v913 = vunpack.c.l.b16 %v216
    %v914 = vunpack.c.l.b16 %v217
    %v915 = vunpack.c.h.b16 %v217
    %v916 = vunpack.c.l.b16 %v218
    %v917 = vunpack.c.h.b16 %v218
    %v918 = vunpack.c.l.b16 %v219
    %v919 = vunpack.c.l.b16 %v220
    %v920 = vunpack.c.h.b16 %v220
    %v921 = vunpack.c.l.b16 %v221
    %v922 = vunpack.c.h.b16 %v221
    %v923 = vunpack.c.l.b16 %v222
    %v924 = vunpack.c.l.b16 %v223
    %v925 = vunpack.c.h.b16 %v223
    %v926 = vunpack.c.l.b16 %v224
    %v927 = vunpack.c.h.b16 %v224
    %v928 = vunpack.c.l.b16 %v225
    %v929 = vunpack.c.l.b16 %v226
    %v930 = vunpack.c.h.b16 %v226
    %v931 = vunpack.c.l.b16 %v227
    %v932 = vunpack.c.h.b16 %v227
    %v933 = vunpack.c.l.b16 %v228
    %v934 = vunpack.c.l.b16 %v229
    %v935 = vunpack.c.h.b16 %v229
    %v936 = vunpack.c.l.b16 %v230
    %v937 = vunpack.c.h.b16 %v230
    %v938 = vunpack.c.l.b16 %v231
    %v939 = vunpack.c.l.b16 %v232
    %v940 = vunpack.c.h.b16 %v232
    %v941 = vunpack.c.l.b16 %v233
    %v942 = vunpack.c.h.b16 %v233
    %v943 = vunpack.c.l.b16 %v234
    %v944 = vunpack.c.l.b16 %v235
    %v945 = vunpack.c.h.b16 %v235
    %v946 = vunpack.c.l.b16 %v236
    %v947 = vunpack.c.h.b16 %v236
    %v948 = vunpack.c.l.b16 %v237
    %v949 = vunpack.c.l.b16 %v238
    %v950 = vunpack.c.h.b16 %v238
    %v951 = vunpack.c.l.b16 %v239
    %v952 = vunpack.c.h.b16 %v239
    %v953 = vunpack.c.l.b16 %v240
    %v954 = vunpack.c.l.b16 %v241
    %v955 = vunpack.c.h.b16 %v241
    %v956 = vunpack.c.l.b16 %v242
    %v957 = vunpack.c.h.b16 %v242
    %v958 = vunpack.c.l.b16 %v243
    %v959 = vunpack.c.l.b16 %v244
    %v960 = vunpack.c.h.b16 %v244
    %v961 = vunpack.c.l.b16 %v245
    %v962 = vunpack.c.h.b16 %v245
    %v963 = vunpack.c.l.b16 %v246
    %v964 = vunpack.c.l.b16 %v247
    %v965 = vunpack.c.h.b16 %v247
    %v966 = vunpack.c.l.b16 %v248
    %v967 = vunpack.c.h.b16 %v248
    %v968 = vunpack.c.l.b16 %v249
    %v969 = vunpack.c.l.b16 %v250
    %v970 = vunpack.c.h.b16 %v250
    %v971 = vunpack.c.l.b16 %v251
    %v972 = vunpack.c.h.b16 %v251
    %v973 = vunpack.c.l.b16 %v252
    %v974 = vunpack.c.l.b16 %v253
    %v975 = vunpack.c.h.b16 %v253
    %v976 = vunpack.c.l.b16 %v254
    %v977 = vunpack.c.h.b16 %v254
    %v978 = vunpack.c.l.b16 %v255
    %v979 = vunpack.c.l.b16 %v256
    %v980 = vunpack.c.h.b16 %v256
    %v981 = vunpack.c.l.b16 %v257
    %v982 = vunpack.c.h.b16 %v257
    %v983 = vunpack.c.l.b16 %v258
    %v984 = vunpack.c.l.b16 %v259
    %v985 = vunpack.c.h.b16 %v259
    %v986 = vunpack.c.l.b16 %v260
    %v987 = vunpack.c.h.b16 %v260
    %v988 = vunpack.c.l.b16 %v261
    %v989 = vunpack.c.l.b16 %v262
    %v990 = vunpack.c.h.b16 %v262
    %v991 = vunpack.c.l.b16 %v263
    %v992 = vunpack.c.h.b16 %v263
    %v993 = vunpack.c.l.b16 %v264
    %v994 = vunpack.c.l.b16 %v265
    %v995 = vunpack.c.h.b16 %v265
    %v996 = vunpack.c.l.b16 %v266
    %v997 = vunpack.c.h.b16 %v266
    %v998 = vunpack.c.l.b16 %v267
    %v999 = vunpack.c.l.b16 %v268
    %v1000 = vunpack.c.h.b16 %v268
    %v1001 = vunpack.c.l.b16 %v269
    %v1002 = vunpack.c.h.b16 %v269
    %v1003 = vunpack.c.l.b16 %v270
    %v1004 = vunpack.c.l.b16 %v271
    %v1005 = vunpack.c.h.b16 %v271
    %v1006 = vunpack.c.l.b16 %v272
    %v1007 = vunpack.c.h.b16 %v272
    %v1008 = vunpack.c.l.b16 %v273
    %v1009 = vunpack.c.l.b16 %v274
    %v1010 = vunpack.c.h.b16 %v274
    %v1011 = vunpack.c.l.b16 %v275
    %v1012 = vunpack.c.h.b16 %v275
    %v1013 = vunpack.c.l.b16 %v276
    %v1014 = vunpack.c.l.b16 %v277
    %v1015 = vunpack.c.h.b16 %v277
    %v1016 = vunpack.c.l.b16 %v278
    %v1017 = vunpack.c.h.b16 %v278
    %v1018 = vunpack.c.l.b16 %v279
    %v1019 = vunpack.c.l.b16 %v280
    %v1020 = vunpack.c.h.b16 %v280
    %v1021 = vunpack.c.l.b16 %v281
    %v1022 = vunpack.c.h.b16 %v281
    %v1023 = vunpack.c.l.b16 %v282
    %v1024 = vunpack.c.l.b16 %v283
    %v1025 = vunpack.c.h.b16 %v283
    %v1026 = vunpack.c.l.b16 %v284
    %v1027 = vunpack.c.h.b16 %v284
    %v1028 = vunpack.c.l.b16 %v285
    %v1029 = vunpack.c.l.b16 %v286
    %v1030 = vunpack.c.h.b16 %v286
    %v1031 = vunpack.c.l.b16 %v287
    %v1032 = vunpack.c.h.b16 %v287
    %v1033 = vunpack.c.l.b16 %v288
    %v1034 = vunpack.c.l.b16 %v289
    %v1035 = vunpack.c.h.b16 %v289
    %v1036 = vunpack.c.l.b16 %v290
    %v1037 = vunpack.c.h.b16 %v290
    %v1038 = vunpack.c.l.b16 %v291
    %v1039 = vunpack.c.l.b16 %v292
    %v1040 = vunpack.c.h.b16 %v292
    %v1041 = vunpack.c.l.b16 %v293
    %v1042 = vunpack.c.h.b16 %v293
    %v1043 = vunpack.c.l.b16 %v294
    %v1044 = vunpack.c.l.b16 %v295
    %v1045 = vunpack.c.h.b16 %v295
    %v1046 = vunpack.c.l.b16 %v296
    %v1047 = vunpack.c.h.b16 %v296
    %v1048 = vunpack.c.l.b16 %v297
    %v1049 = vunpack.c.l.b16 %v298
    %v1050 = vunpack.c.h.b16 %v298
    %v1051 = vunpack.c.l.b16 %v299
    %v1052 = vunpack.c.h.b16 %v299
    %v1053 = vunpack.c.l.b16 %v300
    %v1054 = vunpack.c.l.b16 %v301
    %v1055 = vunpack.c.h.b16 %v301
    %v1056 = vunpack.c.l.b16 %v302
    %v1057 = vunpack.c.h.b16 %v302
    %v1058 = vunpack.c.l.b16 %v303
    %v1059 = vunpack.c.l.b16 %v304
    %v1060 = vunpack.c.h.b16 %v304
    %v1061 = vunpack.c.l.b16 %v305
    %v1062 = vunpack.c.h.b16 %v305
    %v1063 = vunpack.c.l.b16 %v306
    %v1064 = vunpack.c.l.b16 %v307
    %v1065 = vunpack.c.h.b16 %v307
    %v1066 = vunpack.c.l.b16 %v308
    %v1067 = vunpack.c.h.b16 %v308
    %v1068 = vunpack.c.l.b16 %v309
    %v1069 = vunpack.c.l.b16 %v310
    %v1070 = vunpack.c.h.b16 %v310
    %v1071 = vunpack.c.l.b16 %v311
    %v1072 = vunpack.c.h.b16 %v311
    %v1073 = vunpack.c.l.b16 %v312
    %v1074 = vunpack.c.l.b16 %v313
    %v1075 = vunpack.c.h.b16 %v313
    %v1076 = vunpack.c.l.b16 %v314
    %v1077 = vunpack.c.h.b16 %v314
    %v1078 = vunpack.c.l.b16 %v315
    %v1079 = vunpack.c.l.b16 %v316
    %v1080 = vunpack.c.h.b16 %v316
    %v1081 = vunpack.c.l.b16 %v317
    %v1082 = vunpack.c.h.b16 %v317
    %v1083 = vunpack.c.l.b16 %v318
    %v1084 = vunpack.c.l.b16 %v319
    %v1085 = vunpack.c.h.b16 %v319
    %v1086 = vunpack.c.l.b16 %v320
    %v1087 = vunpack.c.h.b16 %v320
    %v1088 = vunpack.c.l.b16 %v321
    %v1089 = vunpack.c.l.b16 %v322
    %v1090 = vunpack.c.h.b16 %v322
    %v1091 = vunpack.c.l.b16 %v323
    %v1092 = vunpack.c.h.b16 %v323
    %v1093 = vunpack.c.l.b16 %v324
    %v1094 = vunpack.c.l.b16 %v325
    %v1095 = vunpack.c.h.b16 %v325
    %v1096 = vunpack.c.l.b16 %v326
    %v1097 = vunpack.c.h.b16 %v326
    %v1098 = vunpack.c.l.b16 %v327
    %v1099 = vunpack.c.l.b16 %v328
    %v1100 = vunpack.c.h.b16 %v328
    %v1101 = vunpack.c.l.b16 %v329
    %v1102 = vunpack.c.h.b16 %v329
    %v1103 = vunpack.c.l.b16 %v330
    %v1104 = vunpack.c.l.b16 %v331
    %v1105 = vunpack.c.h.b16 %v331
    %v1106 = vunpack.c.l.b16 %v332
    %v1107 = vunpack.c.h.b16 %v332
    %v1108 = vunpack.c.l.b16 %v333
    %v1109 = vunpack.c.l.b16 %v334
    %v1110 = vunpack.c.h.b16 %v334
    %v1111 = vunpack.c.l.b16 %v335
    %v1112 = vunpack.c.h.b16 %v335
    %v1113 = vunpack.c.l.b16 %v336
    %v1114 = vunpack.c.l.b16 %v337
    %v1115 = vunpack.c.h.b16 %v337
    %v1116 = vunpack.c.l.b16 %v338
    %v1117 = vunpack.c.h.b16 %v338
    %v1118 = vunpack.c.l.b16 %v339
    %v1119 = vunpack.c.l.b16 %v340
    %v1120 = vunpack.c.h.b16 %v340
    %v1121 = vunpack.c.l.b16 %v341
    %v1122 = vunpack.c.h.b16 %v341
    %v1123 = vunpack.c.l.b16 %v342
    %v1124 = vunpack.c.l.b16 %v343
    %v1125 = vunpack.c.h.b16 %v343
    %v1126 = vunpack.c.l.b16 %v344
    %v1127 = vunpack.c.h.b16 %v344
    %v1128 = vunpack.c.l.b16 %v345
    %v1129 = vunpack.c.l.b16 %v346
    %v1130 = vunpack.c.h.b16 %v346
    %v1131 = vunpack.c.l.b16 %v347
    %v1132 = vunpack.c.h.b16 %v347
    %v1133 = vunpack.c.l.b16 %v348
    %v1134 = vunpack.c.l.b16 %v349
    %v1135 = vunpack.c.h.b16 %v349
    %v1136 = vunpack.c.l.b16 %v350
    %v1137 = vunpack.c.h.b16 %v350
    %v1138 = vunpack.c.l.b16 %v351
    %v1139 = vunpack.c.l.b16 %v352
    %v1140 = vunpack.c.h.b16 %v352
    %v1141 = vunpack.c.l.b16 %v353
    %v1142 = vunpack.c.h.b16 %v353
    %v1143 = vunpack.c.l.b16 %v354
    %v1144 = vunpack.c.l.b16 %v355
    %v1145 = vunpack.c.h.b16 %v355
    %v1146 = vunpack.c.l.b16 %v356
    %v1147 = vunpack.c.h.b16 %v356
    %v1148 = vunpack.c.l.b16 %v357
    %v1149 = vunpack.c.l.b16 %v358
    %v1150 = vunpack.c.h.b16 %v358
    %v1151 = vunpack.c.l.b16 %v359
    %v1152 = vunpack.c.h.b16 %v359
    %v1153 = vunpack.c.l.b16 %v360
    %v1154 = vunpack.c.l.b16 %v361
    %v1155 = vunpack.c.h.b16 %v361
    %v1156 = vunpack.c.l.b16 %v362
    %v1157 = vunpack.c.h.b16 %v362
    %v1158 = vunpack.c.l.b16 %v363
    %v1159 = vunpack.c.l.b16 %v364
    %v1160 = vunpack.c.h.b16 %v364
    %v1161 = vunpack.c.l.b16 %v365
    %v1162 = vunpack.c.h.b16 %v365
    %v1163 = vunpack.c.l.b16 %v366
    %v1164 = vunpack.c.l.b16 %v367
    %v1165 = vunpack.c.h.b16 %v367
    %v1166 = vunpack.c.l.b16 %v368
    %v1167 = vunpack.c.h.b16 %v368
    %v1168 = vunpack.c.l.b16 %v369
    %v1169 = vunpack.c.l.b16 %v370
    %v1170 = vunpack.c.h.b16 %v370
    %v1171 = vunpack.c.l.b16 %v371
    %v1172 = vunpack.c.h.b16 %v371
    %v1173 = vunpack.c.l.b16 %v372
    %v1174 = vunpack.c.l.b16 %v373
    %v1175 = vunpack.c.h.b16 %v373
    %v1176 = vunpack.c.l.b16 %v374
    %v1177 = vunpack.c.h.b16 %v374
    %v1178 = vunpack.c.l.b16 %v375
    %v1179 = vunpack.c.l.b16 %v376
    %v1180 = vunpack.c.h.b16 %v376
    %v1181 = vunpack.c.l.b16 %v377
    %v1182 = vunpack.c.h.b16 %v377
    %v1183 = vunpack.c.l.b16 %v378
    %v1184 = vunpack.c.l.b16 %v379
    %v1185 = vunpack.c.h.b16 %v379
    %v1186 = vunpack.c.l.b16 %v380
    %v1187 = vunpack.c.h.b16 %v380
    %v1188 = vunpack.c.l.b16 %v381
    %v1189 = vunpack.c.l.b16 %v382
    %v1190 = vunpack.c.h.b16 %v382
    %v1191 = vunpack.c.l.b16 %v383
    %v1192 = vunpack.c.h.b16 %v383
    %v1193 = vunpack.c.l.b16 %v384
    %v1194 = vunpack.c.l.b16 %v385
    %v1195 = vunpack.c.h.b16 %v385
    %v1196 = vunpack.c.l.b16 %v386
    %v1197 = vunpack.c.h.b16 %v386
    %v1198 = vunpack.c.l.b16 %v387
    %v1199 = vpack.c.b16 %v714, %v709
    %v1200 = vpack.c.b16 %v715, %v710
    %v1201 = vpack.c.b16 %v716, %v711
    %v1202 = vpack.c.b16 %v717, %v712
    %v1203 = vpack.c.b16 %v718, %v713
    %v1204 = vpack.c.b16 %v724, %v719
    %v1205 = vpack.c.b16 %v725, %v720
    %v1206 = vpack.c.b16 %v726, %v721
    %v1207 = vpack.c.b16 %v727, %v722
    %v1208 = vpack.c.b16 %v728, %v723
    %v1209 = vpack.c.b16 %v734, %v729
    %v1210 = vpack.c.b16 %v735, %v730
    %v1211 = vpack.c.b16 %v736, %v731
    %v1212 = vpack.c.b16 %v737, %v732
    %v1213 = vpack.c.b16 %v738, %v733
    %v1214 = vpack.c.b16 %v744, %v739
    %v1215 = vpack.c.b16 %v745, %v740
    %v1216 = vpack.c.b16 %v746, %v741
    %v1217 = vpack.c.b16 %v747, %v742
    %v1218 = vpack.c.b16 %v748, %v743
    %v1219 = vpack.c.b16 %v754, %v749
    %v1220 = vpack.c.b16 %v755, %v750
    %v1221 = vpack.c.b16 %v756, %v751
    %v1222 = vpack.c.b16 %v757, %v752
    %v1223 = vpack.c.b16 %v758, %v753
    %v1224 = vpack.c.b16 %v764, %v759
    %v1225 = vpack.c.b16 %v765, %v760
    %v1226 = vpack.c.b16 %v766, %v761
    %v1227 = vpack.c.b16 %v767, %v762
    %v1228 = vpack.c.b16 %v768, %v763
    %v1229 = vpack.c.b16 %v774, %v769
    %v1230 = vpack.c.b16 %v775, %v770
    %v1231 = vpack.c.b16 %v776, %v771
    %v1232 = vpack.c.b16 %v777, %v772
    %v1233 = vpack.c.b16 %v778, %v773
    %v1234 = vpack.c.b16 %v784, %v779
    %v1235 = vpack.c.b16 %v785, %v780
    %v1236 = vpack.c.b16 %v786, %v781
    %v1237 = vpack.c.b16 %v787, %v782
    %v1238 = vpack.c.b16 %v788, %v783
    %v1239 = vpack.c.b16 %v794, %v789
    %v1240 = vpack.c.b16 %v795, %v790
    %v1241 = vpack.c.b16 %v796, %v791
    %v1242 = vpack.c.b16 %v797, %v792
    %v1243 = vpack.c.b16 %v798, %v793
    %v1244 = vpack.c.b16 %v804, %v799
    %v1245 = vpack.c.b16 %v805, %v800
    %v1246 = vpack.c.b16 %v806, %v801
    %v1247 = vpack.c.b16 %v807, %v802
    %v1248 = vpack.c.b16 %v808, %v803
    %v1249 = vpack.c.b16 %v814, %v809
    %v1250 = vpack.c.b16 %v815, %v810
    %v1251 = vpack.c.b16 %v816, %v811
    %v1252 = vpack.c.b16 %v817, %v812
    %v1253 = vpack.c.b16 %v818, %v813
    %v1254 = vpack.c.b16 %v824, %v819
    %v1255 = vpack.c.b16 %v825, %v820
    %v1256 = vpack.c.b16 %v826, %v821
    %v1257 = vpack.c.b16 %v827, %v822
    %v1258 = vpack.c.b16 %v828, %v823
    %v1259 = vpack.c.b16 %v834, %v829
    %v1260 = vpack.c.b16 %v835, %v830
    %v1261 = vpack.c.b16 %v836, %v831
    %v1262 = vpack.c.b16 %v837, %v832
    %v1263 = vpack.c.b16 %v838, %v833
    %v1264 = vpack.c.b16 %v844, %v839
    %v1265 = vpack.c.b16 %v845, %v840
    %v1266 = vpack.c.b16 %v846, %v841
    %v1267 = vpack.c.b16 %v847, %v842
    %v1268 = vpack.c.b16 %v848, %v843
    %v1269 = vpack.c.b16 %v854, %v849
    %v1270 = vpack.c.b16 %v855, %v850
    %v1271 = vpack.c.b16 %v856, %v851
    %v1272 = vpack.c.b16 %v857, %v852
    %v1273 = vpack.c.b16 %v858, %v853
    %v1274 = vpack.c.b16 %v864, %v859
    %v1275 = vpack.c.b16 %v865, %v860
    %v1276 = vpack.c.b16 %v866, %v861
    %v1277 = vpack.c.b16 %v867, %v862
    %v1278 = vpack.c.b16 %v868, %v863
    %v1279 = vpack.c.b16 %v874, %v869
    %v1280 = vpack.c.b16 %v875, %v870
    %v1281 = vpack.c.b16 %v876, %v871
    %v1282 = vpack.c.b16 %v877, %v872
    %v1283 = vpack.c.b16 %v878, %v873
    %v1284 = vpack.c.b16 %v884, %v879
    %v1285 = vpack.c.b16 %v885, %v880
    %v1286 = vpack.c.b16 %v886, %v881
    %v1287 = vpack.c.b16 %v887, %v882
    %v1288 = vpack.c.b16 %v888, %v883
    %v1289 = vpack.c.b16 %v894, %v889
    %v1290 = vpack.c.b16 %v895, %v890
    %v1291 = vpack.c.b16 %v896, %v891
    %v1292 = vpack.c.b16 %v897, %v892
    %v1293 = vpack.c.b16 %v898, %v893
    %v1294 = vpack.c.b16 %v904, %v899
    %v1295 = vpack.c.b16 %v905, %v900
    %v1296 = vpack.c.b16 %v906, %v901
    %v1297 = vpack.c.b16 %v907, %v902
    %v1298 = vpack.c.b16 %v908, %v903
    %v1299 = vpack.c.b16 %v914, %v909
    %v1300 = vpack.c.b16 %v915, %v910
    %v1301 = vpack.c.b16 %v916, %v911
    %v1302 = vpack.c.b16 %v917, %v912
    %v1303 = vpack.c.b16 %v918, %v913
    %v1304 = vpack.c.b16 %v924, %v919
    %v1305 = vpack.c.b16 %v925, %v920
    %v1306 = vpack.c.b16 %v926, %v921
    %v1307 = vpack.c.b16 %v927, %v922
    %v1308 = vpack.c.b16 %v928, %v923
    %v1309 = vpack.c.b16 %v934, %v929
    %v1310 = vpack.c.b16 %v935, %v930
    %v1311 = vpack.c.b16 %v936, %v931
    %v1312 = vpack.c.b16 %v937, %v932
    %v1313 = vpack.c.b16 %v938, %v933
    %v1314 = vpack.c.b16 %v944, %v939
    %v1315 = vpack.c.b16 %v945, %v940
    %v1316 = vpack.c.b16 %v946, %v941
    %v1317 = vpack.c.b16 %v947, %v942
    %v1318 = vpack.c.b16 %v948, %v943
    %v1319 = vpack.c.b16 %v954, %v949
    %v1320 = vpack.c.b16 %v955, %v950
    %v1321 = vpack.c.b16 %v956, %v951
    %v1322 = vpack.c.b16 %v957, %v952
    %v1323 = vpack.c.b16 %v958, %v953
    %v1324 = vpack.c.b16 %v964, %v959
    %v1325 = vpack.c.b16 %v965, %v960
    %v1326 = vpack.c.b16 %v966, %v961
    %v1327 = vpack.c.b16 %v967, %v962
    %v1328 = vpack.c.b16 %v968, %v963
    %v1329 = vpack.c.b16 %v974, %v969
    %v1330 = vpack.c.b16 %v975, %v970
    %v1331 = vpack.c.b16 %v976, %v971
    %v1332 = vpack.c.b16 %v977, %v972
    %v1333 = vpack.c.b16 %v978, %v973
    %v1334 = vpack.c.b16 %v984, %v979
    %v1335 = vpack.c.b16 %v985, %v980
    %v1336 = vpack.c.b16 %v986, %v981
    %v1337 = vpack.c.b16 %v987, %v982
    %v1338 = vpack.c.b16 %v988, %v983
    %v1339 = vpack.c.b16 %v994, %v989
    %v1340 = vpack.c.b16 %v995, %v990
    %v1341 = vpack.c.b16 %v996, %v991
    %v1342 = vpack.c.b16 %v997, %v992
    %v1343 = vpack.c.b16 %v998, %v993
    %v1344 = vpack.c.b16 %v1004, %v999
    %v1345 = vpack.c.b16 %v1005, %v1000
    %v1346 = vpack.c.b16 %v1006, %v1001
    %v1347 = vpack.c.b16 %v1007, %v1002
    %v1348 = vpack.c.b16 %v1008, %v1003
    %v1349 = vpack.c.b16 %v1014, %v1009
    %v1350 = vpack.c.b16 %v1015, %v1010
    %v1351 = vpack.c.b16 %v1016, %v1011
    %v1352 = vpack.c.b16 %v1017, %v1012
    %v1353 = vpack.c.b16 %v1018, %v1013
    %v1354 = vpack.c.b16 %v1024, %v1019
    %v1355 = vpack.c.b16 %v1025, %v1020
    %v1356 = vpack.c.b16 %v1026, %v1021
    %v1357 = vpack.c.b16 %v1027, %v1022
    %v1358 = vpack.c.b16 %v1028, %v1023
    %v1359 = vpack.c.b16 %v1034, %v1029
    %v1360 = vpack.c.b16 %v1035, %v1030
    %v1361 = vpack.c.b16 %v1036, %v1031
    %v1362 = vpack.c.b16 %v1037, %v1032
    %v1363 = vpack.c.b16 %v1038, %v1033
    %v1364 = vpack.c.b16 %v1044, %v1039
    %v1365 = vpack.c.b16 %v1045, %v1040
    %v1366 = vpack.c.b16 %v1046, %v1041
    %v1367 = vpack.c.b16 %v1047, %v1042
    %v1368 = vpack.c.b16 %v1048, %v1043
    %v1369 = vpack.c.b16 %v1054, %v1049
    %v1370 = vpack.c.b16 %v1055, %v1050
    %v1371 = vpack.c.b16 %v1056, %v1051
    %v1372 = vpack.c.b16 %v1057, %v1052
    %v1373 = vpack.c.b16 %v1058, %v1053
    %v1374 = vpack.c.b16 %v1064, %v1059
    %v1375 = vpack.c.b16 %v1065, %v1060
    %v1376 = vpack.c.b16 %v1066, %v1061
    %v1377 = vpack.c.b16 %v1067, %v1062
    %v1378 = vpack.c.b16 %v1068, %v1063
    %v1379 = vpack.c.b16 %v1074, %v1069
    %v1380 = vpack.c.b16 %v1075, %v1070
    %v1381 = vpack.c.b16 %v1076, %v1071
    %v1382 = vpack.c.b16 %v1077, %v1072
    %v1383 = vpack.c.b16 %v1078, %v1073
    %v1384 = vpack.c.b16 %v1084, %v1079
    %v1385 = vpack.c.b16 %v1085, %v1080
    %v1386 = vpack.c.b16 %v1086, %v1081
    %v1387 = vpack.c.b16 %v1087, %v1082
    %v1388 = vpack.c.b16 %v1088, %v1083
    %v1389 = vpack.c.b16 %v1094, %v1089
    %v1390 = vpack.c.b16 %v1095, %v1090
    %v1391 = vpack.c.b16 %v1096, %v1091
    %v1392 = vpack.c.b16 %v1097, %v1092
    %v1393 = vpack.c.b16 %v1098, %v1093
    %v1394 = vpack.c.b16 %v1104, %v1099
    %v1395 = vpack.c.b16 %v1105, %v1100
    %v1396 = vpack.c.b16 %v1106, %v1101
    %v1397 = vpack.c.b16 %v1107, %v1102
    %v1398 = vpack.c.b16 %v1108, %v1103
    %v1399 = vpack.c.b16 %v1114, %v1109
    %v1400 = vpack.c.b16 %v1115, %v1110
    %v1401 = vpack.c.b16 %v1116, %v1111
    %v1402 = vpack.c.b16 %v1117, %v1112
    %v1403 = vpack.c.b16 %v1118, %v1113
    %v1404 = vpack.c.b16 %v1124, %v1119
    %v1405 = vpack.c.b16 %v1125, %v1120
    %v1406 = vpack.c.b16 %v1126, %v1121
    %v1407 = vpack.c.b16 %v1127, %v1122
    %v1408 = vpack.c.b16 %v1128, %v1123
    %v1409 = vpack.c.b16 %v1134, %v1129
    %v1410 = vpack.c.b16 %v1135, %v1130
    %v1411 = vpack.c.b16 %v1136, %v1131
    %v1412 = vpack.c.b16 %v1137, %v1132
    %v1413 = vpack.c.b16 %v1138, %v1133
    %v1414 = vpack.c.b16 %v1144, %v1139
    %v1415 = vpack.c.b16 %v1145, %v1140
    %v1416 = vpack.c.b16 %v1146, %v1141
    %v1417 = vpack.c.b16 %v1147, %v1142
    %v1418 = vpack.c.b16 %v1148, %v1143
    %v1419 = vpack.c.b16 %v1154, %v1149
    %v1420 = vpack.c.b16 %v1155, %v1150
    %v1421 = vpack.c.b16 %v1156, %v1151
    %v1422 = vpack.c.b16 %v1157, %v1152
    %v1423 = vpack.c.b16 %v1158, %v1153
    %v1424 = vpack.c.b16 %v1164, %v1159
    %v1425 = vpack.c.b16 %v1165, %v1160
    %v1426 = vpack.c.b16 %v1166, %v1161
    %v1427 = vpack.c.b16 %v1167, %v1162
    %v1428 = vpack.c.b16 %v1168, %v1163
    %v1429 = vpack.c.b16 %v1174, %v1169
    %v1430 = vpack.c.b16 %v1175, %v1170
    %v1431 = vpack.c.b16 %v1176, %v1171
    %v1432 = vpack.c.b16 %v1177, %v1172
    %v1433 = vpack.c.b16 %v1178, %v1173
    %v1434 = vpack.c.b16 %v1184, %v1179
    %v1435 = vpack.c.b16 %v1185, %v1180
    %v1436 = vpack.c.b16 %v1186, %v1181
    %v1437 = vpack.c.b16 %v1187, %v1182
    %v1438 = vpack.c.b16 %v1188, %v1183
    %v1439 = vpack.c.b16 %v1194, %v1189
    %v1440 = vpack.c.b16 %v1195, %v1190
    %v1441 = vpack.c.b16 %v1196, %v1191
    %v1442 = vpack.c.b16 %v1197, %v1192
    %v1443 = vpack.c.b16 %v1198, %v1193
    %vm1689 = vcmask 130048
    %v1691 = vsel %vm1689, %v93, 0
    %1693 = vmatprep.subr.bf16.mxu0 %v1200
    %1694 = vmatpush1.bf16.msra.mxu0 %v1199
    %1695 = vmatprep.subr.bf16.mxu0 %v1205
    %1696 = vmatpush1.bf16.msra.mxu0 %v1204
    %1697 = vmatprep.subr.bf16.mxu0 %v1210
    %1698 = vmatpush1.bf16.msra.mxu0 %v1209
    %1699 = vmatprep.subr.bf16.mxu0 %v1215
    %1700 = vmatpush1.bf16.msra.mxu0 %v1214
    %1701 = vmatprep.subr.bf16.mxu0 %v1220
    %1702 = vmatpush1.bf16.msra.mxu0 %v1219
    %1703 = vmatprep.subr.bf16.mxu0 %v1225
    %1704 = vmatpush1.bf16.msra.mxu0 %v1224
    %1705 = vmatprep.subr.bf16.mxu0 %v1230
    %1706 = vmatpush1.bf16.msra.mxu0 %v1229
    %1707 = vmatprep.subr.bf16.mxu0 %v1235
    %1708 = vmatpush1.bf16.msra.mxu0 %v1234
    %1709 = vmatprep.subr.bf16.mxu0 %v1240
    %1710 = vmatpush1.bf16.msra.mxu0 %v1239
    %1711 = vmatprep.subr.bf16.mxu0 %v1245
    %1712 = vmatpush1.bf16.msra.mxu0 %v1244
    %1713 = vmatprep.subr.bf16.mxu0 %v1250
    %1714 = vmatpush1.bf16.msra.mxu0 %v1249
    %1715 = vmatprep.subr.bf16.mxu0 %v1255
    %1716 = vmatpush1.bf16.msra.mxu0 %v1254
    %1717 = vmatprep.subr.bf16.mxu0 %v1260
    %1718 = vmatpush1.bf16.msra.mxu0 %v1259
    %1719 = vmatprep.subr.bf16.mxu0 %v1265
    %1720 = vmatpush1.bf16.msra.mxu0 %v1264
    %1721 = vmatprep.subr.bf16.mxu0 %v1270
    %1722 = vmatpush1.bf16.msra.mxu0 %v1269
    %1723 = vmatprep.subr.bf16.mxu0 %v1275
    %1724 = vmatpush1.bf16.msra.mxu0 %v1274
    %1725 = vmatprep.mubr.bf16.mxu0 %v88
    %1726 = vmatmul.mubr.bf16.gmra.mrb[0].mxu0 %v87
    %v1727 = vpop.f32.mrb[0].mxu0
    %v1728 = vadd.f32 %v393, %v1727
    %v1729 = vpop.f32.mrb[0].mxu0
    %v1730 = vadd.f32 %v397, %v1729
    %v1731 = vpop.f32.mrb[0].mxu0
    %v1732 = vpop.f32.mrb[0].mxu0
    %1733 = vdwg.mxu0
    %1734 = vmatprep.subr.bf16.mxu0 %v1280
    %1735 = vmatpush1.bf16.msra.mxu0 %v1279
    %1736 = vmatprep.subr.bf16.mxu0 %v1285
    %1737 = vmatpush1.bf16.msra.mxu0 %v1284
    %1738 = vmatprep.subr.bf16.mxu0 %v1290
    %1739 = vmatpush1.bf16.msra.mxu0 %v1289
    %1740 = vmatprep.subr.bf16.mxu0 %v1295
    %1741 = vmatpush1.bf16.msra.mxu0 %v1294
    %1742 = vmatprep.subr.bf16.mxu0 %v1300
    %1743 = vmatpush1.bf16.msra.mxu0 %v1299
    %1744 = vmatprep.subr.bf16.mxu0 %v1305
    %1745 = vmatpush1.bf16.msra.mxu0 %v1304
    %1746 = vmatprep.subr.bf16.mxu0 %v1310
    %1747 = vmatpush1.bf16.msra.mxu0 %v1309
    %1748 = vmatprep.subr.bf16.mxu0 %v1315
    %1749 = vmatpush1.bf16.msra.mxu0 %v1314
    %1750 = vmatprep.subr.bf16.mxu0 %v1320
    %1751 = vmatpush1.bf16.msra.mxu0 %v1319
    %1752 = vmatprep.subr.bf16.mxu0 %v1325
    %1753 = vmatpush1.bf16.msra.mxu0 %v1324
    %1754 = vmatprep.subr.bf16.mxu0 %v1330
    %1755 = vmatpush1.bf16.msra.mxu0 %v1329
    %1756 = vmatprep.subr.bf16.mxu0 %v1335
    %1757 = vmatpush1.bf16.msra.mxu0 %v1334
    %1758 = vmatprep.subr.bf16.mxu0 %v1340
    %1759 = vmatpush1.bf16.msra.mxu0 %v1339
    %1760 = vmatprep.subr.bf16.mxu0 %v1345
    %1761 = vmatpush1.bf16.msra.mxu0 %v1344
    %1762 = vmatprep.subr.bf16.mxu0 %v1350
    %1763 = vmatpush1.bf16.msra.mxu0 %v1349
    %1764 = vmatprep.subr.bf16.mxu0 %v1355
    %1765 = vmatpush1.bf16.msra.mxu0 %v1354
    %1766 = vmatprep.mubr.bf16.mxu0 %v90
    %1767 = vmatmul.mubr.bf16.gmra.mrb[0].mxu0 %v89
    %v1768 = vpop.f32.mrb[0].mxu0
    %v1769 = vadd.f32 %v1728, %v1768
    %v1770 = vpop.f32.mrb[0].mxu0
    %v1771 = vadd.f32 %v1730, %v1770
    %v1772 = vpop.f32.mrb[0].mxu0
    %v1773 = vpop.f32.mrb[0].mxu0
    %1774 = vdwg.mxu0
    %1775 = vmatprep.subr.bf16.mxu0 %v1360
    %1776 = vmatpush1.bf16.msra.mxu0 %v1359
    %1777 = vmatprep.subr.bf16.mxu0 %v1365
    %1778 = vmatpush1.bf16.msra.mxu0 %v1364
    %1779 = vmatprep.subr.bf16.mxu0 %v1370
    %1780 = vmatpush1.bf16.msra.mxu0 %v1369
    %1781 = vmatprep.subr.bf16.mxu0 %v1375
    %1782 = vmatpush1.bf16.msra.mxu0 %v1374
    %1783 = vmatprep.subr.bf16.mxu0 %v1380
    %1784 = vmatpush1.bf16.msra.mxu0 %v1379
    %1785 = vmatprep.subr.bf16.mxu0 %v1385
    %1786 = vmatpush1.bf16.msra.mxu0 %v1384
    %1787 = vmatprep.subr.bf16.mxu0 %v1390
    %1788 = vmatpush1.bf16.msra.mxu0 %v1389
    %1789 = vmatprep.subr.bf16.mxu0 %v1395
    %1790 = vmatpush1.bf16.msra.mxu0 %v1394
    %1791 = vmatprep.subr.bf16.mxu0 %v1400
    %1792 = vmatpush1.bf16.msra.mxu0 %v1399
    %1793 = vmatprep.subr.bf16.mxu0 %v1405
    %1794 = vmatpush1.bf16.msra.mxu0 %v1404
    %1795 = vmatprep.subr.bf16.mxu0 %v1410
    %1796 = vmatpush1.bf16.msra.mxu0 %v1409
    %1797 = vmatprep.subr.bf16.mxu0 %v1415
    %1798 = vmatpush1.bf16.msra.mxu0 %v1414
    %1799 = vmatprep.subr.bf16.mxu0 %v1420
    %1800 = vmatpush1.bf16.msra.mxu0 %v1419
    %1801 = vmatprep.subr.bf16.mxu0 %v1425
    %1802 = vmatpush1.bf16.msra.mxu0 %v1424
    %1803 = vmatprep.subr.bf16.mxu0 %v1430
    %1804 = vmatpush1.bf16.msra.mxu0 %v1429
    %1805 = vmatprep.subr.bf16.mxu0 %v1435
    %1806 = vmatpush1.bf16.msra.mxu0 %v1434
    %1807 = vmatprep.mubr.bf16.mxu0 %v92
    %1808 = vmatmul.mubr.bf16.gmra.mrb[0].mxu0 %v91
    %v1809 = vpop.f32.mrb[0].mxu0
    %v1810 = vadd.f32 %v1769, %v1809
    %v1811 = vpop.f32.mrb[0].mxu0
    %v1812 = vadd.f32 %v1771, %v1811
    %v1813 = vpop.f32.mrb[0].mxu0
    %v1814 = vpop.f32.mrb[0].mxu0
    %1815 = vdwg.mxu0
    %1816 = vmatprep.subr.bf16.mxu0 %v1440
    %1817 = vmatpush1.bf16.msra.mxu0 %v1439
    %1818 = vmatprep.subr.bf16.mxu0 0
    %1819 = vmatpush1.bf16.msra.mxu0 0
    %1820 = vmatprep.subr.bf16.mxu0 0
    %1821 = vmatpush1.bf16.msra.mxu0 0
    %1822 = vmatprep.subr.bf16.mxu0 0
    %1823 = vmatpush1.bf16.msra.mxu0 0
    %1824 = vmatprep.subr.bf16.mxu0 0
    %1825 = vmatpush1.bf16.msra.mxu0 0
    %1826 = vmatprep.subr.bf16.mxu0 0
    %1827 = vmatpush1.bf16.msra.mxu0 0
    %1828 = vmatprep.subr.bf16.mxu0 0
    %1829 = vmatpush1.bf16.msra.mxu0 0
    %1830 = vmatprep.subr.bf16.mxu0 0
    %1831 = vmatpush1.bf16.msra.mxu0 0
    %1832 = vmatprep.subr.bf16.mxu0 0
    %1833 = vmatpush1.bf16.msra.mxu0 0
    %1834 = vmatprep.subr.bf16.mxu0 0
    %1835 = vmatpush1.bf16.msra.mxu0 0
    %1836 = vmatprep.subr.bf16.mxu0 0
    %1837 = vmatpush1.bf16.msra.mxu0 0
    %1838 = vmatprep.subr.bf16.mxu0 0
    %1839 = vmatpush1.bf16.msra.mxu0 0
    %1840 = vmatprep.subr.bf16.mxu0 0
    %1841 = vmatpush1.bf16.msra.mxu0 0
    %1842 = vmatprep.subr.bf16.mxu0 0
    %1843 = vmatpush1.bf16.msra.mxu0 0
    %1844 = vmatprep.subr.bf16.mxu0 0
    %1845 = vmatpush1.bf16.msra.mxu0 0
    %1846 = vmatprep.subr.bf16.mxu0 0
    %1847 = vmatpush1.bf16.msra.mxu0 0
    %1848 = vmatprep.mubr.bf16.mxu0 0
    %1849 = vmatmul.mubr.bf16.gmra.mrb[0].mxu0 %v1691
    %v1850 = vpop.f32.mrb[0].mxu0
    %v1851 = vadd.f32 %v1810, %v1850
    %v1852 = vpop.f32.mrb[0].mxu0
    %v1853 = vadd.f32 %v1812, %v1852
    %v1854 = vpop.f32.mrb[0].mxu0
    %v1855 = vpop.f32.mrb[0].mxu0
    %1856 = vdwg.mxu0
    %1857 = vmatprep.subr.bf16.mxu0 %v1202
    %1858 = vmatpush1.bf16.msra.mxu0 %v1201
    %1859 = vmatprep.subr.bf16.mxu0 %v1207
    %1860 = vmatpush1.bf16.msra.mxu0 %v1206
    %1861 = vmatprep.subr.bf16.mxu0 %v1212
    %1862 = vmatpush1.bf16.msra.mxu0 %v1211
    %1863 = vmatprep.subr.bf16.mxu0 %v1217
    %1864 = vmatpush1.bf16.msra.mxu0 %v1216
    %1865 = vmatprep.subr.bf16.mxu0 %v1222
    %1866 = vmatpush1.bf16.msra.mxu0 %v1221
    %1867 = vmatprep.subr.bf16.mxu0 %v1227
    %1868 = vmatpush1.bf16.msra.mxu0 %v1226
    %1869 = vmatprep.subr.bf16.mxu0 %v1232
    %1870 = vmatpush1.bf16.msra.mxu0 %v1231
    %1871 = vmatprep.subr.bf16.mxu0 %v1237
    %1872 = vmatpush1.bf16.msra.mxu0 %v1236
    %1873 = vmatprep.subr.bf16.mxu0 %v1242
    %1874 = vmatpush1.bf16.msra.mxu0 %v1241
    %1875 = vmatprep.subr.bf16.mxu0 %v1247
    %1876 = vmatpush1.bf16.msra.mxu0 %v1246
    %1877 = vmatprep.subr.bf16.mxu0 %v1252
    %1878 = vmatpush1.bf16.msra.mxu0 %v1251
    %1879 = vmatprep.subr.bf16.mxu0 %v1257
    %1880 = vmatpush1.bf16.msra.mxu0 %v1256
    %1881 = vmatprep.subr.bf16.mxu0 %v1262
    %1882 = vmatpush1.bf16.msra.mxu0 %v1261
    %1883 = vmatprep.subr.bf16.mxu0 %v1267
    %1884 = vmatpush1.bf16.msra.mxu0 %v1266
    %1885 = vmatprep.subr.bf16.mxu0 %v1272
    %1886 = vmatpush1.bf16.msra.mxu0 %v1271
    %1887 = vmatprep.subr.bf16.mxu0 %v1277
    %1888 = vmatpush1.bf16.msra.mxu0 %v1276
    %1889 = vmatprep.mubr.bf16.mxu0 %v88
    %1890 = vmatmul.mubr.bf16.gmra.mrb[0].mxu0 %v87
    %v1891 = vpop.f32.mrb[0].mxu0
    %v1892 = vadd.f32 %v401, %v1891
    %v1893 = vpop.f32.mrb[0].mxu0
    %v1894 = vadd.f32 %v405, %v1893
    %v1895 = vpop.f32.mrb[0].mxu0
    %v1896 = vpop.f32.mrb[0].mxu0
    %1897 = vdwg.mxu0
    %1898 = vmatprep.subr.bf16.mxu0 %v1282
    %1899 = vmatpush1.bf16.msra.mxu0 %v1281
    %1900 = vmatprep.subr.bf16.mxu0 %v1287
    %1901 = vmatpush1.bf16.msra.mxu0 %v1286
    %1902 = vmatprep.subr.bf16.mxu0 %v1292
    %1903 = vmatpush1.bf16.msra.mxu0 %v1291
    %1904 = vmatprep.subr.bf16.mxu0 %v1297
    %1905 = vmatpush1.bf16.msra.mxu0 %v1296
    %1906 = vmatprep.subr.bf16.mxu0 %v1302
    %1907 = vmatpush1.bf16.msra.mxu0 %v1301
    %1908 = vmatprep.subr.bf16.mxu0 %v1307
    %1909 = vmatpush1.bf16.msra.mxu0 %v1306
    %1910 = vmatprep.subr.bf16.mxu0 %v1312
    %1911 = vmatpush1.bf16.msra.mxu0 %v1311
    %1912 = vmatprep.subr.bf16.mxu0 %v1317
    %1913 = vmatpush1.bf16.msra.mxu0 %v1316
    %1914 = vmatprep.subr.bf16.mxu0 %v1322
    %1915 = vmatpush1.bf16.msra.mxu0 %v1321
    %1916 = vmatprep.subr.bf16.mxu0 %v1327
    %1917 = vmatpush1.bf16.msra.mxu0 %v1326
    %1918 = vmatprep.subr.bf16.mxu0 %v1332
    %1919 = vmatpush1.bf16.msra.mxu0 %v1331
    %1920 = vmatprep.subr.bf16.mxu0 %v1337
    %1921 = vmatpush1.bf16.msra.mxu0 %v1336
    %1922 = vmatprep.subr.bf16.mxu0 %v1342
    %1923 = vmatpush1.bf16.msra.mxu0 %v1341
    %1924 = vmatprep.subr.bf16.mxu0 %v1347
    %1925 = vmatpush1.bf16.msra.mxu0 %v1346
    %1926 = vmatprep.subr.bf16.mxu0 %v1352
    %1927 = vmatpush1.bf16.msra.mxu0 %v1351
    %1928 = vmatprep.subr.bf16.mxu0 %v1357
    %1929 = vmatpush1.bf16.msra.mxu0 %v1356
    %1930 = vmatprep.mubr.bf16.mxu0 %v90
    %1931 = vmatmul.mubr.bf16.gmra.mrb[0].mxu0 %v89
    %v1932 = vpop.f32.mrb[0].mxu0
    %v1933 = vadd.f32 %v1892, %v1932
    %v1934 = vpop.f32.mrb[0].mxu0
    %v1935 = vadd.f32 %v1894, %v1934
    %v1936 = vpop.f32.mrb[0].mxu0
    %v1937 = vpop.f32.mrb[0].mxu0
    %1938 = vdwg.mxu0
    %1939 = vmatprep.subr.bf16.mxu0 %v1362
    %1940 = vmatpush1.bf16.msra.mxu0 %v1361
    %1941 = vmatprep.subr.bf16.mxu0 %v1367
    %1942 = vmatpush1.bf16.msra.mxu0 %v1366
    %1943 = vmatprep.subr.bf16.mxu0 %v1372
    %1944 = vmatpush1.bf16.msra.mxu0 %v1371
    %1945 = vmatprep.subr.bf16.mxu0 %v1377
    %1946 = vmatpush1.bf16.msra.mxu0 %v1376
    %1947 = vmatprep.subr.bf16.mxu0 %v1382
    %1948 = vmatpush1.bf16.msra.mxu0 %v1381
    %1949 = vmatprep.subr.bf16.mxu0 %v1387
    %1950 = vmatpush1.bf16.msra.mxu0 %v1386
    %1951 = vmatprep.subr.bf16.mxu0 %v1392
    %1952 = vmatpush1.bf16.msra.mxu0 %v1391
    %1953 = vmatprep.subr.bf16.mxu0 %v1397
    %1954 = vmatpush1.bf16.msra.mxu0 %v1396
    %1955 = vmatprep.subr.bf16.mxu0 %v1402
    %1956 = vmatpush1.bf16.msra.mxu0 %v1401
    %1957 = vmatprep.subr.bf16.mxu0 %v1407
    %1958 = vmatpush1.bf16.msra.mxu0 %v1406
    %1959 = vmatprep.subr.bf16.mxu0 %v1412
    %1960 = vmatpush1.bf16.msra.mxu0 %v1411
    %1961 = vmatprep.subr.bf16.mxu0 %v1417
    %1962 = vmatpush1.bf16.msra.mxu0 %v1416
    %1963 = vmatprep.subr.bf16.mxu0 %v1422
    %1964 = vmatpush1.bf16.msra.mxu0 %v1421
    %1965 = vmatprep.subr.bf16.mxu0 %v1427
    %1966 = vmatpush1.bf16.msra.mxu0 %v1426
    %1967 = vmatprep.subr.bf16.mxu0 %v1432
    %1968 = vmatpush1.bf16.msra.mxu0 %v1431
    %1969 = vmatprep.subr.bf16.mxu0 %v1437
    %1970 = vmatpush1.bf16.msra.mxu0 %v1436
    %1971 = vmatprep.mubr.bf16.mxu0 %v92
    %1972 = vmatmul.mubr.bf16.gmra.mrb[0].mxu0 %v91
    %v1973 = vpop.f32.mrb[0].mxu0
    %v1974 = vadd.f32 %v1933, %v1973
    %v1975 = vpop.f32.mrb[0].mxu0
    %v1976 = vadd.f32 %v1935, %v1975
    %v1977 = vpop.f32.mrb[0].mxu0
    %v1978 = vpop.f32.mrb[0].mxu0
    %1979 = vdwg.mxu0
    %1980 = vmatprep.subr.bf16.mxu0 %v1442
    %1981 = vmatpush1.bf16.msra.mxu0 %v1441
    %1982 = vmatprep.subr.bf16.mxu0 0
    %1983 = vmatpush1.bf16.msra.mxu0 0
    %1984 = vmatprep.subr.bf16.mxu0 0
    %1985 = vmatpush1.bf16.msra.mxu0 0
    %1986 = vmatprep.subr.bf16.mxu0 0
    %1987 = vmatpush1.bf16.msra.mxu0 0
    %1988 = vmatprep.subr.bf16.mxu0 0
    %1989 = vmatpush1.bf16.msra.mxu0 0
    %1990 = vmatprep.subr.bf16.mxu0 0
    %1991 = vmatpush1.bf16.msra.mxu0 0
    %1992 = vmatprep.subr.bf16.mxu0 0
    %1993 = vmatpush1.bf16.msra.mxu0 0
    %1994 = vmatprep.subr.bf16.mxu0 0
    %1995 = vmatpush1.bf16.msra.mxu0 0
    %1996 = vmatprep.subr.bf16.mxu0 0
    %1997 = vmatpush1.bf16.msra.mxu0 0
    %1998 = vmatprep.subr.bf16.mxu0 0
    %1999 = vmatpush1.bf16.msra.mxu0 0
    %2000 = vmatprep.subr.bf16.mxu0 0
    %2001 = vmatpush1.bf16.msra.mxu0 0
    %2002 = vmatprep.subr.bf16.mxu0 0
    %2003 = vmatpush1.bf16.msra.mxu0 0
    %2004 = vmatprep.subr.bf16.mxu0 0
    %2005 = vmatpush1.bf16.msra.mxu0 0
    %2006 = vmatprep.subr.bf16.mxu0 0
    %2007 = vmatpush1.bf16.msra.mxu0 0
    %2008 = vmatprep.subr.bf16.mxu0 0
    %2009 = vmatpush1.bf16.msra.mxu0 0
    %2010 = vmatprep.subr.bf16.mxu0 0
    %2011 = vmatpush1.bf16.msra.mxu0 0
    %2012 = vmatprep.mubr.bf16.mxu0 0
    %2013 = vmatmul.mubr.bf16.gmra.mrb[0].mxu0 %v1691
    %v2014 = vpop.f32.mrb[0].mxu0
    %v2015 = vadd.f32 %v1974, %v2014
    %v2016 = vpop.f32.mrb[0].mxu0
    %v2017 = vadd.f32 %v1976, %v2016
    %v2018 = vpop.f32.mrb[0].mxu0
    %v2019 = vpop.f32.mrb[0].mxu0
    %2020 = vdwg.mxu0
    %2021 = vmatprep.subr.bf16.mxu0 0
    %2022 = vmatpush1.bf16.msra.mxu0 %v1203
    %2023 = vmatprep.subr.bf16.mxu0 0
    %2024 = vmatpush1.bf16.msra.mxu0 %v1208
    %2025 = vmatprep.subr.bf16.mxu0 0
    %2026 = vmatpush1.bf16.msra.mxu0 %v1213
    %2027 = vmatprep.subr.bf16.mxu0 0
    %2028 = vmatpush1.bf16.msra.mxu0 %v1218
    %2029 = vmatprep.subr.bf16.mxu0 0
    %2030 = vmatpush1.bf16.msra.mxu0 %v1223
    %2031 = vmatprep.subr.bf16.mxu0 0
    %2032 = vmatpush1.bf16.msra.mxu0 %v1228
    %2033 = vmatprep.subr.bf16.mxu0 0
    %2034 = vmatpush1.bf16.msra.mxu0 %v1233
    %2035 = vmatprep.subr.bf16.mxu0 0
    %2036 = vmatpush1.bf16.msra.mxu0 %v1238
    %2037 = vmatprep.subr.bf16.mxu0 0
    %2038 = vmatpush1.bf16.msra.mxu0 %v1243
    %2039 = vmatprep.subr.bf16.mxu0 0
    %2040 = vmatpush1.bf16.msra.mxu0 %v1248
    %2041 = vmatprep.subr.bf16.mxu0 0
    %2042 = vmatpush1.bf16.msra.mxu0 %v1253
    %2043 = vmatprep.subr.bf16.mxu0 0
    %2044 = vmatpush1.bf16.msra.mxu0 %v1258
    %2045 = vmatprep.subr.bf16.mxu0 0
    %2046 = vmatpush1.bf16.msra.mxu0 %v1263
    %2047 = vmatprep.subr.bf16.mxu0 0
    %2048 = vmatpush1.bf16.msra.mxu0 %v1268
    %2049 = vmatprep.subr.bf16.mxu0 0
    %2050 = vmatpush1.bf16.msra.mxu0 %v1273
    %2051 = vmatprep.subr.bf16.mxu0 0
    %2052 = vmatpush1.bf16.msra.mxu0 %v1278
    %2053 = vmatprep.mubr.bf16.mxu0 %v88
    %2054 = vmatmul.mubr.bf16.gmra.mrb[0].mxu0 %v87
    %v2055 = vpop.f32.mrb[0].mxu0
    %v2056 = vadd.f32 %v409, %v2055
    %v2057 = vpop.f32.mrb[0].mxu0
    %v2058 = vpop.f32.mrb[0].mxu0
    %v2059 = vpop.f32.mrb[0].mxu0
    %2060 = vdwg.mxu0
    %2061 = vmatprep.subr.bf16.mxu0 0
    %2062 = vmatpush1.bf16.msra.mxu0 %v1283
    %2063 = vmatprep.subr.bf16.mxu0 0
    %2064 = vmatpush1.bf16.msra.mxu0 %v1288
    %2065 = vmatprep.subr.bf16.mxu0 0
    %2066 = vmatpush1.bf16.msra.mxu0 %v1293
    %2067 = vmatprep.subr.bf16.mxu0 0
    %2068 = vmatpush1.bf16.msra.mxu0 %v1298
    %2069 = vmatprep.subr.bf16.mxu0 0
    %2070 = vmatpush1.bf16.msra.mxu0 %v1303
    %2071 = vmatprep.subr.bf16.mxu0 0
    %2072 = vmatpush1.bf16.msra.mxu0 %v1308
    %2073 = vmatprep.subr.bf16.mxu0 0
    %2074 = vmatpush1.bf16.msra.mxu0 %v1313
    %2075 = vmatprep.subr.bf16.mxu0 0
    %2076 = vmatpush1.bf16.msra.mxu0 %v1318
    %2077 = vmatprep.subr.bf16.mxu0 0
    %2078 = vmatpush1.bf16.msra.mxu0 %v1323
    %2079 = vmatprep.subr.bf16.mxu0 0
    %2080 = vmatpush1.bf16.msra.mxu0 %v1328
    %2081 = vmatprep.subr.bf16.mxu0 0
    %2082 = vmatpush1.bf16.msra.mxu0 %v1333
    %2083 = vmatprep.subr.bf16.mxu0 0
    %2084 = vmatpush1.bf16.msra.mxu0 %v1338
    %2085 = vmatprep.subr.bf16.mxu0 0
    %2086 = vmatpush1.bf16.msra.mxu0 %v1343
    %2087 = vmatprep.subr.bf16.mxu0 0
    %2088 = vmatpush1.bf16.msra.mxu0 %v1348
    %2089 = vmatprep.subr.bf16.mxu0 0
    %2090 = vmatpush1.bf16.msra.mxu0 %v1353
    %2091 = vmatprep.subr.bf16.mxu0 0
    %2092 = vmatpush1.bf16.msra.mxu0 %v1358
    %2093 = vmatprep.mubr.bf16.mxu0 %v90
    %2094 = vmatmul.mubr.bf16.gmra.mrb[0].mxu0 %v89
    %v2095 = vpop.f32.mrb[0].mxu0
    %v2096 = vadd.f32 %v2056, %v2095
    %v2097 = vpop.f32.mrb[0].mxu0
    %v2098 = vpop.f32.mrb[0].mxu0
    %v2099 = vpop.f32.mrb[0].mxu0
    %2100 = vdwg.mxu0
    %2101 = vmatprep.subr.bf16.mxu0 0
    %2102 = vmatpush1.bf16.msra.mxu0 %v1363
    %2103 = vmatprep.subr.bf16.mxu0 0
    %2104 = vmatpush1.bf16.msra.mxu0 %v1368
    %2105 = vmatprep.subr.bf16.mxu0 0
    %2106 = vmatpush1.bf16.msra.mxu0 %v1373
    %2107 = vmatprep.subr.bf16.mxu0 0
    %2108 = vmatpush1.bf16.msra.mxu0 %v1378
    %2109 = vmatprep.subr.bf16.mxu0 0
    %2110 = vmatpush1.bf16.msra.mxu0 %v1383
    %2111 = vmatprep.subr.bf16.mxu0 0
    %2112 = vmatpush1.bf16.msra.mxu0 %v1388
    %2113 = vmatprep.subr.bf16.mxu0 0
    %2114 = vmatpush1.bf16.msra.mxu0 %v1393
    %2115 = vmatprep.subr.bf16.mxu0 0
    %2116 = vmatpush1.bf16.msra.mxu0 %v1398
    %2117 = vmatprep.subr.bf16.mxu0 0
    %2118 = vmatpush1.bf16.msra.mxu0 %v1403
    %2119 = vmatprep.subr.bf16.mxu0 0
    %2120 = vmatpush1.bf16.msra.mxu0 %v1408
    %2121 = vmatprep.subr.bf16.mxu0 0
    %2122 = vmatpush1.bf16.msra.mxu0 %v1413
    %2123 = vmatprep.subr.bf16.mxu0 0
    %2124 = vmatpush1.bf16.msra.mxu0 %v1418
    %2125 = vmatprep.subr.bf16.mxu0 0
    %2126 = vmatpush1.bf16.msra.mxu0 %v1423
    %2127 = vmatprep.subr.bf16.mxu0 0
    %2128 = vmatpush1.bf16.msra.mxu0 %v1428
    %2129 = vmatprep.subr.bf16.mxu0 0
    %2130 = vmatpush1.bf16.msra.mxu0 %v1433
    %2131 = vmatprep.subr.bf16.mxu0 0
    %2132 = vmatpush1.bf16.msra.mxu0 %v1438
    %2133 = vmatprep.mubr.bf16.mxu0 %v92
    %2134 = vmatmul.mubr.bf16.gmra.mrb[0].mxu0 %v91
    %v2135 = vpop.f32.mrb[0].mxu0
    %v2136 = vadd.f32 %v2096, %v2135
    %v2137 = vpop.f32.mrb[0].mxu0
    %v2138 = vpop.f32.mrb[0].mxu0
    %v2139 = vpop.f32.mrb[0].mxu0
    %2140 = vdwg.mxu0
    %2141 = vmatprep.subr.bf16.mxu0 0
    %2142 = vmatpush1.bf16.msra.mxu0 %v1443
    %2143 = vmatprep.subr.bf16.mxu0 0
    %2144 = vmatpush1.bf16.msra.mxu0 0
    %2145 = vmatprep.subr.bf16.mxu0 0
    %2146 = vmatpush1.bf16.msra.mxu0 0
    %2147 = vmatprep.subr.bf16.mxu0 0
    %2148 = vmatpush1.bf16.msra.mxu0 0
    %2149 = vmatprep.subr.bf16.mxu0 0
    %2150 = vmatpush1.bf16.msra.mxu0 0
    %2151 = vmatprep.subr.bf16.mxu0 0
    %2152 = vmatpush1.bf16.msra.mxu0 0
    %2153 = vmatprep.subr.bf16.mxu0 0
    %2154 = vmatpush1.bf16.msra.mxu0 0
    %2155 = vmatprep.subr.bf16.mxu0 0
    %2156 = vmatpush1.bf16.msra.mxu0 0
    %2157 = vmatprep.subr.bf16.mxu0 0
    %2158 = vmatpush1.bf16.msra.mxu0 0
    %2159 = vmatprep.subr.bf16.mxu0 0
    %2160 = vmatpush1.bf16.msra.mxu0 0
    %2161 = vmatprep.subr.bf16.mxu0 0
    %2162 = vmatpush1.bf16.msra.mxu0 0
    %2163 = vmatprep.subr.bf16.mxu0 0
    %2164 = vmatpush1.bf16.msra.mxu0 0
    %2165 = vmatprep.subr.bf16.mxu0 0
    %2166 = vmatpush1.bf16.msra.mxu0 0
    %2167 = vmatprep.subr.bf16.mxu0 0
    %2168 = vmatpush1.bf16.msra.mxu0 0
    %2169 = vmatprep.subr.bf16.mxu0 0
    %2170 = vmatpush1.bf16.msra.mxu0 0
    %2171 = vmatprep.subr.bf16.mxu0 0
    %2172 = vmatpush1.bf16.msra.mxu0 0
    %2173 = vmatprep.mubr.bf16.mxu0 0
    %2174 = vmatmul.mubr.bf16.gmra.mrb[0].mxu0 %v1691
    %v2175 = vpop.f32.mrb[0].mxu0
    %v2176 = vadd.f32 %v2136, %v2175
    %v2177 = vpop.f32.mrb[0].mxu0
    %v2178 = vpop.f32.mrb[0].mxu0
    %v2179 = vpop.f32.mrb[0].mxu0
    %2180 = vdwg.mxu0
    %v2181 = vmax.f32 %v1851, 0.0
    %v2182 = vmax.f32 %v1853, 0.0
    %v2183 = vmax.f32 %v2015, 0.0
    %v2184 = vmax.f32 %v2017, 0.0
    %v2185 = vmax.f32 %v2176, 0.0
    %v2186 = vpack.c.bf16 %v2181, %v2181
    %v2187 = vpack.c.bf16 %v2182, %v2182
    %v2188 = vpack.c.bf16 %v2183, %v2183
    %v2189 = vpack.c.bf16 %v2184, %v2184
    %v2190 = vpack.c.bf16 %v2185, %v2185
    %v2191 = vld [vmem:[#allocation4] sm:$0xff]
    %v2192 = vld [vmem:[#allocation4 + $0x8] sm:$0xf]
    %v2193 = vld [vmem:[#allocation4 + $0xc] sm:$0xff]
    %v2194 = vld [vmem:[#allocation4 + $0x14] sm:$0xf]
    %v2195 = vld [vmem:[#allocation4 + $0x18] sm:$0xff]
    %v2196 = vld [vmem:[#allocation4 + $0x20] sm:$0xf]
    %v2197 = vld [vmem:[#allocation4 + $0x24] sm:$0xff]
    %v2198 = vld [vmem:[#allocation4 + $0x2c] sm:$0xf]
    %v2199 = vld [vmem:[#allocation4 + $0x30] sm:$0xff]
    %v2200 = vld [vmem:[#allocation4 + $0x38] sm:$0xf]
    %v2201 = vld [vmem:[#allocation4 + $0x3c] sm:$0xff]
    %v2202 = vld [vmem:[#allocation4 + $0x44] sm:$0xf]
    %v2203 = vld [vmem:[#allocation4 + $0x48] sm:$0xff]
    %v2204 = vld [vmem:[#allocation4 + $0x50] sm:$0xf]
    %v2205 = vld [vmem:[#allocation4 + $0x54] sm:$0xff]
    %v2206 = vld [vmem:[#allocation4 + $0x5c] sm:$0xf]
    %v2207 = vld [vmem:[#allocation4 + $0x60] sm:$0xff]
    %v2208 = vld [vmem:[#allocation4 + $0x68] sm:$0xf]
    %v2209 = vld [vmem:[#allocation4 + $0x6c] sm:$0xff]
    %v2210 = vld [vmem:[#allocation4 + $0x74] sm:$0xf]
    %v2211 = vld [vmem:[#allocation4 + $0x78] sm:$0xff]
    %v2212 = vld [vmem:[#allocation4 + $0x80] sm:$0xf]
    %v2213 = vld [vmem:[#allocation4 + $0x84] sm:$0xff]
    %v2214 = vld [vmem:[#allocation4 + $0x8c] sm:$0xf]
    %v2215 = vld [vmem:[#allocation4 + $0x90] sm:$0xff]
    %v2216 = vld [vmem:[#allocation4 + $0x98] sm:$0xf]
    %v2217 = vld [vmem:[#allocation4 + $0x9c] sm:$0xff]
    %v2218 = vld [vmem:[#allocation4 + $0xa4] sm:$0xf]
    %v2219 = vld [vmem:[#allocation4 + $0xa8] sm:$0xff]
    %v2220 = vld [vmem:[#allocation4 + $0xb0] sm:$0xf]
    %v2221 = vld [vmem:[#allocation4 + $0xb4] sm:$0xff]
    %v2222 = vld [vmem:[#allocation4 + $0xbc] sm:$0xf]
    %v2223 = vld [vmem:[#allocation4 + $0xc0] sm:$0xff]
    %v2224 = vld [vmem:[#allocation4 + $0xc8] sm:$0xf]
    %v2225 = vld [vmem:[#allocation4 + $0xcc] sm:$0xff]
    %v2226 = vld [vmem:[#allocation4 + $0xd4] sm:$0xf]
    %v2227 = vld [vmem:[#allocation4 + $0xd8] sm:$0xff]
    %v2228 = vld [vmem:[#allocation4 + $0xe0] sm:$0xf]
    %v2229 = vld [vmem:[#allocation4 + $0xe4] sm:$0xff]
    %v2230 = vld [vmem:[#allocation4 + $0xec] sm:$0xf]
    %v2231 = vld [vmem:[#allocation4 + $0xf0] sm:$0xff]
    %v2232 = vld [vmem:[#allocation4 + $0xf8] sm:$0xf]
    %v2233 = vld [vmem:[#allocation4 + $0xfc] sm:$0xff]
    %v2234 = vld [vmem:[#allocation4 + $0x104] sm:$0xf]
    %v2235 = vld [vmem:[#allocation4 + $0x108] sm:$0xff]
    %v2236 = vld [vmem:[#allocation4 + $0x110] sm:$0xf]
    %v2237 = vld [vmem:[#allocation4 + $0x114] sm:$0xff]
    %v2238 = vld [vmem:[#allocation4 + $0x11c] sm:$0xf]
    %v2239 = vld [vmem:[#allocation4 + $0x120] sm:$0xff]
    %v2240 = vld [vmem:[#allocation4 + $0x128] sm:$0xf]
    %v2241 = vld [vmem:[#allocation4 + $0x12c] sm:$0xff]
    %v2242 = vld [vmem:[#allocation4 + $0x134] sm:$0xf]
    %v2243 = vld [vmem:[#allocation4 + $0x138] sm:$0xff]
    %v2244 = vld [vmem:[#allocation4 + $0x140] sm:$0xf]
    %v2245 = vld [vmem:[#allocation4 + $0x144] sm:$0xff]
    %v2246 = vld [vmem:[#allocation4 + $0x14c] sm:$0xf]
    %v2247 = vld [vmem:[#allocation4 + $0x150] sm:$0xff]
    %v2248 = vld [vmem:[#allocation4 + $0x158] sm:$0xf]
    %v2249 = vld [vmem:[#allocation4 + $0x15c] sm:$0xff]
    %v2250 = vld [vmem:[#allocation4 + $0x164] sm:$0xf]
    %v2251 = vld [vmem:[#allocation4 + $0x168] sm:$0xff]
    %v2252 = vld [vmem:[#allocation4 + $0x170] sm:$0xf]
    %v2253 = vld [vmem:[#allocation4 + $0x174] sm:$0xff]
    %v2254 = vld [vmem:[#allocation4 + $0x17c] sm:$0xf]
    %v2255 = vld [vmem:[#allocation4 + $0x180] sm:$0xff]
    %v2256 = vld [vmem:[#allocation4 + $0x188] sm:$0xf]
    %v2257 = vld [vmem:[#allocation4 + $0x18c] sm:$0xff]
    %v2258 = vld [vmem:[#allocation4 + $0x194] sm:$0xf]
    %v2259 = vld [vmem:[#allocation4 + $0x198] sm:$0xff]
    %v2260 = vld [vmem:[#allocation4 + $0x1a0] sm:$0xf]
    %v2261 = vld [vmem:[#allocation4 + $0x1a4] sm:$0xff]
    %v2262 = vld [vmem:[#allocation4 + $0x1ac] sm:$0xf]
    %v2263 = vld [vmem:[#allocation4 + $0x1b0] sm:$0xff]
    %v2264 = vld [vmem:[#allocation4 + $0x1b8] sm:$0xf]
    %v2265 = vld [vmem:[#allocation4 + $0x1bc] sm:$0xff]
    %v2266 = vld [vmem:[#allocation4 + $0x1c4] sm:$0xf]
    %v2267 = vld [vmem:[#allocation4 + $0x1c8] sm:$0xff]
    %v2268 = vld [vmem:[#allocation4 + $0x1d0] sm:$0xf]
    %v2269 = vld [vmem:[#allocation4 + $0x1d4] sm:$0xff]
    %v2270 = vld [vmem:[#allocation4 + $0x1dc] sm:$0xf]
    %v2271 = vld [vmem:[#allocation4 + $0x1e0] sm:$0xff]
    %v2272 = vld [vmem:[#allocation4 + $0x1e8] sm:$0xf]
    %v2273 = vld [vmem:[#allocation4 + $0x1ec] sm:$0xff]
    %v2274 = vld [vmem:[#allocation4 + $0x1f4] sm:$0xf]
    %v2275 = vld [vmem:[#allocation4 + $0x1f8] sm:$0xff]
    %v2276 = vld [vmem:[#allocation4 + $0x200] sm:$0xf]
    %v2277 = vld [vmem:[#allocation4 + $0x204] sm:$0xff]
    %v2278 = vld [vmem:[#allocation4 + $0x20c] sm:$0xf]
    %v2279 = vld [vmem:[#allocation4 + $0x210] sm:$0xff]
    %v2280 = vld [vmem:[#allocation4 + $0x218] sm:$0xf]
    %v2281 = vld [vmem:[#allocation4 + $0x21c] sm:$0xff]
    %v2282 = vld [vmem:[#allocation4 + $0x224] sm:$0xf]
    %v2283 = vld [vmem:[#allocation4 + $0x228] sm:$0xff]
    %v2284 = vld [vmem:[#allocation4 + $0x230] sm:$0xf]
    %v2285 = vld [vmem:[#allocation4 + $0x234] sm:$0xff]
    %v2286 = vld [vmem:[#allocation4 + $0x23c] sm:$0xf]
    %v2287 = vld [vmem:[#allocation4 + $0x240] sm:$0xff]
    %v2288 = vld [vmem:[#allocation4 + $0x248] sm:$0xf]
    %v2289 = vld [vmem:[#allocation4 + $0x24c] sm:$0xff]
    %v2290 = vld [vmem:[#allocation4 + $0x254] sm:$0xf]
    %v2291 = vld [vmem:[#allocation4 + $0x258] sm:$0xff]
    %v2292 = vld [vmem:[#allocation4 + $0x260] sm:$0xf]
    %v2293 = vld [vmem:[#allocation4 + $0x264] sm:$0xff]
    %v2294 = vld [vmem:[#allocation4 + $0x26c] sm:$0xf]
    %v2295 = vld [vmem:[#allocation4 + $0x270] sm:$0xff]
    %v2296 = vld [vmem:[#allocation4 + $0x278] sm:$0xf]
    %v2297 = vld [vmem:[#allocation4 + $0x27c] sm:$0xff]
    %v2298 = vld [vmem:[#allocation4 + $0x284] sm:$0xf]
    %v2299 = vld [vmem:[#allocation4 + $0x288] sm:$0xff]
    %v2300 = vld [vmem:[#allocation4 + $0x290] sm:$0xf]
    %v2301 = vld [vmem:[#allocation4 + $0x294] sm:$0xff]
    %v2302 = vld [vmem:[#allocation4 + $0x29c] sm:$0xf]
    %v2303 = vld [vmem:[#allocation4 + $0x2a0] sm:$0xff]
    %v2304 = vld [vmem:[#allocation4 + $0x2a8] sm:$0xf]
    %v2305 = vld [vmem:[#allocation4 + $0x2ac] sm:$0xff]
    %v2306 = vld [vmem:[#allocation4 + $0x2b4] sm:$0xf]
    %v2307 = vld [vmem:[#allocation4 + $0x2b8] sm:$0xff]
    %v2308 = vld [vmem:[#allocation4 + $0x2c0] sm:$0xf]
    %v2309 = vld [vmem:[#allocation4 + $0x2c4] sm:$0xff]
    %v2310 = vld [vmem:[#allocation4 + $0x2cc] sm:$0xf]
    %v2311 = vld [vmem:[#allocation4 + $0x2d0] sm:$0xff]
    %v2312 = vld [vmem:[#allocation4 + $0x2d8] sm:$0xf]
    %v2313 = vld [vmem:[#allocation4 + $0x2dc] sm:$0xff]
    %v2314 = vld [vmem:[#allocation4 + $0x2e4] sm:$0xf]
    %v2315 = vld [vmem:[#allocation4 + $0x2e8] sm:$0xff]
    %v2316 = vld [vmem:[#allocation4 + $0x2f0] sm:$0xf]
    %v2317 = vld [vmem:[#allocation4 + $0x2f4] sm:$0xff]
    %v2318 = vld [vmem:[#allocation4 + $0x2fc] sm:$0xf]
    %v2319 = vld [vmem:[#allocation4 + $0x300] sm:$0xff]
    %v2320 = vld [vmem:[#allocation4 + $0x308] sm:$0xf]
    %v2321 = vld [vmem:[#allocation4 + $0x30c] sm:$0xff]
    %v2322 = vld [vmem:[#allocation4 + $0x314] sm:$0xf]
    %v2323 = vld [vmem:[#allocation4 + $0x318] sm:$0xff]
    %v2324 = vld [vmem:[#allocation4 + $0x320] sm:$0xf]
    %v2325 = vld [vmem:[#allocation4 + $0x324] sm:$0xff]
    %v2326 = vld [vmem:[#allocation4 + $0x32c] sm:$0xf]
    %v2327 = vld [vmem:[#allocation4 + $0x330] sm:$0xff]
    %v2328 = vld [vmem:[#allocation4 + $0x338] sm:$0xf]
    %v2329 = vld [vmem:[#allocation4 + $0x33c] sm:$0xff]
    %v2330 = vld [vmem:[#allocation4 + $0x344] sm:$0xf]
    %v2331 = vld [vmem:[#allocation4 + $0x348] sm:$0xff]
    %v2332 = vld [vmem:[#allocation4 + $0x350] sm:$0xf]
    %v2333 = vld [vmem:[#allocation4 + $0x354] sm:$0xff]
    %v2334 = vld [vmem:[#allocation4 + $0x35c] sm:$0xf]
    %v2335 = vld [vmem:[#allocation4 + $0x360] sm:$0xff]
    %v2336 = vld [vmem:[#allocation4 + $0x368] sm:$0xf]
    %v2337 = vld [vmem:[#allocation4 + $0x36c] sm:$0xff]
    %v2338 = vld [vmem:[#allocation4 + $0x374] sm:$0xf]
    %v2339 = vld [vmem:[#allocation4 + $0x378] sm:$0xff]
    %v2340 = vld [vmem:[#allocation4 + $0x380] sm:$0xf]
    %v2341 = vld [vmem:[#allocation4 + $0x384] sm:$0xff]
    %v2342 = vld [vmem:[#allocation4 + $0x38c] sm:$0xf]
    %v2343 = vld [vmem:[#allocation4 + $0x390] sm:$0xff]
    %v2344 = vld [vmem:[#allocation4 + $0x398] sm:$0xf]
    %v2345 = vld [vmem:[#allocation4 + $0x39c] sm:$0xff]
    %v2346 = vld [vmem:[#allocation4 + $0x3a4] sm:$0xf]
    %v2347 = vld [vmem:[#allocation4 + $0x3a8] sm:$0xff]
    %v2348 = vld [vmem:[#allocation4 + $0x3b0] sm:$0xf]
    %v2349 = vld [vmem:[#allocation4 + $0x3b4] sm:$0xff]
    %v2350 = vld [vmem:[#allocation4 + $0x3bc] sm:$0xf]
    %v2351 = vld [vmem:[%s4] sm:$0x7]
    %v2353 = vlaneseq
    %v2354 = vshrl.u32 %v2353, 7
    %v2355 = vsub.s32 0, %v2354
    %v2356 = vrot.slane %v2351, %v2355
    %v2357 = vlaneseq
    %v2358 = vshrl.u32 %v2357, 7
    %v2359 = vsub.s32 1, %v2358
    %v2360 = vrot.slane %v2351, %v2359
    %v2361 = vlaneseq
    %v2362 = vshrl.u32 %v2361, 7
    %v2363 = vsub.s32 2, %v2362
    %v2364 = vrot.slane %v2351, %v2363
    %v2528 = vunpack.c.l.b16 %v2191
    %v2529 = vunpack.c.h.b16 %v2191
    %v2530 = vunpack.c.l.b16 %v2192
    %v2531 = vunpack.c.l.b16 %v2193
    %v2532 = vunpack.c.h.b16 %v2193
    %v2533 = vunpack.c.l.b16 %v2194
    %v2534 = vunpack.c.l.b16 %v2195
    %v2535 = vunpack.c.h.b16 %v2195
    %v2536 = vunpack.c.l.b16 %v2196
    %v2537 = vunpack.c.l.b16 %v2197
    %v2538 = vunpack.c.h.b16 %v2197
    %v2539 = vunpack.c.l.b16 %v2198
    %v2540 = vunpack.c.l.b16 %v2199
    %v2541 = vunpack.c.h.b16 %v2199
    %v2542 = vunpack.c.l.b16 %v2200
    %v2543 = vunpack.c.l.b16 %v2201
    %v2544 = vunpack.c.h.b16 %v2201
    %v2545 = vunpack.c.l.b16 %v2202
    %v2546 = vunpack.c.l.b16 %v2203
    %v2547 = vunpack.c.h.b16 %v2203
    %v2548 = vunpack.c.l.b16 %v2204
    %v2549 = vunpack.c.l.b16 %v2205
    %v2550 = vunpack.c.h.b16 %v2205
    %v2551 = vunpack.c.l.b16 %v2206
    %v2552 = vunpack.c.l.b16 %v2207
    %v2553 = vunpack.c.h.b16 %v2207
    %v2554 = vunpack.c.l.b16 %v2208
    %v2555 = vunpack.c.l.b16 %v2209
    %v2556 = vunpack.c.h.b16 %v2209
    %v2557 = vunpack.c.l.b16 %v2210
    %v2558 = vunpack.c.l.b16 %v2211
    %v2559 = vunpack.c.h.b16 %v2211
    %v2560 = vunpack.c.l.b16 %v2212
    %v2561 = vunpack.c.l.b16 %v2213
    %v2562 = vunpack.c.h.b16 %v2213
    %v2563 = vunpack.c.l.b16 %v2214
    %v2564 = vunpack.c.l.b16 %v2215
    %v2565 = vunpack.c.h.b16 %v2215
    %v2566 = vunpack.c.l.b16 %v2216
    %v2567 = vunpack.c.l.b16 %v2217
    %v2568 = vunpack.c.h.b16 %v2217
    %v2569 = vunpack.c.l.b16 %v2218
    %v2570 = vunpack.c.l.b16 %v2219
    %v2571 = vunpack.c.h.b16 %v2219
    %v2572 = vunpack.c.l.b16 %v2220
    %v2573 = vunpack.c.l.b16 %v2221
    %v2574 = vunpack.c.h.b16 %v2221
    %v2575 = vunpack.c.l.b16 %v2222
    %v2576 = vunpack.c.l.b16 %v2223
    %v2577 = vunpack.c.h.b16 %v2223
    %v2578 = vunpack.c.l.b16 %v2224
    %v2579 = vunpack.c.l.b16 %v2225
    %v2580 = vunpack.c.h.b16 %v2225
    %v2581 = vunpack.c.l.b16 %v2226
    %v2582 = vunpack.c.l.b16 %v2227
    %v2583 = vunpack.c.h.b16 %v2227
    %v2584 = vunpack.c.l.b16 %v2228
    %v2585 = vunpack.c.l.b16 %v2229
    %v2586 = vunpack.c.h.b16 %v2229
    %v2587 = vunpack.c.l.b16 %v2230
    %v2588 = vunpack.c.l.b16 %v2231
    %v2589 = vunpack.c.h.b16 %v2231
    %v2590 = vunpack.c.l.b16 %v2232
    %v2591 = vunpack.c.l.b16 %v2233
    %v2592 = vunpack.c.h.b16 %v2233
    %v2593 = vunpack.c.l.b16 %v2234
    %v2594 = vunpack.c.l.b16 %v2235
    %v2595 = vunpack.c.h.b16 %v2235
    %v2596 = vunpack.c.l.b16 %v2236
    %v2597 = vunpack.c.l.b16 %v2237
    %v2598 = vunpack.c.h.b16 %v2237
    %v2599 = vunpack.c.l.b16 %v2238
    %v2600 = vunpack.c.l.b16 %v2239
    %v2601 = vunpack.c.h.b16 %v2239
    %v2602 = vunpack.c.l.b16 %v2240
    %v2603 = vunpack.c.l.b16 %v2241
    %v2604 = vunpack.c.h.b16 %v2241
    %v2605 = vunpack.c.l.b16 %v2242
    %v2606 = vunpack.c.l.b16 %v2243
    %v2607 = vunpack.c.h.b16 %v2243
    %v2608 = vunpack.c.l.b16 %v2244
    %v2609 = vunpack.c.l.b16 %v2245
    %v2610 = vunpack.c.h.b16 %v2245
    %v2611 = vunpack.c.l.b16 %v2246
    %v2612 = vunpack.c.l.b16 %v2247
    %v2613 = vunpack.c.h.b16 %v2247
    %v2614 = vunpack.c.l.b16 %v2248
    %v2615 = vunpack.c.l.b16 %v2249
    %v2616 = vunpack.c.h.b16 %v2249
    %v2617 = vunpack.c.l.b16 %v2250
    %v2618 = vunpack.c.l.b16 %v2251
    %v2619 = vunpack.c.h.b16 %v2251
    %v2620 = vunpack.c.l.b16 %v2252
    %v2621 = vunpack.c.l.b16 %v2253
    %v2622 = vunpack.c.h.b16 %v2253
    %v2623 = vunpack.c.l.b16 %v2254
    %v2624 = vunpack.c.l.b16 %v2255
    %v2625 = vunpack.c.h.b16 %v2255
    %v2626 = vunpack.c.l.b16 %v2256
    %v2627 = vunpack.c.l.b16 %v2257
    %v2628 = vunpack.c.h.b16 %v2257
    %v2629 = vunpack.c.l.b16 %v2258
    %v2630 = vunpack.c.l.b16 %v2259
    %v2631 = vunpack.c.h.b16 %v2259
    %v2632 = vunpack.c.l.b16 %v2260
    %v2633 = vunpack.c.l.b16 %v2261
    %v2634 = vunpack.c.h.b16 %v2261
    %v2635 = vunpack.c.l.b16 %v2262
    %v2636 = vunpack.c.l.b16 %v2263
    %v2637 = vunpack.c.h.b16 %v2263
    %v2638 = vunpack.c.l.b16 %v2264
    %v2639 = vunpack.c.l.b16 %v2265
    %v2640 = vunpack.c.h.b16 %v2265
    %v2641 = vunpack.c.l.b16 %v2266
    %v2642 = vunpack.c.l.b16 %v2267
    %v2643 = vunpack.c.h.b16 %v2267
    %v2644 = vunpack.c.l.b16 %v2268
    %v2645 = vunpack.c.l.b16 %v2269
    %v2646 = vunpack.c.h.b16 %v2269
    %v2647 = vunpack.c.l.b16 %v2270
    %v2648 = vunpack.c.l.b16 %v2271
    %v2649 = vunpack.c.h.b16 %v2271
    %v2650 = vunpack.c.l.b16 %v2272
    %v2651 = vunpack.c.l.b16 %v2273
    %v2652 = vunpack.c.h.b16 %v2273
    %v2653 = vunpack.c.l.b16 %v2274
    %v2654 = vunpack.c.l.b16 %v2275
    %v2655 = vunpack.c.h.b16 %v2275
    %v2656 = vunpack.c.l.b16 %v2276
    %v2657 = vunpack.c.l.b16 %v2277
    %v2658 = vunpack.c.h.b16 %v2277
    %v2659 = vunpack.c.l.b16 %v2278
    %v2660 = vunpack.c.l.b16 %v2279
    %v2661 = vunpack.c.h.b16 %v2279
    %v2662 = vunpack.c.l.b16 %v2280
    %v2663 = vunpack.c.l.b16 %v2281
    %v2664 = vunpack.c.h.b16 %v2281
    %v2665 = vunpack.c.l.b16 %v2282
    %v2666 = vunpack.c.l.b16 %v2283
    %v2667 = vunpack.c.h.b16 %v2283
    %v2668 = vunpack.c.l.b16 %v2284
    %v2669 = vunpack.c.l.b16 %v2285
    %v2670 = vunpack.c.h.b16 %v2285
    %v2671 = vunpack.c.l.b16 %v2286
    %v2672 = vunpack.c.l.b16 %v2287
    %v2673 = vunpack.c.h.b16 %v2287
    %v2674 = vunpack.c.l.b16 %v2288
    %v2675 = vunpack.c.l.b16 %v2289
    %v2676 = vunpack.c.h.b16 %v2289
    %v2677 = vunpack.c.l.b16 %v2290
    %v2678 = vunpack.c.l.b16 %v2291
    %v2679 = vunpack.c.h.b16 %v2291
    %v2680 = vunpack.c.l.b16 %v2292
    %v2681 = vunpack.c.l.b16 %v2293
    %v2682 = vunpack.c.h.b16 %v2293
    %v2683 = vunpack.c.l.b16 %v2294
    %v2684 = vunpack.c.l.b16 %v2295
    %v2685 = vunpack.c.h.b16 %v2295
    %v2686 = vunpack.c.l.b16 %v2296
    %v2687 = vunpack.c.l.b16 %v2297
    %v2688 = vunpack.c.h.b16 %v2297
    %v2689 = vunpack.c.l.b16 %v2298
    %v2690 = vunpack.c.l.b16 %v2299
    %v2691 = vunpack.c.h.b16 %v2299
    %v2692 = vunpack.c.l.b16 %v2300
    %v2693 = vunpack.c.l.b16 %v2301
    %v2694 = vunpack.c.h.b16 %v2301
    %v2695 = vunpack.c.l.b16 %v2302
    %v2696 = vunpack.c.l.b16 %v2303
    %v2697 = vunpack.c.h.b16 %v2303
    %v2698 = vunpack.c.l.b16 %v2304
    %v2699 = vunpack.c.l.b16 %v2305
    %v2700 = vunpack.c.h.b16 %v2305
    %v2701 = vunpack.c.l.b16 %v2306
    %v2702 = vunpack.c.l.b16 %v2307
    %v2703 = vunpack.c.h.b16 %v2307
    %v2704 = vunpack.c.l.b16 %v2308
    %v2705 = vunpack.c.l.b16 %v2309
    %v2706 = vunpack.c.h.b16 %v2309
    %v2707 = vunpack.c.l.b16 %v2310
    %v2708 = vunpack.c.l.b16 %v2311
    %v2709 = vunpack.c.h.b16 %v2311
    %v2710 = vunpack.c.l.b16 %v2312
    %v2711 = vunpack.c.l.b16 %v2313
    %v2712 = vunpack.c.h.b16 %v2313
    %v2713 = vunpack.c.l.b16 %v2314
    %v2714 = vunpack.c.l.b16 %v2315
    %v2715 = vunpack.c.h.b16 %v2315
    %v2716 = vunpack.c.l.b16 %v2316
    %v2717 = vunpack.c.l.b16 %v2317
    %v2718 = vunpack.c.h.b16 %v2317
    %v2719 = vunpack.c.l.b16 %v2318
    %v2720 = vunpack.c.l.b16 %v2319
    %v2721 = vunpack.c.h.b16 %v2319
    %v2722 = vunpack.c.l.b16 %v2320
    %v2723 = vunpack.c.l.b16 %v2321
    %v2724 = vunpack.c.h.b16 %v2321
    %v2725 = vunpack.c.l.b16 %v2322
    %v2726 = vunpack.c.l.b16 %v2323
    %v2727 = vunpack.c.h.b16 %v2323
    %v2728 = vunpack.c.l.b16 %v2324
    %v2729 = vunpack.c.l.b16 %v2325
    %v2730 = vunpack.c.h.b16 %v2325
    %v2731 = vunpack.c.l.b16 %v2326
    %v2732 = vunpack.c.l.b16 %v2327
    %v2733 = vunpack.c.h.b16 %v2327
    %v2734 = vunpack.c.l.b16 %v2328
    %v2735 = vunpack.c.l.b16 %v2329
    %v2736 = vunpack.c.h.b16 %v2329
    %v2737 = vunpack.c.l.b16 %v2330
    %v2738 = vunpack.c.l.b16 %v2331
    %v2739 = vunpack.c.h.b16 %v2331
    %v2740 = vunpack.c.l.b16 %v2332
    %v2741 = vunpack.c.l.b16 %v2333
    %v2742 = vunpack.c.h.b16 %v2333
    %v2743 = vunpack.c.l.b16 %v2334
    %v2744 = vunpack.c.l.b16 %v2335
    %v2745 = vunpack.c.h.b16 %v2335
    %v2746 = vunpack.c.l.b16 %v2336
    %v2747 = vunpack.c.l.b16 %v2337
    %v2748 = vunpack.c.h.b16 %v2337
    %v2749 = vunpack.c.l.b16 %v2338
    %v2750 = vunpack.c.l.b16 %v2339
    %v2751 = vunpack.c.h.b16 %v2339
    %v2752 = vunpack.c.l.b16 %v2340
    %v2753 = vunpack.c.l.b16 %v2341
    %v2754 = vunpack.c.h.b16 %v2341
    %v2755 = vunpack.c.l.b16 %v2342
    %v2756 = vunpack.c.l.b16 %v2343
    %v2757 = vunpack.c.h.b16 %v2343
    %v2758 = vunpack.c.l.b16 %v2344
    %v2759 = vunpack.c.l.b16 %v2345
    %v2760 = vunpack.c.h.b16 %v2345
    %v2761 = vunpack.c.l.b16 %v2346
    %v2762 = vunpack.c.l.b16 %v2347
    %v2763 = vunpack.c.h.b16 %v2347
    %v2764 = vunpack.c.l.b16 %v2348
    %v2765 = vunpack.c.l.b16 %v2349
    %v2766 = vunpack.c.h.b16 %v2349
    %v2767 = vunpack.c.l.b16 %v2350
    %v2768 = vpack.c.b16 %v2531, %v2528
    %v2769 = vpack.c.b16 %v2532, %v2529
    %v2770 = vpack.c.b16 %v2533, %v2530
    %v2771 = vpack.c.b16 %v2537, %v2534
    %v2772 = vpack.c.b16 %v2538, %v2535
    %v2773 = vpack.c.b16 %v2539, %v2536
    %v2774 = vpack.c.b16 %v2543, %v2540
    %v2775 = vpack.c.b16 %v2544, %v2541
    %v2776 = vpack.c.b16 %v2545, %v2542
    %v2777 = vpack.c.b16 %v2549, %v2546
    %v2778 = vpack.c.b16 %v2550, %v2547
    %v2779 = vpack.c.b16 %v2551, %v2548
    %v2780 = vpack.c.b16 %v2555, %v2552
    %v2781 = vpack.c.b16 %v2556, %v2553
    %v2782 = vpack.c.b16 %v2557, %v2554
    %v2783 = vpack.c.b16 %v2561, %v2558
    %v2784 = vpack.c.b16 %v2562, %v2559
    %v2785 = vpack.c.b16 %v2563, %v2560
    %v2786 = vpack.c.b16 %v2567, %v2564
    %v2787 = vpack.c.b16 %v2568, %v2565
    %v2788 = vpack.c.b16 %v2569, %v2566
    %v2789 = vpack.c.b16 %v2573, %v2570
    %v2790 = vpack.c.b16 %v2574, %v2571
    %v2791 = vpack.c.b16 %v2575, %v2572
    %v2792 = vpack.c.b16 %v2579, %v2576
    %v2793 = vpack.c.b16 %v2580, %v2577
    %v2794 = vpack.c.b16 %v2581, %v2578
    %v2795 = vpack.c.b16 %v2585, %v2582
    %v2796 = vpack.c.b16 %v2586, %v2583
    %v2797 = vpack.c.b16 %v2587, %v2584
    %v2798 = vpack.c.b16 %v2591, %v2588
    %v2799 = vpack.c.b16 %v2592, %v2589
    %v2800 = vpack.c.b16 %v2593, %v2590
    %v2801 = vpack.c.b16 %v2597, %v2594
    %v2802 = vpack.c.b16 %v2598, %v2595
    %v2803 = vpack.c.b16 %v2599, %v2596
    %v2804 = vpack.c.b16 %v2603, %v2600
    %v2805 = vpack.c.b16 %v2604, %v2601
    %v2806 = vpack.c.b16 %v2605, %v2602
    %v2807 = vpack.c.b16 %v2609, %v2606
    %v2808 = vpack.c.b16 %v2610, %v2607
    %v2809 = vpack.c.b16 %v2611, %v2608
    %v2810 = vpack.c.b16 %v2615, %v2612
    %v2811 = vpack.c.b16 %v2616, %v2613
    %v2812 = vpack.c.b16 %v2617, %v2614
    %v2813 = vpack.c.b16 %v2621, %v2618
    %v2814 = vpack.c.b16 %v2622, %v2619
    %v2815 = vpack.c.b16 %v2623, %v2620
    %v2816 = vpack.c.b16 %v2627, %v2624
    %v2817 = vpack.c.b16 %v2628, %v2625
    %v2818 = vpack.c.b16 %v2629, %v2626
    %v2819 = vpack.c.b16 %v2633, %v2630
    %v2820 = vpack.c.b16 %v2634, %v2631
    %v2821 = vpack.c.b16 %v2635, %v2632
    %v2822 = vpack.c.b16 %v2639, %v2636
    %v2823 = vpack.c.b16 %v2640, %v2637
    %v2824 = vpack.c.b16 %v2641, %v2638
    %v2825 = vpack.c.b16 %v2645, %v2642
    %v2826 = vpack.c.b16 %v2646, %v2643
    %v2827 = vpack.c.b16 %v2647, %v2644
    %v2828 = vpack.c.b16 %v2651, %v2648
    %v2829 = vpack.c.b16 %v2652, %v2649
    %v2830 = vpack.c.b16 %v2653, %v2650
    %v2831 = vpack.c.b16 %v2657, %v2654
    %v2832 = vpack.c.b16 %v2658, %v2655
    %v2833 = vpack.c.b16 %v2659, %v2656
    %v2834 = vpack.c.b16 %v2663, %v2660
    %v2835 = vpack.c.b16 %v2664, %v2661
    %v2836 = vpack.c.b16 %v2665, %v2662
    %v2837 = vpack.c.b16 %v2669, %v2666
    %v2838 = vpack.c.b16 %v2670, %v2667
    %v2839 = vpack.c.b16 %v2671, %v2668
    %v2840 = vpack.c.b16 %v2675, %v2672
    %v2841 = vpack.c.b16 %v2676, %v2673
    %v2842 = vpack.c.b16 %v2677, %v2674
    %v2843 = vpack.c.b16 %v2681, %v2678
    %v2844 = vpack.c.b16 %v2682, %v2679
    %v2845 = vpack.c.b16 %v2683, %v2680
    %v2846 = vpack.c.b16 %v2687, %v2684
    %v2847 = vpack.c.b16 %v2688, %v2685
    %v2848 = vpack.c.b16 %v2689, %v2686
    %v2849 = vpack.c.b16 %v2693, %v2690
    %v2850 = vpack.c.b16 %v2694, %v2691
    %v2851 = vpack.c.b16 %v2695, %v2692
    %v2852 = vpack.c.b16 %v2699, %v2696
    %v2853 = vpack.c.b16 %v2700, %v2697
    %v2854 = vpack.c.b16 %v2701, %v2698
    %v2855 = vpack.c.b16 %v2705, %v2702
    %v2856 = vpack.c.b16 %v2706, %v2703
    %v2857 = vpack.c.b16 %v2707, %v2704
    %v2858 = vpack.c.b16 %v2711, %v2708
    %v2859 = vpack.c.b16 %v2712, %v2709
    %v2860 = vpack.c.b16 %v2713, %v2710
    %v2861 = vpack.c.b16 %v2717, %v2714
    %v2862 = vpack.c.b16 %v2718, %v2715
    %v2863 = vpack.c.b16 %v2719, %v2716
    %v2864 = vpack.c.b16 %v2723, %v2720
    %v2865 = vpack.c.b16 %v2724, %v2721
    %v2866 = vpack.c.b16 %v2725, %v2722
    %v2867 = vpack.c.b16 %v2729, %v2726
    %v2868 = vpack.c.b16 %v2730, %v2727
    %v2869 = vpack.c.b16 %v2731, %v2728
    %v2870 = vpack.c.b16 %v2735, %v2732
    %v2871 = vpack.c.b16 %v2736, %v2733
    %v2872 = vpack.c.b16 %v2737, %v2734
    %v2873 = vpack.c.b16 %v2741, %v2738
    %v2874 = vpack.c.b16 %v2742, %v2739
    %v2875 = vpack.c.b16 %v2743, %v2740
    %v2876 = vpack.c.b16 %v2747, %v2744
    %v2877 = vpack.c.b16 %v2748, %v2745
    %v2878 = vpack.c.b16 %v2749, %v2746
    %v2879 = vpack.c.b16 %v2753, %v2750
    %v2880 = vpack.c.b16 %v2754, %v2751
    %v2881 = vpack.c.b16 %v2755, %v2752
    %v2882 = vpack.c.b16 %v2759, %v2756
    %v2883 = vpack.c.b16 %v2760, %v2757
    %v2884 = vpack.c.b16 %v2761, %v2758
    %v2885 = vpack.c.b16 %v2765, %v2762
    %v2886 = vpack.c.b16 %v2766, %v2763
    %v2887 = vpack.c.b16 %v2767, %v2764
    %3008 = vmatprep.subr.bf16.mxu0 %v2769
    %3009 = vmatpush1.bf16.msra.mxu0 %v2768
    %3010 = vmatprep.subr.bf16.mxu0 %v2772
    %3011 = vmatpush1.bf16.msra.mxu0 %v2771
    %3012 = vmatprep.subr.bf16.mxu0 %v2775
    %3013 = vmatpush1.bf16.msra.mxu0 %v2774
    %3014 = vmatprep.subr.bf16.mxu0 %v2778
    %3015 = vmatpush1.bf16.msra.mxu0 %v2777
    %3016 = vmatprep.subr.bf16.mxu0 %v2781
    %3017 = vmatpush1.bf16.msra.mxu0 %v2780
    %3018 = vmatprep.subr.bf16.mxu0 %v2784
    %3019 = vmatpush1.bf16.msra.mxu0 %v2783
    %3020 = vmatprep.subr.bf16.mxu0 %v2787
    %3021 = vmatpush1.bf16.msra.mxu0 %v2786
    %3022 = vmatprep.subr.bf16.mxu0 %v2790
    %3023 = vmatpush1.bf16.msra.mxu0 %v2789
    %3024 = vmatprep.subr.bf16.mxu0 %v2793
    %3025 = vmatpush1.bf16.msra.mxu0 %v2792
    %3026 = vmatprep.subr.bf16.mxu0 %v2796
    %3027 = vmatpush1.bf16.msra.mxu0 %v2795
    %3028 = vmatprep.subr.bf16.mxu0 %v2799
    %3029 = vmatpush1.bf16.msra.mxu0 %v2798
    %3030 = vmatprep.subr.bf16.mxu0 %v2802
    %3031 = vmatpush1.bf16.msra.mxu0 %v2801
    %3032 = vmatprep.subr.bf16.mxu0 %v2805
    %3033 = vmatpush1.bf16.msra.mxu0 %v2804
    %3034 = vmatprep.subr.bf16.mxu0 %v2808
    %3035 = vmatpush1.bf16.msra.mxu0 %v2807
    %3036 = vmatprep.subr.bf16.mxu0 %v2811
    %3037 = vmatpush1.bf16.msra.mxu0 %v2810
    %3038 = vmatprep.subr.bf16.mxu0 %v2814
    %3039 = vmatpush1.bf16.msra.mxu0 %v2813
    %3040 = vmatprep.mubr.bf16.mxu0 %v2187
    %3041 = vmatmul.mubr.bf16.gmra.mrb[0].mxu0 %v2186
    %v3042 = vpop.f32.mrb[0].mxu0
    %v3043 = vadd.f32 %v2356, %v3042
    %v3044 = vpop.f32.mrb[0].mxu0
    %v3045 = vadd.f32 %v2360, %v3044
    %v3046 = vpop.f32.mrb[0].mxu0
    %v3047 = vpop.f32.mrb[0].mxu0
    %3048 = vdwg.mxu0
    %3049 = vmatprep.subr.bf16.mxu0 %v2817
    %3050 = vmatpush1.bf16.msra.mxu0 %v2816
    %3051 = vmatprep.subr.bf16.mxu0 %v2820
    %3052 = vmatpush1.bf16.msra.mxu0 %v2819
    %3053 = vmatprep.subr.bf16.mxu0 %v2823
    %3054 = vmatpush1.bf16.msra.mxu0 %v2822
    %3055 = vmatprep.subr.bf16.mxu0 %v2826
    %3056 = vmatpush1.bf16.msra.mxu0 %v2825
    %3057 = vmatprep.subr.bf16.mxu0 %v2829
    %3058 = vmatpush1.bf16.msra.mxu0 %v2828
    %3059 = vmatprep.subr.bf16.mxu0 %v2832
    %3060 = vmatpush1.bf16.msra.mxu0 %v2831
    %3061 = vmatprep.subr.bf16.mxu0 %v2835
    %3062 = vmatpush1.bf16.msra.mxu0 %v2834
    %3063 = vmatprep.subr.bf16.mxu0 %v2838
    %3064 = vmatpush1.bf16.msra.mxu0 %v2837
    %3065 = vmatprep.subr.bf16.mxu0 %v2841
    %3066 = vmatpush1.bf16.msra.mxu0 %v2840
    %3067 = vmatprep.subr.bf16.mxu0 %v2844
    %3068 = vmatpush1.bf16.msra.mxu0 %v2843
    %3069 = vmatprep.subr.bf16.mxu0 %v2847
    %3070 = vmatpush1.bf16.msra.mxu0 %v2846
    %3071 = vmatprep.subr.bf16.mxu0 %v2850
    %3072 = vmatpush1.bf16.msra.mxu0 %v2849
    %3073 = vmatprep.subr.bf16.mxu0 %v2853
    %3074 = vmatpush1.bf16.msra.mxu0 %v2852
    %3075 = vmatprep.subr.bf16.mxu0 %v2856
    %3076 = vmatpush1.bf16.msra.mxu0 %v2855
    %3077 = vmatprep.subr.bf16.mxu0 %v2859
    %3078 = vmatpush1.bf16.msra.mxu0 %v2858
    %3079 = vmatprep.subr.bf16.mxu0 %v2862
    %3080 = vmatpush1.bf16.msra.mxu0 %v2861
    %3081 = vmatprep.mubr.bf16.mxu0 %v2189
    %3082 = vmatmul.mubr.bf16.gmra.mrb[0].mxu0 %v2188
    %v3083 = vpop.f32.mrb[0].mxu0
    %v3084 = vadd.f32 %v3043, %v3083
    %v3085 = vpop.f32.mrb[0].mxu0
    %v3086 = vadd.f32 %v3045, %v3085
    %v3087 = vpop.f32.mrb[0].mxu0
    %v3088 = vpop.f32.mrb[0].mxu0
    %3089 = vdwg.mxu0
    %3090 = vmatprep.subr.bf16.mxu0 %v2865
    %3091 = vmatpush1.bf16.msra.mxu0 %v2864
    %3092 = vmatprep.subr.bf16.mxu0 %v2868
    %3093 = vmatpush1.bf16.msra.mxu0 %v2867
    %3094 = vmatprep.subr.bf16.mxu0 %v2871
    %3095 = vmatpush1.bf16.msra.mxu0 %v2870
    %3096 = vmatprep.subr.bf16.mxu0 %v2874
    %3097 = vmatpush1.bf16.msra.mxu0 %v2873
    %3098 = vmatprep.subr.bf16.mxu0 %v2877
    %3099 = vmatpush1.bf16.msra.mxu0 %v2876
    %3100 = vmatprep.subr.bf16.mxu0 %v2880
    %3101 = vmatpush1.bf16.msra.mxu0 %v2879
    %3102 = vmatprep.subr.bf16.mxu0 %v2883
    %3103 = vmatpush1.bf16.msra.mxu0 %v2882
    %3104 = vmatprep.subr.bf16.mxu0 %v2886
    %3105 = vmatpush1.bf16.msra.mxu0 %v2885
    %3106 = vmatprep.subr.bf16.mxu0 0
    %3107 = vmatpush1.bf16.msra.mxu0 0
    %3108 = vmatprep.subr.bf16.mxu0 0
    %3109 = vmatpush1.bf16.msra.mxu0 0
    %3110 = vmatprep.subr.bf16.mxu0 0
    %3111 = vmatpush1.bf16.msra.mxu0 0
    %3112 = vmatprep.subr.bf16.mxu0 0
    %3113 = vmatpush1.bf16.msra.mxu0 0
    %3114 = vmatprep.subr.bf16.mxu0 0
    %3115 = vmatpush1.bf16.msra.mxu0 0
    %3116 = vmatprep.subr.bf16.mxu0 0
    %3117 = vmatpush1.bf16.msra.mxu0 0
    %3118 = vmatprep.subr.bf16.mxu0 0
    %3119 = vmatpush1.bf16.msra.mxu0 0
    %3120 = vmatprep.subr.bf16.mxu0 0
    %3121 = vmatpush1.bf16.msra.mxu0 0
    %3122 = vmatprep.mubr.bf16.mxu0 0
    %3123 = vmatmul.mubr.bf16.gmra.mrb[0].mxu0 %v2190
    %v3124 = vpop.f32.mrb[0].mxu0
    %v3125 = vadd.f32 %v3084, %v3124
    %v3126 = vpop.f32.mrb[0].mxu0
    %v3127 = vadd.f32 %v3086, %v3126
    %v3128 = vpop.f32.mrb[0].mxu0
    %v3129 = vpop.f32.mrb[0].mxu0
    %3130 = vdwg.mxu0
    %3131 = vmatprep.subr.bf16.mxu0 0
    %3132 = vmatpush1.bf16.msra.mxu0 %v2770
    %3133 = vmatprep.subr.bf16.mxu0 0
    %3134 = vmatpush1.bf16.msra.mxu0 %v2773
    %3135 = vmatprep.subr.bf16.mxu0 0
    %3136 = vmatpush1.bf16.msra.mxu0 %v2776
    %3137 = vmatprep.subr.bf16.mxu0 0
    %3138 = vmatpush1.bf16.msra.mxu0 %v2779
    %3139 = vmatprep.subr.bf16.mxu0 0
    %3140 = vmatpush1.bf16.msra.mxu0 %v2782
    %3141 = vmatprep.subr.bf16.mxu0 0
    %3142 = vmatpush1.bf16.msra.mxu0 %v2785
    %3143 = vmatprep.subr.bf16.mxu0 0
    %3144 = vmatpush1.bf16.msra.mxu0 %v2788
    %3145 = vmatprep.subr.bf16.mxu0 0
    %3146 = vmatpush1.bf16.msra.mxu0 %v2791
    %3147 = vmatprep.subr.bf16.mxu0 0
    %3148 = vmatpush1.bf16.msra.mxu0 %v2794
    %3149 = vmatprep.subr.bf16.mxu0 0
    %3150 = vmatpush1.bf16.msra.mxu0 %v2797
    %3151 = vmatprep.subr.bf16.mxu0 0
    %3152 = vmatpush1.bf16.msra.mxu0 %v2800
    %3153 = vmatprep.subr.bf16.mxu0 0
    %3154 = vmatpush1.bf16.msra.mxu0 %v2803
    %3155 = vmatprep.subr.bf16.mxu0 0
    %3156 = vmatpush1.bf16.msra.mxu0 %v2806
    %3157 = vmatprep.subr.bf16.mxu0 0
    %3158 = vmatpush1.bf16.msra.mxu0 %v2809
    %3159 = vmatprep.subr.bf16.mxu0 0
    %3160 = vmatpush1.bf16.msra.mxu0 %v2812
    %3161 = vmatprep.subr.bf16.mxu0 0
    %3162 = vmatpush1.bf16.msra.mxu0 %v2815
    %3163 = vmatprep.mubr.bf16.mxu0 %v2187
    %3164 = vmatmul.mubr.bf16.gmra.mrb[0].mxu0 %v2186
    %v3165 = vpop.f32.mrb[0].mxu0
    %v3166 = vadd.f32 %v2364, %v3165
    %v3167 = vpop.f32.mrb[0].mxu0
    %v3168 = vpop.f32.mrb[0].mxu0
    %v3169 = vpop.f32.mrb[0].mxu0
    %3170 = vdwg.mxu0
    %3171 = vmatprep.subr.bf16.mxu0 0
    %3172 = vmatpush1.bf16.msra.mxu0 %v2818
    %3173 = vmatprep.subr.bf16.mxu0 0
    %3174 = vmatpush1.bf16.msra.mxu0 %v2821
    %3175 = vmatprep.subr.bf16.mxu0 0
    %3176 = vmatpush1.bf16.msra.mxu0 %v2824
    %3177 = vmatprep.subr.bf16.mxu0 0
    %3178 = vmatpush1.bf16.msra.mxu0 %v2827
    %3179 = vmatprep.subr.bf16.mxu0 0
    %3180 = vmatpush1.bf16.msra.mxu0 %v2830
    %3181 = vmatprep.subr.bf16.mxu0 0
    %3182 = vmatpush1.bf16.msra.mxu0 %v2833
    %3183 = vmatprep.subr.bf16.mxu0 0
    %3184 = vmatpush1.bf16.msra.mxu0 %v2836
    %3185 = vmatprep.subr.bf16.mxu0 0
    %3186 = vmatpush1.bf16.msra.mxu0 %v2839
    %3187 = vmatprep.subr.bf16.mxu0 0
    %3188 = vmatpush1.bf16.msra.mxu0 %v2842
    %3189 = vmatprep.subr.bf16.mxu0 0
    %3190 = vmatpush1.bf16.msra.mxu0 %v2845
    %3191 = vmatprep.subr.bf16.mxu0 0
    %3192 = vmatpush1.bf16.msra.mxu0 %v2848
    %3193 = vmatprep.subr.bf16.mxu0 0
    %3194 = vmatpush1.bf16.msra.mxu0 %v2851
    %3195 = vmatprep.subr.bf16.mxu0 0
    %3196 = vmatpush1.bf16.msra.mxu0 %v2854
    %3197 = vmatprep.subr.bf16.mxu0 0
    %3198 = vmatpush1.bf16.msra.mxu0 %v2857
    %3199 = vmatprep.subr.bf16.mxu0 0
    %3200 = vmatpush1.bf16.msra.mxu0 %v2860
    %3201 = vmatprep.subr.bf16.mxu0 0
    %3202 = vmatpush1.bf16.msra.mxu0 %v2863
    %3203 = vmatprep.mubr.bf16.mxu0 %v2189
    %3204 = vmatmul.mubr.bf16.gmra.mrb[0].mxu0 %v2188
    %v3205 = vpop.f32.mrb[0].mxu0
    %v3206 = vadd.f32 %v3166, %v3205
    %v3207 = vpop.f32.mrb[0].mxu0
    %v3208 = vpop.f32.mrb[0].mxu0
    %v3209 = vpop.f32.mrb[0].mxu0
    %3210 = vdwg.mxu0
    %3211 = vmatprep.subr.bf16.mxu0 0
    %3212 = vmatpush1.bf16.msra.mxu0 %v2866
    %3213 = vmatprep.subr.bf16.mxu0 0
    %3214 = vmatpush1.bf16.msra.mxu0 %v2869
    %3215 = vmatprep.subr.bf16.mxu0 0
    %3216 = vmatpush1.bf16.msra.mxu0 %v2872
    %3217 = vmatprep.subr.bf16.mxu0 0
    %3218 = vmatpush1.bf16.msra.mxu0 %v2875
    %3219 = vmatprep.subr.bf16.mxu0 0
    %3220 = vmatpush1.bf16.msra.mxu0 %v2878
    %3221 = vmatprep.subr.bf16.mxu0 0
    %3222 = vmatpush1.bf16.msra.mxu0 %v2881
    %3223 = vmatprep.subr.bf16.mxu0 0
    %3224 = vmatpush1.bf16.msra.mxu0 %v2884
    %3225 = vmatprep.subr.bf16.mxu0 0
    %3226 = vmatpush1.bf16.msra.mxu0 %v2887
    %3227 = vmatprep.subr.bf16.mxu0 0
    %3228 = vmatpush1.bf16.msra.mxu0 0
    %3229 = vmatprep.subr.bf16.mxu0 0
    %3230 = vmatpush1.bf16.msra.mxu0 0
    %3231 = vmatprep.subr.bf16.mxu0 0
    %3232 = vmatpush1.bf16.msra.mxu0 0
    %3233 = vmatprep.subr.bf16.mxu0 0
    %3234 = vmatpush1.bf16.msra.mxu0 0
    %3235 = vmatprep.subr.bf16.mxu0 0
    %3236 = vmatpush1.bf16.msra.mxu0 0
    %3237 = vmatprep.subr.bf16.mxu0 0
    %3238 = vmatpush1.bf16.msra.mxu0 0
    %3239 = vmatprep.subr.bf16.mxu0 0
    %3240 = vmatpush1.bf16.msra.mxu0 0
    %3241 = vmatprep.subr.bf16.mxu0 0
    %3242 = vmatpush1.bf16.msra.mxu0 0
    %3243 = vmatprep.mubr.bf16.mxu0 0
    %3244 = vmatmul.mubr.bf16.gmra.mrb[0].mxu0 %v2190
    %v3245 = vpop.f32.mrb[0].mxu0
    %v3246 = vadd.f32 %v3206, %v3245
    %v3247 = vpop.f32.mrb[0].mxu0
    %v3248 = vpop.f32.mrb[0].mxu0
    %v3249 = vpop.f32.mrb[0].mxu0
    %3250 = vdwg.mxu0
    %v3251 = vmax.f32 %v3125, 0.0
    %v3252 = vmax.f32 %v3127, 0.0
    %v3253 = vmax.f32 %v3246, 0.0
    %v3254 = vpack.c.bf16 %v3251, %v3251
    %v3255 = vpack.c.bf16 %v3252, %v3252
    %v3256 = vpack.c.bf16 %v3253, %v3253
    %v3257 = vld [vmem:[%s5] sm:$0xff]
    %v3258 = vld [vmem:[%s5 + $0x8] sm:$0xff]
    %v3259 = vld [vmem:[%s5 + $0x10] sm:$0xff]
    %v3260 = vld [vmem:[%s5 + $0x18] sm:$0xff]
    %v3261 = vld [vmem:[%s5 + $0x20] sm:$0xff]
    %v3262 = vld [vmem:[%s5 + $0x28] sm:$0xff]
    %v3263 = vld [vmem:[%s5 + $0x30] sm:$0xff]
    %v3264 = vld [vmem:[%s5 + $0x38] sm:$0xff]
    %v3265 = vld [vmem:[%s5 + $0x40] sm:$0xff]
    %v3266 = vld [vmem:[%s5 + $0x48] sm:$0xff]
    %v3267 = vld [vmem:[%s5 + $0x50] sm:$0xff]
    %v3268 = vld [vmem:[%s5 + $0x58] sm:$0xff]
    %v3269 = vld [vmem:[%s5 + $0x60] sm:$0xff]
    %v3270 = vld [vmem:[%s5 + $0x68] sm:$0xff]
    %v3271 = vld [vmem:[%s5 + $0x70] sm:$0xff]
    %v3272 = vld [vmem:[%s5 + $0x78] sm:$0xff]
    %v3273 = vld [vmem:[%s5 + $0x80] sm:$0xff]
    %v3274 = vld [vmem:[%s5 + $0x88] sm:$0xff]
    %v3275 = vld [vmem:[%s5 + $0x90] sm:$0xff]
    %v3276 = vld [vmem:[%s5 + $0x98] sm:$0xff]
    %v3277 = vld [vmem:[%s5 + $0xa0] sm:$0xff]
    %v3278 = vld [vmem:[%s5 + $0xa8] sm:$0xff]
    %v3279 = vld [vmem:[%s5 + $0xb0] sm:$0xff]
    %v3280 = vld [vmem:[%s5 + $0xb8] sm:$0xff]
    %v3281 = vld [vmem:[%s5 + $0xc0] sm:$0xff]
    %v3282 = vld [vmem:[%s5 + $0xc8] sm:$0xff]
    %v3283 = vld [vmem:[%s5 + $0xd0] sm:$0xff]
    %v3284 = vld [vmem:[%s5 + $0xd8] sm:$0xff]
    %v3285 = vld [vmem:[%s5 + $0xe0] sm:$0xff]
    %v3286 = vld [vmem:[%s5 + $0xe8] sm:$0xff]
    %v3287 = vld [vmem:[%s5 + $0xf0] sm:$0xff]
    %v3288 = vld [vmem:[%s5 + $0xf8] sm:$0xff]
    %v3289 = vld [vmem:[%s5 + $0x100] sm:$0xff]
    %v3290 = vld [vmem:[%s5 + $0x108] sm:$0xff]
    %v3291 = vld [vmem:[%s5 + $0x110] sm:$0xff]
    %v3292 = vld [vmem:[%s5 + $0x118] sm:$0xff]
    %v3293 = vld [vmem:[%s5 + $0x120] sm:$0xff]
    %v3294 = vld [vmem:[%s5 + $0x128] sm:$0xff]
    %v3295 = vld [vmem:[%s5 + $0x130] sm:$0xff]
    %v3296 = vld [vmem:[%s5 + $0x138] sm:$0xff]
    %v3297 = vld [vmem:[%s5 + $0x140] sm:$0xff]
    %v3298 = vld [vmem:[%s5 + $0x148] sm:$0xff]
    %v3299 = vld [vmem:[%s5 + $0x150] sm:$0xff]
    %v3300 = vld [vmem:[%s5 + $0x158] sm:$0xff]
    %v3301 = vld [vmem:[%s5 + $0x160] sm:$0xff]
    %v3302 = vld [vmem:[%s5 + $0x168] sm:$0xff]
    %v3303 = vld [vmem:[%s5 + $0x170] sm:$0xff]
    %v3304 = vld [vmem:[%s5 + $0x178] sm:$0xff]
    %v3305 = vld [vmem:[%s6] sm:$0x3]
    %v3307 = vlaneseq
    %v3308 = vshrl.u32 %v3307, 7
    %v3309 = vsub.s32 0, %v3308
    %v3310 = vrot.slane %v3305, %v3309
    %v3311 = vlaneseq
    %v3312 = vshrl.u32 %v3311, 7
    %v3313 = vsub.s32 1, %v3312
    %v3314 = vrot.slane %v3305, %v3313
    %v3365 = vunpack.c.l.b16 %v3257
    %v3366 = vunpack.c.h.b16 %v3257
    %v3367 = vunpack.c.l.b16 %v3258
    %v3368 = vunpack.c.h.b16 %v3258
    %v3369 = vunpack.c.l.b16 %v3259
    %v3370 = vunpack.c.h.b16 %v3259
    %v3371 = vunpack.c.l.b16 %v3260
    %v3372 = vunpack.c.h.b16 %v3260
    %v3373 = vunpack.c.l.b16 %v3261
    %v3374 = vunpack.c.h.b16 %v3261
    %v3375 = vunpack.c.l.b16 %v3262
    %v3376 = vunpack.c.h.b16 %v3262
    %v3377 = vunpack.c.l.b16 %v3263
    %v3378 = vunpack.c.h.b16 %v3263
    %v3379 = vunpack.c.l.b16 %v3264
    %v3380 = vunpack.c.h.b16 %v3264
    %v3381 = vunpack.c.l.b16 %v3265
    %v3382 = vunpack.c.h.b16 %v3265
    %v3383 = vunpack.c.l.b16 %v3266
    %v3384 = vunpack.c.h.b16 %v3266
    %v3385 = vunpack.c.l.b16 %v3267
    %v3386 = vunpack.c.h.b16 %v3267
    %v3387 = vunpack.c.l.b16 %v3268
    %v3388 = vunpack.c.h.b16 %v3268
    %v3389 = vunpack.c.l.b16 %v3269
    %v3390 = vunpack.c.h.b16 %v3269
    %v3391 = vunpack.c.l.b16 %v3270
    %v3392 = vunpack.c.h.b16 %v3270
    %v3393 = vunpack.c.l.b16 %v3271
    %v3394 = vunpack.c.h.b16 %v3271
    %v3395 = vunpack.c.l.b16 %v3272
    %v3396 = vunpack.c.h.b16 %v3272
    %v3397 = vunpack.c.l.b16 %v3273
    %v3398 = vunpack.c.h.b16 %v3273
    %v3399 = vunpack.c.l.b16 %v3274
    %v3400 = vunpack.c.h.b16 %v3274
    %v3401 = vunpack.c.l.b16 %v3275
    %v3402 = vunpack.c.h.b16 %v3275
    %v3403 = vunpack.c.l.b16 %v3276
    %v3404 = vunpack.c.h.b16 %v3276
    %v3405 = vunpack.c.l.b16 %v3277
    %v3406 = vunpack.c.h.b16 %v3277
    %v3407 = vunpack.c.l.b16 %v3278
    %v3408 = vunpack.c.h.b16 %v3278
    %v3409 = vunpack.c.l.b16 %v3279
    %v3410 = vunpack.c.h.b16 %v3279
    %v3411 = vunpack.c.l.b16 %v3280
    %v3412 = vunpack.c.h.b16 %v3280
    %v3413 = vunpack.c.l.b16 %v3281
    %v3414 = vunpack.c.h.b16 %v3281
    %v3415 = vunpack.c.l.b16 %v3282
    %v3416 = vunpack.c.h.b16 %v3282
    %v3417 = vunpack.c.l.b16 %v3283
    %v3418 = vunpack.c.h.b16 %v3283
    %v3419 = vunpack.c.l.b16 %v3284
    %v3420 = vunpack.c.h.b16 %v3284
    %v3421 = vunpack.c.l.b16 %v3285
    %v3422 = vunpack.c.h.b16 %v3285
    %v3423 = vunpack.c.l.b16 %v3286
    %v3424 = vunpack.c.h.b16 %v3286
    %v3425 = vunpack.c.l.b16 %v3287
    %v3426 = vunpack.c.h.b16 %v3287
    %v3427 = vunpack.c.l.b16 %v3288
    %v3428 = vunpack.c.h.b16 %v3288
    %v3429 = vunpack.c.l.b16 %v3289
    %v3430 = vunpack.c.h.b16 %v3289
    %v3431 = vunpack.c.l.b16 %v3290
    %v3432 = vunpack.c.h.b16 %v3290
    %v3433 = vunpack.c.l.b16 %v3291
    %v3434 = vunpack.c.h.b16 %v3291
    %v3435 = vunpack.c.l.b16 %v3292
    %v3436 = vunpack.c.h.b16 %v3292
    %v3437 = vunpack.c.l.b16 %v3293
    %v3438 = vunpack.c.h.b16 %v3293
    %v3439 = vunpack.c.l.b16 %v3294
    %v3440 = vunpack.c.h.b16 %v3294
    %v3441 = vunpack.c.l.b16 %v3295
    %v3442 = vunpack.c.h.b16 %v3295
    %v3443 = vunpack.c.l.b16 %v3296
    %v3444 = vunpack.c.h.b16 %v3296
    %v3445 = vunpack.c.l.b16 %v3297
    %v3446 = vunpack.c.h.b16 %v3297
    %v3447 = vunpack.c.l.b16 %v3298
    %v3448 = vunpack.c.h.b16 %v3298
    %v3449 = vunpack.c.l.b16 %v3299
    %v3450 = vunpack.c.h.b16 %v3299
    %v3451 = vunpack.c.l.b16 %v3300
    %v3452 = vunpack.c.h.b16 %v3300
    %v3453 = vunpack.c.l.b16 %v3301
    %v3454 = vunpack.c.h.b16 %v3301
    %v3455 = vunpack.c.l.b16 %v3302
    %v3456 = vunpack.c.h.b16 %v3302
    %v3457 = vunpack.c.l.b16 %v3303
    %v3458 = vunpack.c.h.b16 %v3303
    %v3459 = vunpack.c.l.b16 %v3304
    %v3460 = vunpack.c.h.b16 %v3304
    %v3461 = vpack.c.b16 %v3367, %v3365
    %v3462 = vpack.c.b16 %v3368, %v3366
    %v3463 = vpack.c.b16 %v3371, %v3369
    %v3464 = vpack.c.b16 %v3372, %v3370
    %v3465 = vpack.c.b16 %v3375, %v3373
    %v3466 = vpack.c.b16 %v3376, %v3374
    %v3467 = vpack.c.b16 %v3379, %v3377
    %v3468 = vpack.c.b16 %v3380, %v3378
    %v3469 = vpack.c.b16 %v3383, %v3381
    %v3470 = vpack.c.b16 %v3384, %v3382
    %v3471 = vpack.c.b16 %v3387, %v3385
    %v3472 = vpack.c.b16 %v3388, %v3386
    %v3473 = vpack.c.b16 %v3391, %v3389
    %v3474 = vpack.c.b16 %v3392, %v3390
    %v3475 = vpack.c.b16 %v3395, %v3393
    %v3476 = vpack.c.b16 %v3396, %v3394
    %v3477 = vpack.c.b16 %v3399, %v3397
    %v3478 = vpack.c.b16 %v3400, %v3398
    %v3479 = vpack.c.b16 %v3403, %v3401
    %v3480 = vpack.c.b16 %v3404, %v3402
    %v3481 = vpack.c.b16 %v3407, %v3405
    %v3482 = vpack.c.b16 %v3408, %v3406
    %v3483 = vpack.c.b16 %v3411, %v3409
    %v3484 = vpack.c.b16 %v3412, %v3410
    %v3485 = vpack.c.b16 %v3415, %v3413
    %v3486 = vpack.c.b16 %v3416, %v3414
    %v3487 = vpack.c.b16 %v3419, %v3417
    %v3488 = vpack.c.b16 %v3420, %v3418
    %v3489 = vpack.c.b16 %v3423, %v3421
    %v3490 = vpack.c.b16 %v3424, %v3422
    %v3491 = vpack.c.b16 %v3427, %v3425
    %v3492 = vpack.c.b16 %v3428, %v3426
    %v3493 = vpack.c.b16 %v3431, %v3429
    %v3494 = vpack.c.b16 %v3432, %v3430
    %v3495 = vpack.c.b16 %v3435, %v3433
    %v3496 = vpack.c.b16 %v3436, %v3434
    %v3497 = vpack.c.b16 %v3439, %v3437
    %v3498 = vpack.c.b16 %v3440, %v3438
    %v3499 = vpack.c.b16 %v3443, %v3441
    %v3500 = vpack.c.b16 %v3444, %v3442
    %v3501 = vpack.c.b16 %v3447, %v3445
    %v3502 = vpack.c.b16 %v3448, %v3446
    %v3503 = vpack.c.b16 %v3451, %v3449
    %v3504 = vpack.c.b16 %v3452, %v3450
    %v3505 = vpack.c.b16 %v3455, %v3453
    %v3506 = vpack.c.b16 %v3456, %v3454
    %v3507 = vpack.c.b16 %v3459, %v3457
    %v3508 = vpack.c.b16 %v3460, %v3458
    %3557 = vmatprep.subr.bf16.mxu0 %v3462
    %3558 = vmatpush1.bf16.msra.mxu0 %v3461
    %3559 = vmatprep.subr.bf16.mxu0 %v3464
    %3560 = vmatpush1.bf16.msra.mxu0 %v3463
    %3561 = vmatprep.subr.bf16.mxu0 %v3466
    %3562 = vmatpush1.bf16.msra.mxu0 %v3465
    %3563 = vmatprep.subr.bf16.mxu0 %v3468
    %3564 = vmatpush1.bf16.msra.mxu0 %v3467
    %3565 = vmatprep.subr.bf16.mxu0 %v3470
    %3566 = vmatpush1.bf16.msra.mxu0 %v3469
    %3567 = vmatprep.subr.bf16.mxu0 %v3472
    %3568 = vmatpush1.bf16.msra.mxu0 %v3471
    %3569 = vmatprep.subr.bf16.mxu0 %v3474
    %3570 = vmatpush1.bf16.msra.mxu0 %v3473
    %3571 = vmatprep.subr.bf16.mxu0 %v3476
    %3572 = vmatpush1.bf16.msra.mxu0 %v3475
    %3573 = vmatprep.subr.bf16.mxu0 %v3478
    %3574 = vmatpush1.bf16.msra.mxu0 %v3477
    %3575 = vmatprep.subr.bf16.mxu0 %v3480
    %3576 = vmatpush1.bf16.msra.mxu0 %v3479
    %3577 = vmatprep.subr.bf16.mxu0 %v3482
    %3578 = vmatpush1.bf16.msra.mxu0 %v3481
    %3579 = vmatprep.subr.bf16.mxu0 %v3484
    %3580 = vmatpush1.bf16.msra.mxu0 %v3483
    %3581 = vmatprep.subr.bf16.mxu0 %v3486
    %3582 = vmatpush1.bf16.msra.mxu0 %v3485
    %3583 = vmatprep.subr.bf16.mxu0 %v3488
    %3584 = vmatpush1.bf16.msra.mxu0 %v3487
    %3585 = vmatprep.subr.bf16.mxu0 %v3490
    %3586 = vmatpush1.bf16.msra.mxu0 %v3489
    %3587 = vmatprep.subr.bf16.mxu0 %v3492
    %3588 = vmatpush1.bf16.msra.mxu0 %v3491
    %3589 = vmatprep.mubr.bf16.mxu0 %v3255
    %3590 = vmatmul.mubr.bf16.gmra.mrb[0].mxu0 %v3254
    %v3591 = vpop.f32.mrb[0].mxu0
    %v3592 = vadd.f32 %v3310, %v3591
    %v3593 = vpop.f32.mrb[0].mxu0
    %v3594 = vadd.f32 %v3314, %v3593
    %v3595 = vpop.f32.mrb[0].mxu0
    %v3596 = vpop.f32.mrb[0].mxu0
    %3597 = vdwg.mxu0
    %3598 = vmatprep.subr.bf16.mxu0 %v3494
    %3599 = vmatpush1.bf16.msra.mxu0 %v3493
    %3600 = vmatprep.subr.bf16.mxu0 %v3496
    %3601 = vmatpush1.bf16.msra.mxu0 %v3495
    %3602 = vmatprep.subr.bf16.mxu0 %v3498
    %3603 = vmatpush1.bf16.msra.mxu0 %v3497
    %3604 = vmatprep.subr.bf16.mxu0 %v3500
    %3605 = vmatpush1.bf16.msra.mxu0 %v3499
    %3606 = vmatprep.subr.bf16.mxu0 %v3502
    %3607 = vmatpush1.bf16.msra.mxu0 %v3501
    %3608 = vmatprep.subr.bf16.mxu0 %v3504
    %3609 = vmatpush1.bf16.msra.mxu0 %v3503
    %3610 = vmatprep.subr.bf16.mxu0 %v3506
    %3611 = vmatpush1.bf16.msra.mxu0 %v3505
    %3612 = vmatprep.subr.bf16.mxu0 %v3508
    %3613 = vmatpush1.bf16.msra.mxu0 %v3507
    %3614 = vmatprep.subr.bf16.mxu0 0
    %3615 = vmatpush1.bf16.msra.mxu0 0
    %3616 = vmatprep.subr.bf16.mxu0 0
    %3617 = vmatpush1.bf16.msra.mxu0 0
    %3618 = vmatprep.subr.bf16.mxu0 0
    %3619 = vmatpush1.bf16.msra.mxu0 0
    %3620 = vmatprep.subr.bf16.mxu0 0
    %3621 = vmatpush1.bf16.msra.mxu0 0
    %3622 = vmatprep.subr.bf16.mxu0 0
    %3623 = vmatpush1.bf16.msra.mxu0 0
    %3624 = vmatprep.subr.bf16.mxu0 0
    %3625 = vmatpush1.bf16.msra.mxu0 0
    %3626 = vmatprep.subr.bf16.mxu0 0
    %3627 = vmatpush1.bf16.msra.mxu0 0
    %3628 = vmatprep.subr.bf16.mxu0 0
    %3629 = vmatpush1.bf16.msra.mxu0 0
    %3630 = vmatprep.mubr.bf16.mxu0 0
    %3631 = vmatmul.mubr.bf16.gmra.mrb[0].mxu0 %v3256
    %v3632 = vpop.f32.mrb[0].mxu0
    %v3633 = vadd.f32 %v3592, %v3632
    %v3634 = vpop.f32.mrb[0].mxu0
    %v3635 = vadd.f32 %v3594, %v3634
    %v3636 = vpop.f32.mrb[0].mxu0
    %v3637 = vpop.f32.mrb[0].mxu0
    %3638 = vdwg.mxu0
    %v3639 = vmax.f32 %v3633, 0.0
    %v3640 = vmax.f32 %v3635, 0.0
    %v3641 = vpack.c.bf16 %v3639, %v3639
    %v3642 = vpack.c.bf16 %v3640, %v3640
    %v3643 = vld [vmem:[#allocation6] sm:$0xf]
    %v3644 = vld [vmem:[#allocation6 + $0x4] sm:$0xf]
    %v3645 = vld [vmem:[#allocation6 + $0x8] sm:$0xf]
    %v3646 = vld [vmem:[#allocation6 + $0xc] sm:$0xf]
    %v3647 = vld [vmem:[#allocation6 + $0x10] sm:$0xf]
    %v3648 = vld [vmem:[#allocation6 + $0x14] sm:$0xf]
    %v3649 = vld [vmem:[#allocation6 + $0x18] sm:$0xf]
    %v3650 = vld [vmem:[#allocation6 + $0x1c] sm:$0xf]
    %v3651 = vld [vmem:[#allocation6 + $0x20] sm:$0xf]
    %v3652 = vld [vmem:[#allocation6 + $0x24] sm:$0xf]
    %v3653 = vld [vmem:[#allocation6 + $0x28] sm:$0xf]
    %v3654 = vld [vmem:[#allocation6 + $0x2c] sm:$0xf]
    %v3655 = vld [vmem:[#allocation6 + $0x30] sm:$0xf]
    %v3656 = vld [vmem:[#allocation6 + $0x34] sm:$0xf]
    %v3657 = vld [vmem:[#allocation6 + $0x38] sm:$0xf]
    %v3658 = vld [vmem:[#allocation6 + $0x3c] sm:$0xf]
    %v3659 = vld [vmem:[#allocation6 + $0x40] sm:$0xf]
    %v3660 = vld [vmem:[#allocation6 + $0x44] sm:$0xf]
    %v3661 = vld [vmem:[#allocation6 + $0x48] sm:$0xf]
    %v3662 = vld [vmem:[#allocation6 + $0x4c] sm:$0xf]
    %v3663 = vld [vmem:[#allocation6 + $0x50] sm:$0xf]
    %v3664 = vld [vmem:[#allocation6 + $0x54] sm:$0xf]
    %v3665 = vld [vmem:[#allocation6 + $0x58] sm:$0xf]
    %v3666 = vld [vmem:[#allocation6 + $0x5c] sm:$0xf]
    %v3667 = vld [vmem:[#allocation6 + $0x60] sm:$0xf]
    %v3668 = vld [vmem:[#allocation6 + $0x64] sm:$0xf]
    %v3669 = vld [vmem:[#allocation6 + $0x68] sm:$0xf]
    %v3670 = vld [vmem:[#allocation6 + $0x6c] sm:$0xf]
    %v3671 = vld [vmem:[#allocation6 + $0x70] sm:$0xf]
    %v3672 = vld [vmem:[#allocation6 + $0x74] sm:$0xf]
    %v3673 = vld [vmem:[#allocation6 + $0x78] sm:$0xf]
    %v3674 = vld [vmem:[#allocation6 + $0x7c] sm:$0xf]
    %v3675 = vld [vmem:[%s8] sm:$0x1]
    %v3677 = vlaneseq
    %v3678 = vshrl.u32 %v3677, 7
    %v3679 = vsub.s32 0, %v3678
    %v3680 = vrot.slane %v3675, %v3679
    %v3714 = vunpack.c.l.b16 %v3643
    %v3715 = vunpack.c.l.b16 %v3644
    %v3716 = vunpack.c.l.b16 %v3645
    %v3717 = vunpack.c.l.b16 %v3646
    %v3718 = vunpack.c.l.b16 %v3647
    %v3719 = vunpack.c.l.b16 %v3648
    %v3720 = vunpack.c.l.b16 %v3649
    %v3721 = vunpack.c.l.b16 %v3650
    %v3722 = vunpack.c.l.b16 %v3651
    %v3723 = vunpack.c.l.b16 %v3652
    %v3724 = vunpack.c.l.b16 %v3653
    %v3725 = vunpack.c.l.b16 %v3654
    %v3726 = vunpack.c.l.b16 %v3655
    %v3727 = vunpack.c.l.b16 %v3656
    %v3728 = vunpack.c.l.b16 %v3657
    %v3729 = vunpack.c.l.b16 %v3658
    %v3730 = vunpack.c.l.b16 %v3659
    %v3731 = vunpack.c.l.b16 %v3660
    %v3732 = vunpack.c.l.b16 %v3661
    %v3733 = vunpack.c.l.b16 %v3662
    %v3734 = vunpack.c.l.b16 %v3663
    %v3735 = vunpack.c.l.b16 %v3664
    %v3736 = vunpack.c.l.b16 %v3665
    %v3737 = vunpack.c.l.b16 %v3666
    %v3738 = vunpack.c.l.b16 %v3667
    %v3739 = vunpack.c.l.b16 %v3668
    %v3740 = vunpack.c.l.b16 %v3669
    %v3741 = vunpack.c.l.b16 %v3670
    %v3742 = vunpack.c.l.b16 %v3671
    %v3743 = vunpack.c.l.b16 %v3672
    %v3744 = vunpack.c.l.b16 %v3673
    %v3745 = vunpack.c.l.b16 %v3674
    %v3746 = vpack.c.b16 %v3715, %v3714
    %v3747 = vpack.c.b16 %v3717, %v3716
    %v3748 = vpack.c.b16 %v3719, %v3718
    %v3749 = vpack.c.b16 %v3721, %v3720
    %v3750 = vpack.c.b16 %v3723, %v3722
    %v3751 = vpack.c.b16 %v3725, %v3724
    %v3752 = vpack.c.b16 %v3727, %v3726
    %v3753 = vpack.c.b16 %v3729, %v3728
    %v3754 = vpack.c.b16 %v3731, %v3730
    %v3755 = vpack.c.b16 %v3733, %v3732
    %v3756 = vpack.c.b16 %v3735, %v3734
    %v3757 = vpack.c.b16 %v3737, %v3736
    %v3758 = vpack.c.b16 %v3739, %v3738
    %v3759 = vpack.c.b16 %v3741, %v3740
    %v3760 = vpack.c.b16 %v3743, %v3742
    %v3761 = vpack.c.b16 %v3745, %v3744
    %3778 = vmatprep.subr.bf16.mxu0 0
    %3779 = vmatpush1.bf16.msra.mxu0 %v3746
    %3780 = vmatprep.subr.bf16.mxu0 0
    %3781 = vmatpush1.bf16.msra.mxu0 %v3747
    %3782 = vmatprep.subr.bf16.mxu0 0
    %3783 = vmatpush1.bf16.msra.mxu0 %v3748
    %3784 = vmatprep.subr.bf16.mxu0 0
    %3785 = vmatpush1.bf16.msra.mxu0 %v3749
    %3786 = vmatprep.subr.bf16.mxu0 0
    %3787 = vmatpush1.bf16.msra.mxu0 %v3750
    %3788 = vmatprep.subr.bf16.mxu0 0
    %3789 = vmatpush1.bf16.msra.mxu0 %v3751
    %3790 = vmatprep.subr.bf16.mxu0 0
    %3791 = vmatpush1.bf16.msra.mxu0 %v3752
    %3792 = vmatprep.subr.bf16.mxu0 0
    %3793 = vmatpush1.bf16.msra.mxu0 %v3753
    %3794 = vmatprep.subr.bf16.mxu0 0
    %3795 = vmatpush1.bf16.msra.mxu0 %v3754
    %3796 = vmatprep.subr.bf16.mxu0 0
    %3797 = vmatpush1.bf16.msra.mxu0 %v3755
    %3798 = vmatprep.subr.bf16.mxu0 0
    %3799 = vmatpush1.bf16.msra.mxu0 %v3756
    %3800 = vmatprep.subr.bf16.mxu0 0
    %3801 = vmatpush1.bf16.msra.mxu0 %v3757
    %3802 = vmatprep.subr.bf16.mxu0 0
    %3803 = vmatpush1.bf16.msra.mxu0 %v3758
    %3804 = vmatprep.subr.bf16.mxu0 0
    %3805 = vmatpush1.bf16.msra.mxu0 %v3759
    %3806 = vmatprep.subr.bf16.mxu0 0
    %3807 = vmatpush1.bf16.msra.mxu0 %v3760
    %3808 = vmatprep.subr.bf16.mxu0 0
    %3809 = vmatpush1.bf16.msra.mxu0 %v3761
    %3810 = vmatprep.mubr.bf16.mxu0 %v3642
    %3811 = vmatmul.mubr.bf16.gmra.mrb[0].mxu0 %v3641
    %v3812 = vpop.f32.mrb[0].mxu0
    %v3813 = vadd.f32 %v3680, %v3812
    %v3814 = vpop.f32.mrb[0].mxu0
    %v3815 = vpop.f32.mrb[0].mxu0
    %v3816 = vpop.f32.mrb[0].mxu0
    %3817 = vdwg.mxu0
    %v3818 = vmax.f32 %v3813, 0.0
    %v3819 = vpack.c.bf16 %v3818, %v3818
    %v3820 = vld [vmem:[%s9] sm:$0xf]
    %v3821 = vld [vmem:[%s9 + $0x4] sm:$0xf]
    %v3822 = vld [vmem:[%s9 + $0x8] sm:$0xf]
    %v3823 = vld [vmem:[%s9 + $0xc] sm:$0xf]
    %v3824 = vld [vmem:[%s9 + $0x10] sm:$0xf]
    %v3825 = vld [vmem:[%s9 + $0x14] sm:$0xf]
    %v3826 = vld [vmem:[%s9 + $0x18] sm:$0xf]
    %v3827 = vld [vmem:[%s9 + $0x1c] sm:$0xf]
    %v3828 = vld [vmem:[%s9 + $0x20] sm:$0xf]
    %v3829 = vld [vmem:[%s9 + $0x24] sm:$0xf]
    %v3830 = vld [vmem:[%s9 + $0x28] sm:$0xf]
    %v3831 = vld [vmem:[%s9 + $0x2c] sm:$0xf]
    %v3832 = vld [vmem:[%s9 + $0x30] sm:$0xf]
    %v3833 = vld [vmem:[%s9 + $0x34] sm:$0xf]
    %v3834 = vld [vmem:[%s9 + $0x38] sm:$0xf]
    %v3835 = vld [vmem:[%s9 + $0x3c] sm:$0xf]
    %v3836 = vld [vmem:[%s10] sm:$0x1]
    %v3838 = vlaneseq
    %v3839 = vshrl.u32 %v3838, 7
    %v3840 = vsub.s32 0, %v3839
    %v3841 = vrot.slane %v3836, %v3840
    %v3859 = vunpack.c.l.b16 %v3820
    %v3860 = vunpack.c.l.b16 %v3821
    %v3861 = vunpack.c.l.b16 %v3822
    %v3862 = vunpack.c.l.b16 %v3823
    %v3863 = vunpack.c.l.b16 %v3824
    %v3864 = vunpack.c.l.b16 %v3825
    %v3865 = vunpack.c.l.b16 %v3826
    %v3866 = vunpack.c.l.b16 %v3827
    %v3867 = vunpack.c.l.b16 %v3828
    %v3868 = vunpack.c.l.b16 %v3829
    %v3869 = vunpack.c.l.b16 %v3830
    %v3870 = vunpack.c.l.b16 %v3831
    %v3871 = vunpack.c.l.b16 %v3832
    %v3872 = vunpack.c.l.b16 %v3833
    %v3873 = vunpack.c.l.b16 %v3834
    %v3874 = vunpack.c.l.b16 %v3835
    %v3875 = vpack.c.b16 %v3860, %v3859
    %v3876 = vpack.c.b16 %v3862, %v3861
    %v3877 = vpack.c.b16 %v3864, %v3863
    %v3878 = vpack.c.b16 %v3866, %v3865
    %v3879 = vpack.c.b16 %v3868, %v3867
    %v3880 = vpack.c.b16 %v3870, %v3869
    %v3881 = vpack.c.b16 %v3872, %v3871
    %v3882 = vpack.c.b16 %v3874, %v3873
    %3891 = vmatprep.subr.bf16.mxu0 0
    %3892 = vmatpush1.bf16.msra.mxu0 %v3875
    %3893 = vmatprep.subr.bf16.mxu0 0
    %3894 = vmatpush1.bf16.msra.mxu0 %v3876
    %3895 = vmatprep.subr.bf16.mxu0 0
    %3896 = vmatpush1.bf16.msra.mxu0 %v3877
    %3897 = vmatprep.subr.bf16.mxu0 0
    %3898 = vmatpush1.bf16.msra.mxu0 %v3878
    %3899 = vmatprep.subr.bf16.mxu0 0
    %3900 = vmatpush1.bf16.msra.mxu0 %v3879
    %3901 = vmatprep.subr.bf16.mxu0 0
    %3902 = vmatpush1.bf16.msra.mxu0 %v3880
    %3903 = vmatprep.subr.bf16.mxu0 0
    %3904 = vmatpush1.bf16.msra.mxu0 %v3881
    %3905 = vmatprep.subr.bf16.mxu0 0
    %3906 = vmatpush1.bf16.msra.mxu0 %v3882
    %3907 = vmatprep.subr.bf16.mxu0 0
    %3908 = vmatpush1.bf16.msra.mxu0 0
    %3909 = vmatprep.subr.bf16.mxu0 0
    %3910 = vmatpush1.bf16.msra.mxu0 0
    %3911 = vmatprep.subr.bf16.mxu0 0
    %3912 = vmatpush1.bf16.msra.mxu0 0
    %3913 = vmatprep.subr.bf16.mxu0 0
    %3914 = vmatpush1.bf16.msra.mxu0 0
    %3915 = vmatprep.subr.bf16.mxu0 0
    %3916 = vmatpush1.bf16.msra.mxu0 0
    %3917 = vmatprep.subr.bf16.mxu0 0
    %3918 = vmatpush1.bf16.msra.mxu0 0
    %3919 = vmatprep.subr.bf16.mxu0 0
    %3920 = vmatpush1.bf16.msra.mxu0 0
    %3921 = vmatprep.subr.bf16.mxu0 0
    %3922 = vmatpush1.bf16.msra.mxu0 0
    %3923 = vmatprep.mubr.bf16.mxu0 0
    %3924 = vmatmul.mubr.bf16.gmra.mrb[0].mxu0 %v3819
    %v3925 = vpop.f32.mrb[0].mxu0
    %v3926 = vadd.f32 %v3841, %v3925
    %v3927 = vpop.f32.mrb[0].mxu0
    %v3928 = vpop.f32.mrb[0].mxu0
    %v3929 = vpop.f32.mrb[0].mxu0
    %3930 = vdwg.mxu0
    %v3931 = vpack.c.bf16 %v3926, %v3926
    %3932 = vst [vmem:[%s11] sm:$0xf] %v3931
    // Predicated region
    $region58: #{net_forward.1} parent=1 // pred_check
      _
    $region59: #{net_forward.1} parent=1 // pred_check_branch
      %3934 = sbr.rel (0) target = $region61
    $region60: #{net_forward.1} parent=1 // pred_region
      _
    $region61: #{net_forward.1} parent=1 // pred_fallthru
      _
    // Predicated region
    $region62: #{net_forward.1} parent=1 // pred_check
      _
    $region63: #{net_forward.1} parent=1 // pred_check_branch
      %3936 = sbr.rel (0) target = $region65
    $region64: #{net_forward.1} parent=1 // pred_region
      _
    $region65: #{net_forward.1} parent=1 // pred_fallthru
      _
    %3937 = vsyncpa [#allocation3], 1
    %3938 = vsyncpa [#allocation5], 1

</llo_original>
